<compile_context>
chip_gen: v7x
topology: tpu7x:2x2x1
jax: 0.10.0
libtpu: 0.0.40
codegen_flags: <defaults>
</compile_context>

<pallas_src>
import functools

import jax
import jax.numpy as jnp
from jax.experimental import pallas as pl
from jax.experimental.pallas import tpu as pltpu


# ----------------------------- activations -----------------------------------
def _act(x, nl):
    if nl == 'RE':
        return jnp.maximum(x, 0.0)
    if nl == 'LRE':
        return jnp.where(x >= 0, x, 0.01 * x)
    if nl == 'RE6':
        return jnp.clip(x, 0.0, 6.0)
    if nl == 'HS':                      # HardSwish: x * relu6(x+3) / 6
        return x * jnp.clip(x + 3.0, 0.0, 6.0) / 6.0
    if nl == 'HG':                      # HardSigmoid: relu6(x+3) / 6
        return jnp.clip(x + 3.0, 0.0, 6.0) / 6.0
    raise ValueError(f"unknown nl {nl}")


# ----------------------------- Pallas kernel ----------------------------------
def fused_ibn_kernel(x_ref, w1_ref, s1_ref, b1_ref, w2_ref, s2_ref, b2_ref,
                     o_ref, *, kh, kw, ho, wo, nl, use_res, res_off):
    """One padded image per grid step.

    x_ref : (Hp, Wp, Cin)        bf16  (spatially padded NHWC image / s2d image)
    w1_ref: (kh*kw, Cin, hidden) bf16  (per-tap weight matrices)
    s?/b? : (1, hidden|oup)      f32   (folded BN affine)
    w2_ref: (hidden, oup)        bf16
    o_ref : (Ho, Wo, oup)        f32
    """
    cin = x_ref.shape[-1]
    hidden = w1_ref.shape[-1]
    oup = o_ref.shape[-1]
    p = ho * wo

    x = x_ref[...]                                           # (Hp, Wp, Cin) bf16

    # KxK conv = sum over taps of shifted (P, Cin) x (Cin, hidden) matmuls (MXU, f32 acc).
    acc = jnp.zeros((p, hidden), jnp.float32)
    t = 0
    for dy in range(kh):
        for dx in range(kw):
            xs = x[dy:dy + ho, dx:dx + wo, :].reshape(p, cin)        # bf16, in VMEM/vregs
            acc = acc + jnp.dot(xs, w1_ref[t],
                                preferred_element_type=jnp.float32)
            t += 1

    # BN1 (folded affine) + nonlinearity (VPU, f32)
    h = acc * s1_ref[...] + b1_ref[...]
    h = _act(h, nl)

    # 1x1 conv (MXU, f32) + BN2 affine
    y = jnp.dot(h, w2_ref[...].astype(jnp.float32),
                preferred_element_type=jnp.float32)
    y = y * s2_ref[...] + b2_ref[...]

    # residual comes straight out of the padded block already resident in VMEM
    if use_res:
        res = x[res_off:res_off + ho, res_off:res_off + wo, :].reshape(p, oup)
        y = y + res.astype(jnp.float32)

    o_ref[...] = y.reshape(ho, wo, oup).astype(o_ref.dtype)


# ----------------------------- wrapper ----------------------------------------
def fused_ibn(x_nchw, params, *, stride, nl):
    """params: dict with w1 (3,3,Cin,hidden), bn1 (gamma,beta,mean,var),
                         w2 (hidden,oup),     bn2 (gamma,beta,mean,var)."""
    eps = 1e-5
    w1 = params['w1'].astype(jnp.float32)
    w2 = params['w2'].astype(jnp.float32)
    kh0, kw0, cin, hidden = w1.shape
    oup = w2.shape[1]

    N, C, H, W = x_nchw.shape
    assert C == cin and kh0 == 3 and kw0 == 3
    assert stride in (1, 2)
    use_res = (stride == 1 and cin == oup)
    pad = (kh0 - 1) // 2

    # NCHW -> NHWC, cast to bf16 for the DMA path, pad spatially (XLA fuses these).
    x_nhwc = jnp.transpose(x_nchw, (0, 2, 3, 1)).astype(jnp.bfloat16)
    xp = jnp.pad(x_nhwc, ((0, 0), (pad, pad), (pad, pad), (0, 0)))

    if stride == 1:
        kh, kw = kh0, kw0
        cin_eff = cin
        ho, wo = H, W
        xin = xp                                                   # (N, H+2, W+2, C)
        w1_mat = w1.reshape(kh * kw, cin_eff, hidden)
        res_off = pad
    else:
        # 3x3 stride-2 conv == 2x2 stride-1 conv on a space-to-depth input.
        assert H % 2 == 0 and W % 2 == 0
        Hp, Wp = H + 2 * pad, W + 2 * pad
        kh, kw = 2, 2
        cin_eff = 4 * cin
        ho, wo = H // 2, W // 2
        xin = (xp.reshape(N, Hp // 2, 2, Wp // 2, 2, cin)
                 .transpose(0, 1, 3, 2, 4, 5)
                 .reshape(N, Hp // 2, Wp // 2, cin_eff))
        # remap weights: w'[qy,qx,(py,px,ci)] = w[2qy+py, 2qx+px, ci] (taps dy/dx==3 are zero)
        w1p = jnp.pad(w1, ((0, 1), (0, 1), (0, 0), (0, 0)))
        w1_mat = (w1p.reshape(2, 2, 2, 2, cin, hidden)
                     .transpose(0, 2, 1, 3, 4, 5)
                     .reshape(kh * kw, cin_eff, hidden))
        res_off = 0

    w1_mat = w1_mat.astype(jnp.bfloat16)
    w2_mat = w2.astype(jnp.bfloat16)

    # fold BN into per-channel scale/bias (inference-mode), kept in f32
    def fold(gamma, beta, mean, var):
        s = gamma.astype(jnp.float32) * jax.lax.rsqrt(var.astype(jnp.float32) + eps)
        b = beta.astype(jnp.float32) - mean.astype(jnp.float32) * s
        return s.reshape(1, -1), b.reshape(1, -1)

    s1, b1 = fold(*params['bn1'])
    s2, b2 = fold(*params['bn2'])

    _, hz, wz, _ = xin.shape

    # advisory cost estimate + explicit VMEM budget (double-buffered blocks + headroom)
    flops = int(2 * N * ho * wo * (kh * kw * cin_eff * hidden + hidden * oup))
    bytes_accessed = int(xin.size * 2 + w1_mat.size * 2 + w2_mat.size * 2
                         + (s1.size + b1.size + s2.size + b2.size) * 4
                         + N * ho * wo * oup * 4)
    blk_bytes = (2 * hz * wz * cin_eff * 2            # double-buffered bf16 input block
                 + 2 * ho * wo * oup * 4              # double-buffered f32 output block
                 + w1_mat.size * 2 + w2_mat.size * 2
                 + (s1.size + b1.size + s2.size + b2.size) * 4
                 + 4 * ho * wo * max(hidden, oup) * 4)  # intermediate headroom
    vmem_limit = int(min(96 * 2**20, max(32 * 2**20, 2 * blk_bytes)))

    kernel = functools.partial(fused_ibn_kernel, kh=kh, kw=kw, ho=ho, wo=wo,
                               nl=nl, use_res=use_res, res_off=res_off)

    out_nhwc = pl.pallas_call(
        kernel,
        out_shape=jax.ShapeDtypeStruct((N, ho, wo, oup), jnp.float32),
        grid_spec=pltpu.PrefetchScalarGridSpec(
            num_scalar_prefetch=0,
            grid=(N,),                                             # one image per step
            in_specs=[
                pl.BlockSpec((None, hz, wz, cin_eff), lambda n: (n, 0, 0, 0)),   # image
                pl.BlockSpec((kh * kw, cin_eff, hidden), lambda n: (0, 0, 0)),   # w1 taps
                pl.BlockSpec((1, hidden), lambda n: (0, 0)),                     # bn1 scale
                pl.BlockSpec((1, hidden), lambda n: (0, 0)),                     # bn1 bias
                pl.BlockSpec((hidden, oup), lambda n: (0, 0)),                   # w2
                pl.BlockSpec((1, oup), lambda n: (0, 0)),                        # bn2 scale
                pl.BlockSpec((1, oup), lambda n: (0, 0)),                        # bn2 bias
            ],
            out_specs=pl.BlockSpec((None, ho, wo, oup), lambda n: (n, 0, 0, 0)),
        ),
        compiler_params=pltpu.CompilerParams(
            dimension_semantics=("parallel",),
            vmem_limit_bytes=vmem_limit),
        cost_estimate=pl.CostEstimate(flops=flops, transcendentals=0,
                                      bytes_accessed=bytes_accessed),
    )(xin, w1_mat, s1, b1, w2_mat, s2, b2)

    return jnp.transpose(out_nhwc, (0, 3, 1, 2))                   # back to NCHW


# ----------------------------- pure-JAX reference ------------------------------
def fused_ibn_ref(x_nchw, params, *, stride, nl):
    eps = 1e-5
    x = jnp.transpose(x_nchw, (0, 2, 3, 1))
    # match the kernel's bf16 DMA rounding of image/weights, f32 math everywhere else
    xb = x.astype(jnp.bfloat16).astype(jnp.float32)
    w1 = params['w1'].astype(jnp.bfloat16).astype(jnp.float32)
    w2 = params['w2'].astype(jnp.bfloat16).astype(jnp.float32)
    cin, oup = w1.shape[2], w2.shape[1]
    use_res = (stride == 1 and cin == oup)

    h = jax.lax.conv_general_dilated(
        xb, w1, (stride, stride), [(1, 1), (1, 1)],
        dimension_numbers=('NHWC', 'HWIO', 'NHWC'),
        precision=jax.lax.Precision.HIGHEST)
    g, b, m, v = params['bn1']
    h = (h - m) * jax.lax.rsqrt(v + eps) * g + b
    h = _act(h, nl)
    y = jnp.einsum('nhwc,cd->nhwd', h, w2, precision=jax.lax.Precision.HIGHEST)
    g, b, m, v = params['bn2']
    y = (y - m) * jax.lax.rsqrt(v + eps) * g + b
    if use_res:
        y = y + xb
    return jnp.transpose(y, (0, 3, 1, 2))


# ----------------------------- main --------------------------------------------
if __name__ == "__main__":
    def make_params(key, inp, oup, hidden):
        ks = jax.random.split(key, 10)
        return {
            'w1': jax.random.normal(ks[0], (3, 3, inp, hidden), jnp.float32) * 0.2,
            'bn1': (jax.random.uniform(ks[1], (hidden,), minval=0.5, maxval=1.5),
                    jax.random.normal(ks[2], (hidden,)) * 0.1,
                    jax.random.normal(ks[3], (hidden,)) * 0.1,
                    jax.random.uniform(ks[4], (hidden,), minval=0.5, maxval=1.5)),
            'w2': jax.random.normal(ks[5], (hidden, oup), jnp.float32) * 0.2,
            'bn2': (jax.random.uniform(ks[6], (oup,), minval=0.5, maxval=1.5),
                    jax.random.normal(ks[7], (oup,)) * 0.1,
                    jax.random.normal(ks[8], (oup,)) * 0.1,
                    jax.random.uniform(ks[9], (oup,), minval=0.5, maxval=1.5)),
        }

    key = jax.random.PRNGKey(0)
    k0, k1, k2, k3 = jax.random.split(key, 4)
    N, H, W = 2, 16, 16

    # case 1: FusedIBN(inp=4, oup=4, stride=1, expand_ratio=2, nl='RE6') -> residual variant
    inp, oup, stride, er, nl = 4, 4, 1, 2, 'RE6'
    hidden = int(round(inp * er))
    x = jax.random.normal(k0, (N, inp, H, W), jnp.float32)
    params = make_params(k1, inp, oup, hidden)
    out = jax.block_until_ready(fused_ibn(x, params, stride=stride, nl=nl))
    ref = jax.block_until_ready(fused_ibn_ref(x, params, stride=stride, nl=nl))
    assert out.shape == (N, oup, H, W), out.shape
    assert jnp.allclose(out, ref, atol=2e-3, rtol=2e-3), float(jnp.abs(out - ref).max())

    # case 2: FusedIBN(inp=4, oup=8, stride=2, expand_ratio=3, nl='HS') -> no residual, s2d path
    inp, oup, stride, er, nl = 4, 8, 2, 3, 'HS'
    hidden = int(round(inp * er))
    x = jax.random.normal(k2, (N, inp, H, W), jnp.float32)
    params = make_params(k3, inp, oup, hidden)
    out = jax.block_until_ready(fused_ibn(x, params, stride=stride, nl=nl))
    ref = jax.block_until_ready(fused_ibn_ref(x, params, stride=stride, nl=nl))
    assert out.shape == (N, oup, H // 2, W // 2), out.shape
    assert jnp.allclose(out, ref, atol=2e-3, rtol=2e-3), float(jnp.abs(out - ref).max())

    print("KERNEL_OK")
</pallas_src>

<mosaic_0001>
module attributes {stable_mosaic.version = 11 : i64} {
  func.func @fused_ibn_kernel(%arg0: i32, %arg1: memref<1x18x18x4xbf16, #tpu.memory_space<vmem>>, %arg2: memref<9x4x8xbf16, #tpu.memory_space<vmem>>, %arg3: memref<1x8xf32, #tpu.memory_space<vmem>>, %arg4: memref<1x8xf32, #tpu.memory_space<vmem>>, %arg5: memref<8x4xbf16, #tpu.memory_space<vmem>>, %arg6: memref<1x4xf32, #tpu.memory_space<vmem>>, %arg7: memref<1x4xf32, #tpu.memory_space<vmem>>, %arg8: memref<1x16x16x4xf32, #tpu.memory_space<vmem>>) attributes {dimension_semantics = [#tpu.dimension_semantics<parallel>], iteration_bounds = array<i64: 2>, scalar_prefetch = 0 : i64, scratch_operands = 0 : i64, tpu.core_type = #tpu.core_type<tc>, window_params = [{transform_indices = @transform_0, window_bounds = array<i64: 1, 18, 18, 4>}, {pipeline_mode = #tpu.pipeline_mode<synchronous>, transform_indices = @transform_1, window_bounds = array<i64: 9, 4, 8>}, {pipeline_mode = #tpu.pipeline_mode<synchronous>, transform_indices = @transform_2, window_bounds = array<i64: 1, 8>}, {pipeline_mode = #tpu.pipeline_mode<synchronous>, transform_indices = @transform_3, window_bounds = array<i64: 1, 8>}, {pipeline_mode = #tpu.pipeline_mode<synchronous>, transform_indices = @transform_4, window_bounds = array<i64: 8, 4>}, {pipeline_mode = #tpu.pipeline_mode<synchronous>, transform_indices = @transform_5, window_bounds = array<i64: 1, 4>}, {pipeline_mode = #tpu.pipeline_mode<synchronous>, transform_indices = @transform_6, window_bounds = array<i64: 1, 4>}, {transform_indices = @transform_7, window_bounds = array<i64: 1, 16, 16, 4>}]} {
    %c0 = arith.constant 0 : index
    %c0_0 = arith.constant 0 : index
    %c0_1 = arith.constant 0 : index
    %c0_2 = arith.constant 0 : index
    %0 = vector.load %arg1[%c0, %c0_0, %c0_1, %c0_2] : memref<1x18x18x4xbf16, #tpu.memory_space<vmem>>, vector<1x18x18x4xbf16>
    %1 = vector.shape_cast %0 : vector<1x18x18x4xbf16> to vector<18x18x4xbf16>
    %cst = arith.constant 0.000000e+00 : f32
    %2 = vector.broadcast %cst : f32 to vector<256x8xf32>
    %3 = vector.extract_strided_slice %1 {offsets = [0, 0, 0], sizes = [16, 16, 4], strides = [1, 1, 1]} : vector<18x18x4xbf16> to vector<16x16x4xbf16>
    %4 = vector.shape_cast %3 : vector<16x16x4xbf16> to vector<256x4xbf16>
    %c0_3 = arith.constant 0 : index
    %c0_4 = arith.constant 0 : index
    %c0_5 = arith.constant 0 : index
    %5 = vector.load %arg2[%c0_3, %c0_4, %c0_5] : memref<9x4x8xbf16, #tpu.memory_space<vmem>>, vector<1x4x8xbf16>
    %6 = vector.shape_cast %5 : vector<1x4x8xbf16> to vector<4x8xbf16>
    %cst_6 = arith.constant dense<0.000000e+00> : vector<256x8xf32>
    %7 = tpu.matmul %4, %6, %cst_6 {dimension_numbers = #tpu.dot_dimension_numbers<[1], [0], [0], [1], [0, 0, 1, 1], [], []>} : vector<256x4xbf16>, vector<4x8xbf16>, vector<256x8xf32> -> vector<256x8xf32>
    %8 = arith.addf %2, %7 : vector<256x8xf32>
    %9 = vector.extract_strided_slice %1 {offsets = [0, 1, 0], sizes = [16, 16, 4], strides = [1, 1, 1]} : vector<18x18x4xbf16> to vector<16x16x4xbf16>
    %10 = vector.shape_cast %9 : vector<16x16x4xbf16> to vector<256x4xbf16>
    %c1 = arith.constant 1 : index
    %c0_7 = arith.constant 0 : index
    %c0_8 = arith.constant 0 : index
    %11 = vector.load %arg2[%c1, %c0_7, %c0_8] : memref<9x4x8xbf16, #tpu.memory_space<vmem>>, vector<1x4x8xbf16>
    %12 = vector.shape_cast %11 : vector<1x4x8xbf16> to vector<4x8xbf16>
    %cst_9 = arith.constant dense<0.000000e+00> : vector<256x8xf32>
    %13 = tpu.matmul %10, %12, %cst_9 {dimension_numbers = #tpu.dot_dimension_numbers<[1], [0], [0], [1], [0, 0, 1, 1], [], []>} : vector<256x4xbf16>, vector<4x8xbf16>, vector<256x8xf32> -> vector<256x8xf32>
    %14 = arith.addf %8, %13 : vector<256x8xf32>
    %15 = vector.extract_strided_slice %1 {offsets = [0, 2, 0], sizes = [16, 16, 4], strides = [1, 1, 1]} : vector<18x18x4xbf16> to vector<16x16x4xbf16>
    %16 = vector.shape_cast %15 : vector<16x16x4xbf16> to vector<256x4xbf16>
    %c2 = arith.constant 2 : index
    %c0_10 = arith.constant 0 : index
    %c0_11 = arith.constant 0 : index
    %17 = vector.load %arg2[%c2, %c0_10, %c0_11] : memref<9x4x8xbf16, #tpu.memory_space<vmem>>, vector<1x4x8xbf16>
    %18 = vector.shape_cast %17 : vector<1x4x8xbf16> to vector<4x8xbf16>
    %cst_12 = arith.constant dense<0.000000e+00> : vector<256x8xf32>
    %19 = tpu.matmul %16, %18, %cst_12 {dimension_numbers = #tpu.dot_dimension_numbers<[1], [0], [0], [1], [0, 0, 1, 1], [], []>} : vector<256x4xbf16>, vector<4x8xbf16>, vector<256x8xf32> -> vector<256x8xf32>
    %20 = arith.addf %14, %19 : vector<256x8xf32>
    %21 = vector.extract_strided_slice %1 {offsets = [1, 0, 0], sizes = [16, 16, 4], strides = [1, 1, 1]} : vector<18x18x4xbf16> to vector<16x16x4xbf16>
    %22 = vector.shape_cast %21 : vector<16x16x4xbf16> to vector<256x4xbf16>
    %c3 = arith.constant 3 : index
    %c0_13 = arith.constant 0 : index
    %c0_14 = arith.constant 0 : index
    %23 = vector.load %arg2[%c3, %c0_13, %c0_14] : memref<9x4x8xbf16, #tpu.memory_space<vmem>>, vector<1x4x8xbf16>
    %24 = vector.shape_cast %23 : vector<1x4x8xbf16> to vector<4x8xbf16>
    %cst_15 = arith.constant dense<0.000000e+00> : vector<256x8xf32>
    %25 = tpu.matmul %22, %24, %cst_15 {dimension_numbers = #tpu.dot_dimension_numbers<[1], [0], [0], [1], [0, 0, 1, 1], [], []>} : vector<256x4xbf16>, vector<4x8xbf16>, vector<256x8xf32> -> vector<256x8xf32>
    %26 = arith.addf %20, %25 : vector<256x8xf32>
    %27 = vector.extract_strided_slice %1 {offsets = [1, 1, 0], sizes = [16, 16, 4], strides = [1, 1, 1]} : vector<18x18x4xbf16> to vector<16x16x4xbf16>
    %28 = vector.shape_cast %27 : vector<16x16x4xbf16> to vector<256x4xbf16>
    %c4 = arith.constant 4 : index
    %c0_16 = arith.constant 0 : index
    %c0_17 = arith.constant 0 : index
    %29 = vector.load %arg2[%c4, %c0_16, %c0_17] : memref<9x4x8xbf16, #tpu.memory_space<vmem>>, vector<1x4x8xbf16>
    %30 = vector.shape_cast %29 : vector<1x4x8xbf16> to vector<4x8xbf16>
    %cst_18 = arith.constant dense<0.000000e+00> : vector<256x8xf32>
    %31 = tpu.matmul %28, %30, %cst_18 {dimension_numbers = #tpu.dot_dimension_numbers<[1], [0], [0], [1], [0, 0, 1, 1], [], []>} : vector<256x4xbf16>, vector<4x8xbf16>, vector<256x8xf32> -> vector<256x8xf32>
    %32 = arith.addf %26, %31 : vector<256x8xf32>
    %33 = vector.extract_strided_slice %1 {offsets = [1, 2, 0], sizes = [16, 16, 4], strides = [1, 1, 1]} : vector<18x18x4xbf16> to vector<16x16x4xbf16>
    %34 = vector.shape_cast %33 : vector<16x16x4xbf16> to vector<256x4xbf16>
    %c5 = arith.constant 5 : index
    %c0_19 = arith.constant 0 : index
    %c0_20 = arith.constant 0 : index
    %35 = vector.load %arg2[%c5, %c0_19, %c0_20] : memref<9x4x8xbf16, #tpu.memory_space<vmem>>, vector<1x4x8xbf16>
    %36 = vector.shape_cast %35 : vector<1x4x8xbf16> to vector<4x8xbf16>
    %cst_21 = arith.constant dense<0.000000e+00> : vector<256x8xf32>
    %37 = tpu.matmul %34, %36, %cst_21 {dimension_numbers = #tpu.dot_dimension_numbers<[1], [0], [0], [1], [0, 0, 1, 1], [], []>} : vector<256x4xbf16>, vector<4x8xbf16>, vector<256x8xf32> -> vector<256x8xf32>
    %38 = arith.addf %32, %37 : vector<256x8xf32>
    %39 = vector.extract_strided_slice %1 {offsets = [2, 0, 0], sizes = [16, 16, 4], strides = [1, 1, 1]} : vector<18x18x4xbf16> to vector<16x16x4xbf16>
    %40 = vector.shape_cast %39 : vector<16x16x4xbf16> to vector<256x4xbf16>
    %c6 = arith.constant 6 : index
    %c0_22 = arith.constant 0 : index
    %c0_23 = arith.constant 0 : index
    %41 = vector.load %arg2[%c6, %c0_22, %c0_23] : memref<9x4x8xbf16, #tpu.memory_space<vmem>>, vector<1x4x8xbf16>
    %42 = vector.shape_cast %41 : vector<1x4x8xbf16> to vector<4x8xbf16>
    %cst_24 = arith.constant dense<0.000000e+00> : vector<256x8xf32>
    %43 = tpu.matmul %40, %42, %cst_24 {dimension_numbers = #tpu.dot_dimension_numbers<[1], [0], [0], [1], [0, 0, 1, 1], [], []>} : vector<256x4xbf16>, vector<4x8xbf16>, vector<256x8xf32> -> vector<256x8xf32>
    %44 = arith.addf %38, %43 : vector<256x8xf32>
    %45 = vector.extract_strided_slice %1 {offsets = [2, 1, 0], sizes = [16, 16, 4], strides = [1, 1, 1]} : vector<18x18x4xbf16> to vector<16x16x4xbf16>
    %46 = vector.shape_cast %45 : vector<16x16x4xbf16> to vector<256x4xbf16>
    %c7 = arith.constant 7 : index
    %c0_25 = arith.constant 0 : index
    %c0_26 = arith.constant 0 : index
    %47 = vector.load %arg2[%c7, %c0_25, %c0_26] : memref<9x4x8xbf16, #tpu.memory_space<vmem>>, vector<1x4x8xbf16>
    %48 = vector.shape_cast %47 : vector<1x4x8xbf16> to vector<4x8xbf16>
    %cst_27 = arith.constant dense<0.000000e+00> : vector<256x8xf32>
    %49 = tpu.matmul %46, %48, %cst_27 {dimension_numbers = #tpu.dot_dimension_numbers<[1], [0], [0], [1], [0, 0, 1, 1], [], []>} : vector<256x4xbf16>, vector<4x8xbf16>, vector<256x8xf32> -> vector<256x8xf32>
    %50 = arith.addf %44, %49 : vector<256x8xf32>
    %51 = vector.extract_strided_slice %1 {offsets = [2, 2, 0], sizes = [16, 16, 4], strides = [1, 1, 1]} : vector<18x18x4xbf16> to vector<16x16x4xbf16>
    %52 = vector.shape_cast %51 : vector<16x16x4xbf16> to vector<256x4xbf16>
    %c8 = arith.constant 8 : index
    %c0_28 = arith.constant 0 : index
    %c0_29 = arith.constant 0 : index
    %53 = vector.load %arg2[%c8, %c0_28, %c0_29] : memref<9x4x8xbf16, #tpu.memory_space<vmem>>, vector<1x4x8xbf16>
    %54 = vector.shape_cast %53 : vector<1x4x8xbf16> to vector<4x8xbf16>
    %cst_30 = arith.constant dense<0.000000e+00> : vector<256x8xf32>
    %55 = tpu.matmul %52, %54, %cst_30 {dimension_numbers = #tpu.dot_dimension_numbers<[1], [0], [0], [1], [0, 0, 1, 1], [], []>} : vector<256x4xbf16>, vector<4x8xbf16>, vector<256x8xf32> -> vector<256x8xf32>
    %56 = arith.addf %50, %55 : vector<256x8xf32>
    %c0_31 = arith.constant 0 : index
    %c0_32 = arith.constant 0 : index
    %57 = vector.load %arg3[%c0_31, %c0_32] : memref<1x8xf32, #tpu.memory_space<vmem>>, vector<1x8xf32>
    %58 = vector.broadcast %57 : vector<1x8xf32> to vector<256x8xf32>
    %59 = arith.mulf %56, %58 : vector<256x8xf32>
    %c0_33 = arith.constant 0 : index
    %c0_34 = arith.constant 0 : index
    %60 = vector.load %arg4[%c0_33, %c0_34] : memref<1x8xf32, #tpu.memory_space<vmem>>, vector<1x8xf32>
    %61 = vector.broadcast %60 : vector<1x8xf32> to vector<256x8xf32>
    %62 = arith.addf %59, %61 : vector<256x8xf32>
    %cst_35 = arith.constant 0.000000e+00 : f32
    %cst_36 = arith.constant 6.000000e+00 : f32
    %63 = vector.broadcast %cst_35 : f32 to vector<256x8xf32>
    %64 = arith.maximumf %63, %62 : vector<256x8xf32>
    %65 = vector.broadcast %cst_36 : f32 to vector<256x8xf32>
    %66 = arith.minimumf %65, %64 : vector<256x8xf32>
    %c0_37 = arith.constant 0 : index
    %c0_38 = arith.constant 0 : index
    %67 = vector.load %arg5[%c0_37, %c0_38] : memref<8x4xbf16, #tpu.memory_space<vmem>>, vector<8x4xbf16>
    %68 = arith.extf %67 : vector<8x4xbf16> to vector<8x4xf32>
    %cst_39 = arith.constant dense<0.000000e+00> : vector<256x4xf32>
    %69 = tpu.matmul %66, %68, %cst_39 {dimension_numbers = #tpu.dot_dimension_numbers<[1], [0], [0], [1], [0, 0, 1, 1], [], []>} : vector<256x8xf32>, vector<8x4xf32>, vector<256x4xf32> -> vector<256x4xf32>
    %c0_40 = arith.constant 0 : index
    %c0_41 = arith.constant 0 : index
    %70 = vector.load %arg6[%c0_40, %c0_41] : memref<1x4xf32, #tpu.memory_space<vmem>>, vector<1x4xf32>
    %71 = vector.broadcast %70 : vector<1x4xf32> to vector<256x4xf32>
    %72 = arith.mulf %69, %71 : vector<256x4xf32>
    %c0_42 = arith.constant 0 : index
    %c0_43 = arith.constant 0 : index
    %73 = vector.load %arg7[%c0_42, %c0_43] : memref<1x4xf32, #tpu.memory_space<vmem>>, vector<1x4xf32>
    %74 = vector.broadcast %73 : vector<1x4xf32> to vector<256x4xf32>
    %75 = arith.addf %72, %74 : vector<256x4xf32>
    %76 = vector.extract_strided_slice %1 {offsets = [1, 1, 0], sizes = [16, 16, 4], strides = [1, 1, 1]} : vector<18x18x4xbf16> to vector<16x16x4xbf16>
    %77 = vector.shape_cast %76 : vector<16x16x4xbf16> to vector<256x4xbf16>
    %78 = arith.extf %77 : vector<256x4xbf16> to vector<256x4xf32>
    %79 = arith.addf %75, %78 : vector<256x4xf32>
    %80 = vector.shape_cast %79 : vector<256x4xf32> to vector<16x16x4xf32>
    %c0_44 = arith.constant 0 : index
    %c0_45 = arith.constant 0 : index
    %c0_46 = arith.constant 0 : index
    %c0_47 = arith.constant 0 : index
    %81 = vector.load %arg8[%c0_44, %c0_45, %c0_46, %c0_47] : memref<1x16x16x4xf32, #tpu.memory_space<vmem>>, vector<1x16x16x4xf32>
    %82 = vector.shape_cast %81 : vector<1x16x16x4xf32> to vector<16x16x4xf32>
    %83 = vector.shape_cast %80 : vector<16x16x4xf32> to vector<1x16x16x4xf32>
    tpu.vector_store %arg8[%c0_44, %c0_45, %c0_46, %c0_47], %83 {strides = array<i32>} : memref<1x16x16x4xf32, #tpu.memory_space<vmem>>, vector<1x16x16x4xf32>,
    return
  }
  func.func @transform_0(%arg0: i32) -> (i32, i32, i32, i32) {
    %c0_i32 = arith.constant 0 : i32
    %c0_i32_0 = arith.constant 0 : i32
    %c0_i32_1 = arith.constant 0 : i32
    %c0_i32_2 = arith.constant 0 : i32
    return %arg0, %c0_i32, %c0_i32_0, %c0_i32_1 : i32, i32, i32, i32
  }
  func.func @transform_1(%arg0: i32) -> (i32, i32, i32) {
    %c0_i32 = arith.constant 0 : i32
    %c0_i32_0 = arith.constant 0 : i32
    %c0_i32_1 = arith.constant 0 : i32
    %c0_i32_2 = arith.constant 0 : i32
    return %c0_i32, %c0_i32_0, %c0_i32_1 : i32, i32, i32
  }
  func.func @transform_2(%arg0: i32) -> (i32, i32) {
    %c0_i32 = arith.constant 0 : i32
    %c0_i32_0 = arith.constant 0 : i32
    %c0_i32_1 = arith.constant 0 : i32
    return %c0_i32, %c0_i32_0 : i32, i32
  }
  func.func @transform_3(%arg0: i32) -> (i32, i32) {
    %c0_i32 = arith.constant 0 : i32
    %c0_i32_0 = arith.constant 0 : i32
    %c0_i32_1 = arith.constant 0 : i32
    return %c0_i32, %c0_i32_0 : i32, i32
  }
  func.func @transform_4(%arg0: i32) -> (i32, i32) {
    %c0_i32 = arith.constant 0 : i32
    %c0_i32_0 = arith.constant 0 : i32
    %c0_i32_1 = arith.constant 0 : i32
    return %c0_i32, %c0_i32_0 : i32, i32
  }
  func.func @transform_5(%arg0: i32) -> (i32, i32) {
    %c0_i32 = arith.constant 0 : i32
    %c0_i32_0 = arith.constant 0 : i32
    %c0_i32_1 = arith.constant 0 : i32
    return %c0_i32, %c0_i32_0 : i32, i32
  }
  func.func @transform_6(%arg0: i32) -> (i32, i32) {
    %c0_i32 = arith.constant 0 : i32
    %c0_i32_0 = arith.constant 0 : i32
    %c0_i32_1 = arith.constant 0 : i32
    return %c0_i32, %c0_i32_0 : i32, i32
  }
  func.func @transform_7(%arg0: i32) -> (i32, i32, i32, i32) {
    %c0_i32 = arith.constant 0 : i32
    %c0_i32_0 = arith.constant 0 : i32
    %c0_i32_1 = arith.constant 0 : i32
    %c0_i32_2 = arith.constant 0 : i32
    return %arg0, %c0_i32, %c0_i32_0, %c0_i32_1 : i32, i32, i32, i32
  }
}

</mosaic_0001>

<llo_original>
// kernel: tpu_custom_call.1
$region0: #{tpu_custom_call.1}
  #allocation0 [shape = 'u32[]', space=smem, size = 0x4, offset = 0x4, fixed_abs, tag = 'smem constant byte address 0x4 - core index']
  #allocation1 [shape = 'u32[144,128]{1,0:T(1,128)}', space=vmem, size = 0x12000, scoped, tag = 'internal scratch']
  %s0 = inlined_call_operand.vmem [shape: bf16[2,18,18,4], index: 0, kind: input, shape index: {}]
  %s1 = inlined_call_operand.vmem [shape: bf16[9,4,8], index: 1, kind: input, shape index: {}]
  %s2 = inlined_call_operand.vmem [shape: f32[1,8], index: 2, kind: input, shape index: {}]
  %s3 = inlined_call_operand.vmem [shape: f32[1,8], index: 3, kind: input, shape index: {}]
  %s4 = inlined_call_operand.vmem [shape: bf16[8,4], index: 4, kind: input, shape index: {}]
  %s5 = inlined_call_operand.vmem [shape: f32[1,4], index: 5, kind: input, shape index: {}]
  %s6 = inlined_call_operand.vmem [shape: f32[1,4], index: 6, kind: input, shape index: {}]
  %s7 = inlined_call_operand.vmem [shape: f32[2,16,16,4], index: 7, kind: output, shape index: {}]
  %s8 = sld [smem:[#allocation0]]
  $region61: #{tpu_custom_call.1} parent=0
    _
  %s10 = ssub.s32 1, %s8
  %s11 = scalar_select 0, %s10, %s8
  loop: start=0, step=1, limit=4
  $region2: #{tpu_custom_call.1} parent=0 // loop_pre_header
    _
  $region3: #{tpu_custom_call.1} parent=0 // loop_header
    %s13 = sphi 0, %s17
    %p14 = scmp.ge.s32.totalorder %s13, 4
    %s23 = sphi 0, %s25
    %s26 = sphi 0, %s23
    %s27 = sphi 0, %s26
    %s43 = sphi 0, %s27
    %s47 = sphi 0, %s47
    %s49 = sphi 0, %s47
    %s50 = sphi 0, %s49
    %s64 = sphi 0, %s50
    %s68 = sphi 0, %s68
    %s70 = sphi 0, %s68
    %s71 = sphi 0, %s70
    %s85 = sphi 0, %s71
    %s89 = sphi 0, %s89
    %s91 = sphi 0, %s89
    %s92 = sphi 0, %s91
    %s106 = sphi 0, %s92
    %s110 = sphi 0, %s110
    %s112 = sphi 0, %s110
    %s113 = sphi 0, %s112
    %s127 = sphi 0, %s113
    %s131 = sphi 0, %s131
    %s133 = sphi 0, %s131
    %s134 = sphi 0, %s133
    %s148 = sphi 0, %s134
    %s152 = sphi 0, %s152
    %s154 = sphi 0, %s152
    %s155 = sphi 0, %s154
    %s169 = sphi 0, %s155
    %s175 = sphi 0, %s177
    %s178 = sphi 0, %s175
    %s179 = sphi 0, %s178
    %s195 = sphi 0, %s179
  $region4: #{tpu_custom_call.1} parent=0 // loop_header_branch
    %16 = sbr.rel (%p14) target = $region8
  $region5: #{tpu_custom_call.1} parent=0 // loop_body
    %s18 = ssub.s32 %s13, 1
    %s19 = ssub.s32 %s13, 2
    %s20 = sadd.s32 %s13, 1
    %s21 = ssub.s32 %s13, %s20
    %p22 = scmp.eq.s32.totalorder %s21, 0
    %s24 = sadd.s32 %s23, 1
    %s25 = scalar_select %p22, %s23, %s24
    %p28 = pneg %p22
    %p29 = scmp.eq.s32.totalorder %s13, 1
    %p30 = por %p28, %p29
    %p31 = scmp.ne.s32.totalorder %s23, %s26
    %p32 = scmp.eq.s32.totalorder %s13, 0
    %p33 = por %p31, %p32
    %p34 = scmp.ne.s32.totalorder %s23, %s26
    %p35 = scmp.eq.s32.totalorder %s18, 1
    %p36 = por %p34, %p35
    %p37 = scmp.ne.s32.totalorder %s26, %s27
    %p38 = scmp.eq.s32.totalorder %s18, 0
    %p39 = por %p37, %p38
    %p40 = scmp.ne.s32.totalorder %s26, %s27
    %p41 = scmp.eq.s32.totalorder %s19, 1
    %p42 = por %p40, %p41
    %p44 = scmp.ne.s32.totalorder %s27, %s43
    %p45 = scmp.eq.s32.totalorder %s19, 0
    %p46 = por %p44, %p45
    %s48 = sadd.s32 %s47, 1
    %p51 = scmp.eq.s32.totalorder %s13, 1
    %p52 = scmp.ne.s32.totalorder %s47, %s49
    %p53 = scmp.eq.s32.totalorder %s13, 0
    %p54 = por %p52, %p53
    %p55 = scmp.ne.s32.totalorder %s47, %s49
    %p56 = scmp.eq.s32.totalorder %s18, 1
    %p57 = por %p55, %p56
    %p58 = scmp.ne.s32.totalorder %s49, %s50
    %p59 = scmp.eq.s32.totalorder %s18, 0
    %p60 = por %p58, %p59
    %p61 = scmp.ne.s32.totalorder %s49, %s50
    %p62 = scmp.eq.s32.totalorder %s19, 1
    %p63 = por %p61, %p62
    %p65 = scmp.ne.s32.totalorder %s50, %s64
    %p66 = scmp.eq.s32.totalorder %s19, 0
    %p67 = por %p65, %p66
    %s69 = sadd.s32 %s68, 1
    %p72 = scmp.eq.s32.totalorder %s13, 1
    %p73 = scmp.ne.s32.totalorder %s68, %s70
    %p74 = scmp.eq.s32.totalorder %s13, 0
    %p75 = por %p73, %p74
    %p76 = scmp.ne.s32.totalorder %s68, %s70
    %p77 = scmp.eq.s32.totalorder %s18, 1
    %p78 = por %p76, %p77
    %p79 = scmp.ne.s32.totalorder %s70, %s71
    %p80 = scmp.eq.s32.totalorder %s18, 0
    %p81 = por %p79, %p80
    %p82 = scmp.ne.s32.totalorder %s70, %s71
    %p83 = scmp.eq.s32.totalorder %s19, 1
    %p84 = por %p82, %p83
    %p86 = scmp.ne.s32.totalorder %s71, %s85
    %p87 = scmp.eq.s32.totalorder %s19, 0
    %p88 = por %p86, %p87
    %s90 = sadd.s32 %s89, 1
    %p93 = scmp.eq.s32.totalorder %s13, 1
    %p94 = scmp.ne.s32.totalorder %s89, %s91
    %p95 = scmp.eq.s32.totalorder %s13, 0
    %p96 = por %p94, %p95
    %p97 = scmp.ne.s32.totalorder %s89, %s91
    %p98 = scmp.eq.s32.totalorder %s18, 1
    %p99 = por %p97, %p98
    %p100 = scmp.ne.s32.totalorder %s91, %s92
    %p101 = scmp.eq.s32.totalorder %s18, 0
    %p102 = por %p100, %p101
    %p103 = scmp.ne.s32.totalorder %s91, %s92
    %p104 = scmp.eq.s32.totalorder %s19, 1
    %p105 = por %p103, %p104
    %p107 = scmp.ne.s32.totalorder %s92, %s106
    %p108 = scmp.eq.s32.totalorder %s19, 0
    %p109 = por %p107, %p108
    %s111 = sadd.s32 %s110, 1
    %p114 = scmp.eq.s32.totalorder %s13, 1
    %p115 = scmp.ne.s32.totalorder %s110, %s112
    %p116 = scmp.eq.s32.totalorder %s13, 0
    %p117 = por %p115, %p116
    %p118 = scmp.ne.s32.totalorder %s110, %s112
    %p119 = scmp.eq.s32.totalorder %s18, 1
    %p120 = por %p118, %p119
    %p121 = scmp.ne.s32.totalorder %s112, %s113
    %p122 = scmp.eq.s32.totalorder %s18, 0
    %p123 = por %p121, %p122
    %p124 = scmp.ne.s32.totalorder %s112, %s113
    %p125 = scmp.eq.s32.totalorder %s19, 1
    %p126 = por %p124, %p125
    %p128 = scmp.ne.s32.totalorder %s113, %s127
    %p129 = scmp.eq.s32.totalorder %s19, 0
    %p130 = por %p128, %p129
    %s132 = sadd.s32 %s131, 1
    %p135 = scmp.eq.s32.totalorder %s13, 1
    %p136 = scmp.ne.s32.totalorder %s131, %s133
    %p137 = scmp.eq.s32.totalorder %s13, 0
    %p138 = por %p136, %p137
    %p139 = scmp.ne.s32.totalorder %s131, %s133
    %p140 = scmp.eq.s32.totalorder %s18, 1
    %p141 = por %p139, %p140
    %p142 = scmp.ne.s32.totalorder %s133, %s134
    %p143 = scmp.eq.s32.totalorder %s18, 0
    %p144 = por %p142, %p143
    %p145 = scmp.ne.s32.totalorder %s133, %s134
    %p146 = scmp.eq.s32.totalorder %s19, 1
    %p147 = por %p145, %p146
    %p149 = scmp.ne.s32.totalorder %s134, %s148
    %p150 = scmp.eq.s32.totalorder %s19, 0
    %p151 = por %p149, %p150
    %s153 = sadd.s32 %s152, 1
    %p156 = scmp.eq.s32.totalorder %s13, 1
    %p157 = scmp.ne.s32.totalorder %s152, %s154
    %p158 = scmp.eq.s32.totalorder %s13, 0
    %p159 = por %p157, %p158
    %p160 = scmp.ne.s32.totalorder %s152, %s154
    %p161 = scmp.eq.s32.totalorder %s18, 1
    %p162 = por %p160, %p161
    %p163 = scmp.ne.s32.totalorder %s154, %s155
    %p164 = scmp.eq.s32.totalorder %s18, 0
    %p165 = por %p163, %p164
    %p166 = scmp.ne.s32.totalorder %s154, %s155
    %p167 = scmp.eq.s32.totalorder %s19, 1
    %p168 = por %p166, %p167
    %p170 = scmp.ne.s32.totalorder %s155, %s169
    %p171 = scmp.eq.s32.totalorder %s19, 0
    %p172 = por %p170, %p171
    %s173 = ssub.s32 %s13, %s20
    %p174 = scmp.eq.s32.totalorder %s173, 0
    %s176 = sadd.s32 %s175, 1
    %s177 = scalar_select %p174, %s175, %s176
    %p180 = pneg %p174
    %p181 = scmp.eq.s32.totalorder %s13, 1
    %p182 = por %p180, %p181
    %p183 = scmp.ne.s32.totalorder %s175, %s178
    %p184 = scmp.eq.s32.totalorder %s13, 0
    %p185 = por %p183, %p184
    %p186 = scmp.ne.s32.totalorder %s175, %s178
    %p187 = scmp.eq.s32.totalorder %s18, 1
    %p188 = por %p186, %p187
    %p189 = scmp.ne.s32.totalorder %s178, %s179
    %p190 = scmp.eq.s32.totalorder %s18, 0
    %p191 = por %p189, %p190
    %p192 = scmp.ne.s32.totalorder %s178, %s179
    %p193 = scmp.eq.s32.totalorder %s19, 1
    %p194 = por %p192, %p193
    %p196 = scmp.ne.s32.totalorder %s179, %s195
    %p197 = scmp.eq.s32.totalorder %s19, 0
    %p198 = por %p196, %p197
    %p199 = scmp.le.s32.totalorder 1, %s13
    %p200 = scmp.lt.s32.totalorder %s13, 3
    %p201 = pnand %p199, %p200
    %p202 = pneg %p201
    // Predicated region
    $region9: #{tpu_custom_call.1} parent=5 // pred_check
      _
    $region10: #{tpu_custom_call.1} parent=5 // pred_check_branch
      %204 = sbr.rel (%p201) target = $region12
    $region11: #{tpu_custom_call.1} parent=5 // pred_region
      %s205 = ssub.s32 %s13, 1
      // Predicated region
      $region13: #{tpu_custom_call.1} parent=11 // pred_check
        %p206 = pneg %p60
      $region14: #{tpu_custom_call.1} parent=11 // pred_check_branch
        %208 = sbr.rel (%p206) target = $region16
      $region15: #{tpu_custom_call.1} parent=11 // pred_region
        _
      $region16: #{tpu_custom_call.1} parent=11 // pred_fallthru
        _
      // Predicated region
      $region17: #{tpu_custom_call.1} parent=11 // pred_check
        %p209 = pneg %p81
      $region18: #{tpu_custom_call.1} parent=11 // pred_check_branch
        %211 = sbr.rel (%p209) target = $region20
      $region19: #{tpu_custom_call.1} parent=11 // pred_region
        _
      $region20: #{tpu_custom_call.1} parent=11 // pred_fallthru
        _
      // Predicated region
      $region21: #{tpu_custom_call.1} parent=11 // pred_check
        %p212 = pneg %p102
      $region22: #{tpu_custom_call.1} parent=11 // pred_check_branch
        %214 = sbr.rel (%p212) target = $region24
      $region23: #{tpu_custom_call.1} parent=11 // pred_region
        _
      $region24: #{tpu_custom_call.1} parent=11 // pred_fallthru
        _
      // Predicated region
      $region25: #{tpu_custom_call.1} parent=11 // pred_check
        %p215 = pneg %p123
      $region26: #{tpu_custom_call.1} parent=11 // pred_check_branch
        %217 = sbr.rel (%p215) target = $region28
      $region27: #{tpu_custom_call.1} parent=11 // pred_region
        _
      $region28: #{tpu_custom_call.1} parent=11 // pred_fallthru
        _
      // Predicated region
      $region29: #{tpu_custom_call.1} parent=11 // pred_check
        %p218 = pneg %p144
      $region30: #{tpu_custom_call.1} parent=11 // pred_check_branch
        %220 = sbr.rel (%p218) target = $region32
      $region31: #{tpu_custom_call.1} parent=11 // pred_region
        _
      $region32: #{tpu_custom_call.1} parent=11 // pred_fallthru
        _
      // Predicated region
      $region33: #{tpu_custom_call.1} parent=11 // pred_check
        %p221 = pneg %p165
      $region34: #{tpu_custom_call.1} parent=11 // pred_check_branch
        %223 = sbr.rel (%p221) target = $region36
      $region35: #{tpu_custom_call.1} parent=11 // pred_region
        _
      $region36: #{tpu_custom_call.1} parent=11 // pred_fallthru
        _
    $region12: #{tpu_custom_call.1} parent=5 // pred_fallthru
      _
    %p224 = scmp.lt.s32.totalorder %s13, 2
    // Predicated region
    $region37: #{tpu_custom_call.1} parent=5 // pred_check
      %p225 = pneg %p224
    $region38: #{tpu_custom_call.1} parent=5 // pred_check_branch
      %227 = sbr.rel (%p225) target = $region40
    $region39: #{tpu_custom_call.1} parent=5 // pred_region
      // Predicated region
      $region41: #{tpu_custom_call.1} parent=39 // pred_check
        %p228 = pneg %p33
      $region42: #{tpu_custom_call.1} parent=39 // pred_check_branch
        %230 = sbr.rel (%p228) target = $region44
      $region43: #{tpu_custom_call.1} parent=39 // pred_region
        %p231 = scmp.lt.s32.totalorder %s13, 1
        %s232 = scalar_select %p231, %s13, 1
        %s233 = smul.addr %s232, 54
        %s234 = smul.addr %s233, 4
        %s235 = scalar_lea.vmem %s0, %s234
      $region44: #{tpu_custom_call.1} parent=39 // pred_fallthru
        _
    $region40: #{tpu_custom_call.1} parent=5 // pred_fallthru
      _
    %p236 = scmp.le.s32.totalorder 1, %s13
    %p237 = scmp.lt.s32.totalorder %s13, 3
    %p238 = pnand %p236, %p237
    %p239 = pneg %p238
    // Predicated region
    $region45: #{tpu_custom_call.1} parent=5 // pred_check
      _
    $region46: #{tpu_custom_call.1} parent=5 // pred_check_branch
      %241 = sbr.rel (%p238) target = $region48
    $region47: #{tpu_custom_call.1} parent=5 // pred_region
      %s242 = ssub.s32 %s13, 1
      %p243 = scmp.lt.s32.totalorder %s18, 1
      %s244 = scalar_select %p243, %s18, 1
      %s245 = smul.addr %s244, 54
      %s246 = smul.addr %s245, 4
      %s247 = scalar_lea.vmem %s0, %s246
      %p248 = pneg %p39
      %p249 = pneg %p36
      %p250 = pneg %p60
      %p251 = pneg %p57
      %p252 = pneg %p81
      %p253 = pneg %p78
      %p254 = pneg %p102
      %p255 = pneg %p99
      %p256 = pneg %p123
      %p257 = pneg %p120
      %p258 = pneg %p144
      %p259 = pneg %p141
      %p260 = pneg %p165
      %p261 = pneg %p162
      %p262 = pneg %p191
      %p263 = pneg %p188
      %p264 = scmp.lt.s32.totalorder %s18, 1
      %s265 = scalar_select %p264, %s18, 1
      %s266 = smul.addr %s265, 32
      %s267 = smul.addr %s266, 8
      %s268 = scalar_lea.vmem %s7, %s267
      %p269 = scmp.lt.s32.totalorder %s18, 1
      %s270 = scalar_select %p269, %s18, 1
      %s271 = smul.addr %s270, 54
      %s272 = smul.addr %s271, 4
      %s273 = scalar_lea.vmem %s0, %s272
      %p274 = scmp.lt.s32.totalorder %s18, 1
      %s275 = scalar_select %p274, %s18, 1
      %s276 = smul.addr %s275, 32
      %s277 = smul.addr %s276, 8
      %s278 = scalar_lea.vmem %s7, %s277
      %v280 = vld [vmem:[%s273] sm:$0xf]
      %v281 = vld [vmem:[%s273 + $0x4] sm:$0xf]
      %v282 = vld [vmem:[%s273 + $0x8] sm:$0x1]
      %v283 = vld [vmem:[%s273 + $0xc] sm:$0xf]
      %v284 = vld [vmem:[%s273 + $0x10] sm:$0xf]
      %v285 = vld [vmem:[%s273 + $0x14] sm:$0x1]
      %v286 = vld [vmem:[%s273 + $0x18] sm:$0xf]
      %v287 = vld [vmem:[%s273 + $0x1c] sm:$0xf]
      %v288 = vld [vmem:[%s273 + $0x20] sm:$0x1]
      %v289 = vld [vmem:[%s273 + $0x24] sm:$0xf]
      %v290 = vld [vmem:[%s273 + $0x28] sm:$0xf]
      %v291 = vld [vmem:[%s273 + $0x2c] sm:$0x1]
      %v292 = vld [vmem:[%s273 + $0x30] sm:$0xf]
      %v293 = vld [vmem:[%s273 + $0x34] sm:$0xf]
      %v294 = vld [vmem:[%s273 + $0x38] sm:$0x1]
      %v295 = vld [vmem:[%s273 + $0x3c] sm:$0xf]
      %v296 = vld [vmem:[%s273 + $0x40] sm:$0xf]
      %v297 = vld [vmem:[%s273 + $0x44] sm:$0x1]
      %v298 = vld [vmem:[%s273 + $0x48] sm:$0xf]
      %v299 = vld [vmem:[%s273 + $0x4c] sm:$0xf]
      %v300 = vld [vmem:[%s273 + $0x50] sm:$0x1]
      %v301 = vld [vmem:[%s273 + $0x54] sm:$0xf]
      %v302 = vld [vmem:[%s273 + $0x58] sm:$0xf]
      %v303 = vld [vmem:[%s273 + $0x5c] sm:$0x1]
      %v304 = vld [vmem:[%s273 + $0x60] sm:$0xf]
      %v305 = vld [vmem:[%s273 + $0x64] sm:$0xf]
      %v306 = vld [vmem:[%s273 + $0x68] sm:$0x1]
      %v307 = vld [vmem:[%s273 + $0x6c] sm:$0xf]
      %v308 = vld [vmem:[%s273 + $0x70] sm:$0xf]
      %v309 = vld [vmem:[%s273 + $0x74] sm:$0x1]
      %v310 = vld [vmem:[%s273 + $0x78] sm:$0xf]
      %v311 = vld [vmem:[%s273 + $0x7c] sm:$0xf]
      %v312 = vld [vmem:[%s273 + $0x80] sm:$0x1]
      %v313 = vld [vmem:[%s273 + $0x84] sm:$0xf]
      %v314 = vld [vmem:[%s273 + $0x88] sm:$0xf]
      %v315 = vld [vmem:[%s273 + $0x8c] sm:$0x1]
      %v316 = vld [vmem:[%s273 + $0x90] sm:$0xf]
      %v317 = vld [vmem:[%s273 + $0x94] sm:$0xf]
      %v318 = vld [vmem:[%s273 + $0x98] sm:$0x1]
      %v319 = vld [vmem:[%s273 + $0x9c] sm:$0xf]
      %v320 = vld [vmem:[%s273 + $0xa0] sm:$0xf]
      %v321 = vld [vmem:[%s273 + $0xa4] sm:$0x1]
      %v322 = vld [vmem:[%s273 + $0xa8] sm:$0xf]
      %v323 = vld [vmem:[%s273 + $0xac] sm:$0xf]
      %v324 = vld [vmem:[%s273 + $0xb0] sm:$0x1]
      %v325 = vld [vmem:[%s273 + $0xb4] sm:$0xf]
      %v326 = vld [vmem:[%s273 + $0xb8] sm:$0xf]
      %v327 = vld [vmem:[%s273 + $0xbc] sm:$0x1]
      %v328 = vld [vmem:[%s273 + $0xc0] sm:$0xf]
      %v329 = vld [vmem:[%s273 + $0xc4] sm:$0xf]
      %v330 = vld [vmem:[%s273 + $0xc8] sm:$0x1]
      %v331 = vld [vmem:[%s273 + $0xcc] sm:$0xf]
      %v332 = vld [vmem:[%s273 + $0xd0] sm:$0xf]
      %v333 = vld [vmem:[%s273 + $0xd4] sm:$0x1]
      %v334 = vld [vmem:[%s1] sm:$0x3]
      %vm335 = vsmask.f32 3328
      %vm336 = vsmask.f32 7440
      %vm337 = vmor %vm335, %vm336
      %v339 = vshrl.u32 %v280, 16
      %v341 = vrot.slane %v339, 4
      %v342 = vshll.u32 %v280, 16
      %v344 = vrot.slane %v342, 5
      %v345 = vor.u32 %v341, %v344
      %v346 = vrot.slane %v345, 4
      %v348 = vshll.u32 %v281, 16
      %v350 = vrot.slane %v348, 5
      %v351 = vsel %vm337, %v346, %v350
      %v352 = vshrl.u32 %v281, 16
      %v354 = vrot.slane %v352, 4
      %v355 = vor.u32 %v354, %v350
      %v356 = vrot.slane %v355, 4
      %v358 = vshll.u32 %v282, 16
      %v360 = vrot.slane %v358, 5
      %v361 = vsel %vm337, %v356, %v360
      %v363 = vshrl.u32 %v283, 16
      %v365 = vrot.slane %v363, 4
      %v366 = vshll.u32 %v283, 16
      %v368 = vrot.slane %v366, 5
      %v369 = vor.u32 %v365, %v368
      %v370 = vrot.slane %v369, 4
      %v372 = vshll.u32 %v284, 16
      %v374 = vrot.slane %v372, 5
      %v375 = vsel %vm337, %v370, %v374
      %v376 = vshrl.u32 %v284, 16
      %v378 = vrot.slane %v376, 4
      %v379 = vor.u32 %v378, %v374
      %v380 = vrot.slane %v379, 4
      %v382 = vshll.u32 %v285, 16
      %v384 = vrot.slane %v382, 5
      %v385 = vsel %vm337, %v380, %v384
      %v387 = vshrl.u32 %v286, 16
      %v389 = vrot.slane %v387, 4
      %v390 = vshll.u32 %v286, 16
      %v392 = vrot.slane %v390, 5
      %v393 = vor.u32 %v389, %v392
      %v394 = vrot.slane %v393, 4
      %v396 = vshll.u32 %v287, 16
      %v398 = vrot.slane %v396, 5
      %v399 = vsel %vm337, %v394, %v398
      %v400 = vshrl.u32 %v287, 16
      %v402 = vrot.slane %v400, 4
      %v403 = vor.u32 %v402, %v398
      %v404 = vrot.slane %v403, 4
      %v406 = vshll.u32 %v288, 16
      %v408 = vrot.slane %v406, 5
      %v409 = vsel %vm337, %v404, %v408
      %v411 = vshrl.u32 %v289, 16
      %v413 = vrot.slane %v411, 4
      %v414 = vshll.u32 %v289, 16
      %v416 = vrot.slane %v414, 5
      %v417 = vor.u32 %v413, %v416
      %v418 = vrot.slane %v417, 4
      %v420 = vshll.u32 %v290, 16
      %v422 = vrot.slane %v420, 5
      %v423 = vsel %vm337, %v418, %v422
      %v424 = vshrl.u32 %v290, 16
      %v426 = vrot.slane %v424, 4
      %v427 = vor.u32 %v426, %v422
      %v428 = vrot.slane %v427, 4
      %v430 = vshll.u32 %v291, 16
      %v432 = vrot.slane %v430, 5
      %v433 = vsel %vm337, %v428, %v432
      %v435 = vshrl.u32 %v292, 16
      %v437 = vrot.slane %v435, 4
      %v438 = vshll.u32 %v292, 16
      %v440 = vrot.slane %v438, 5
      %v441 = vor.u32 %v437, %v440
      %v442 = vrot.slane %v441, 4
      %v444 = vshll.u32 %v293, 16
      %v446 = vrot.slane %v444, 5
      %v447 = vsel %vm337, %v442, %v446
      %v448 = vshrl.u32 %v293, 16
      %v450 = vrot.slane %v448, 4
      %v451 = vor.u32 %v450, %v446
      %v452 = vrot.slane %v451, 4
      %v454 = vshll.u32 %v294, 16
      %v456 = vrot.slane %v454, 5
      %v457 = vsel %vm337, %v452, %v456
      %v459 = vshrl.u32 %v295, 16
      %v461 = vrot.slane %v459, 4
      %v462 = vshll.u32 %v295, 16
      %v464 = vrot.slane %v462, 5
      %v465 = vor.u32 %v461, %v464
      %v466 = vrot.slane %v465, 4
      %v468 = vshll.u32 %v296, 16
      %v470 = vrot.slane %v468, 5
      %v471 = vsel %vm337, %v466, %v470
      %v472 = vshrl.u32 %v296, 16
      %v474 = vrot.slane %v472, 4
      %v475 = vor.u32 %v474, %v470
      %v476 = vrot.slane %v475, 4
      %v478 = vshll.u32 %v297, 16
      %v480 = vrot.slane %v478, 5
      %v481 = vsel %vm337, %v476, %v480
      %v483 = vshrl.u32 %v298, 16
      %v485 = vrot.slane %v483, 4
      %v486 = vshll.u32 %v298, 16
      %v488 = vrot.slane %v486, 5
      %v489 = vor.u32 %v485, %v488
      %v490 = vrot.slane %v489, 4
      %v492 = vshll.u32 %v299, 16
      %v494 = vrot.slane %v492, 5
      %v495 = vsel %vm337, %v490, %v494
      %v496 = vshrl.u32 %v299, 16
      %v498 = vrot.slane %v496, 4
      %v499 = vor.u32 %v498, %v494
      %v500 = vrot.slane %v499, 4
      %v502 = vshll.u32 %v300, 16
      %v504 = vrot.slane %v502, 5
      %v505 = vsel %vm337, %v500, %v504
      %v507 = vshrl.u32 %v301, 16
      %v509 = vrot.slane %v507, 4
      %v510 = vshll.u32 %v301, 16
      %v512 = vrot.slane %v510, 5
      %v513 = vor.u32 %v509, %v512
      %v514 = vrot.slane %v513, 4
      %v516 = vshll.u32 %v302, 16
      %v518 = vrot.slane %v516, 5
      %v519 = vsel %vm337, %v514, %v518
      %v520 = vshrl.u32 %v302, 16
      %v522 = vrot.slane %v520, 4
      %v523 = vor.u32 %v522, %v518
      %v524 = vrot.slane %v523, 4
      %v526 = vshll.u32 %v303, 16
      %v528 = vrot.slane %v526, 5
      %v529 = vsel %vm337, %v524, %v528
      %v531 = vshrl.u32 %v304, 16
      %v533 = vrot.slane %v531, 4
      %v534 = vshll.u32 %v304, 16
      %v536 = vrot.slane %v534, 5
      %v537 = vor.u32 %v533, %v536
      %v538 = vrot.slane %v537, 4
      %v540 = vshll.u32 %v305, 16
      %v542 = vrot.slane %v540, 5
      %v543 = vsel %vm337, %v538, %v542
      %v544 = vshrl.u32 %v305, 16
      %v546 = vrot.slane %v544, 4
      %v547 = vor.u32 %v546, %v542
      %v548 = vrot.slane %v547, 4
      %v550 = vshll.u32 %v306, 16
      %v552 = vrot.slane %v550, 5
      %v553 = vsel %vm337, %v548, %v552
      %v555 = vshrl.u32 %v307, 16
      %v557 = vrot.slane %v555, 4
      %v558 = vshll.u32 %v307, 16
      %v560 = vrot.slane %v558, 5
      %v561 = vor.u32 %v557, %v560
      %v562 = vrot.slane %v561, 4
      %v564 = vshll.u32 %v308, 16
      %v566 = vrot.slane %v564, 5
      %v567 = vsel %vm337, %v562, %v566
      %v568 = vshrl.u32 %v308, 16
      %v570 = vrot.slane %v568, 4
      %v571 = vor.u32 %v570, %v566
      %v572 = vrot.slane %v571, 4
      %v574 = vshll.u32 %v309, 16
      %v576 = vrot.slane %v574, 5
      %v577 = vsel %vm337, %v572, %v576
      %v579 = vshrl.u32 %v310, 16
      %v581 = vrot.slane %v579, 4
      %v582 = vshll.u32 %v310, 16
      %v584 = vrot.slane %v582, 5
      %v585 = vor.u32 %v581, %v584
      %v586 = vrot.slane %v585, 4
      %v588 = vshll.u32 %v311, 16
      %v590 = vrot.slane %v588, 5
      %v591 = vsel %vm337, %v586, %v590
      %v592 = vshrl.u32 %v311, 16
      %v594 = vrot.slane %v592, 4
      %v595 = vor.u32 %v594, %v590
      %v596 = vrot.slane %v595, 4
      %v598 = vshll.u32 %v312, 16
      %v600 = vrot.slane %v598, 5
      %v601 = vsel %vm337, %v596, %v600
      %v603 = vshrl.u32 %v313, 16
      %v605 = vrot.slane %v603, 4
      %v606 = vshll.u32 %v313, 16
      %v608 = vrot.slane %v606, 5
      %v609 = vor.u32 %v605, %v608
      %v610 = vrot.slane %v609, 4
      %v612 = vshll.u32 %v314, 16
      %v614 = vrot.slane %v612, 5
      %v615 = vsel %vm337, %v610, %v614
      %v616 = vshrl.u32 %v314, 16
      %v618 = vrot.slane %v616, 4
      %v619 = vor.u32 %v618, %v614
      %v620 = vrot.slane %v619, 4
      %v622 = vshll.u32 %v315, 16
      %v624 = vrot.slane %v622, 5
      %v625 = vsel %vm337, %v620, %v624
      %v627 = vshrl.u32 %v316, 16
      %v629 = vrot.slane %v627, 4
      %v630 = vshll.u32 %v316, 16
      %v632 = vrot.slane %v630, 5
      %v633 = vor.u32 %v629, %v632
      %v634 = vrot.slane %v633, 4
      %v636 = vshll.u32 %v317, 16
      %v638 = vrot.slane %v636, 5
      %v639 = vsel %vm337, %v634, %v638
      %v640 = vshrl.u32 %v317, 16
      %v642 = vrot.slane %v640, 4
      %v643 = vor.u32 %v642, %v638
      %v644 = vrot.slane %v643, 4
      %v646 = vshll.u32 %v318, 16
      %v648 = vrot.slane %v646, 5
      %v649 = vsel %vm337, %v644, %v648
      %v651 = vshrl.u32 %v319, 16
      %v653 = vrot.slane %v651, 4
      %v654 = vshll.u32 %v319, 16
      %v656 = vrot.slane %v654, 5
      %v657 = vor.u32 %v653, %v656
      %v658 = vrot.slane %v657, 4
      %v660 = vshll.u32 %v320, 16
      %v662 = vrot.slane %v660, 5
      %v663 = vsel %vm337, %v658, %v662
      %v664 = vshrl.u32 %v320, 16
      %v666 = vrot.slane %v664, 4
      %v667 = vor.u32 %v666, %v662
      %v668 = vrot.slane %v667, 4
      %v670 = vshll.u32 %v321, 16
      %v672 = vrot.slane %v670, 5
      %v673 = vsel %vm337, %v668, %v672
      %v675 = vshrl.u32 %v322, 16
      %v677 = vrot.slane %v675, 4
      %v678 = vshll.u32 %v322, 16
      %v680 = vrot.slane %v678, 5
      %v681 = vor.u32 %v677, %v680
      %v682 = vrot.slane %v681, 4
      %v684 = vshll.u32 %v323, 16
      %v686 = vrot.slane %v684, 5
      %v687 = vsel %vm337, %v682, %v686
      %v688 = vshrl.u32 %v323, 16
      %v690 = vrot.slane %v688, 4
      %v691 = vor.u32 %v690, %v686
      %v692 = vrot.slane %v691, 4
      %v694 = vshll.u32 %v324, 16
      %v696 = vrot.slane %v694, 5
      %v697 = vsel %vm337, %v692, %v696
      %v699 = vshrl.u32 %v325, 16
      %v701 = vrot.slane %v699, 4
      %v702 = vshll.u32 %v325, 16
      %v704 = vrot.slane %v702, 5
      %v705 = vor.u32 %v701, %v704
      %v706 = vrot.slane %v705, 4
      %v708 = vshll.u32 %v326, 16
      %v710 = vrot.slane %v708, 5
      %v711 = vsel %vm337, %v706, %v710
      %v712 = vshrl.u32 %v326, 16
      %v714 = vrot.slane %v712, 4
      %v715 = vor.u32 %v714, %v710
      %v716 = vrot.slane %v715, 4
      %v718 = vshll.u32 %v327, 16
      %v720 = vrot.slane %v718, 5
      %v721 = vsel %vm337, %v716, %v720
      %s722 = scalar_lea.vmem %s1, 2
      %v723 = vld [vmem:[%s722] sm:$0x3]
      %v724 = vunpack.c.l.b16 %v351
      %v725 = vunpack.c.l.b16 %v361
      %v726 = vunpack.c.l.b16 %v375
      %v727 = vunpack.c.l.b16 %v385
      %v728 = vunpack.c.l.b16 %v399
      %v729 = vunpack.c.l.b16 %v409
      %v730 = vunpack.c.l.b16 %v423
      %v731 = vunpack.c.l.b16 %v433
      %v732 = vunpack.c.l.b16 %v447
      %v733 = vunpack.c.l.b16 %v457
      %v734 = vunpack.c.l.b16 %v471
      %v735 = vunpack.c.l.b16 %v481
      %v736 = vunpack.c.l.b16 %v495
      %v737 = vunpack.c.l.b16 %v505
      %v738 = vunpack.c.l.b16 %v519
      %v739 = vunpack.c.l.b16 %v529
      %v740 = vunpack.c.l.b16 %v543
      %v741 = vunpack.c.l.b16 %v553
      %v742 = vunpack.c.l.b16 %v567
      %v743 = vunpack.c.l.b16 %v577
      %v744 = vunpack.c.l.b16 %v591
      %v745 = vunpack.c.l.b16 %v601
      %v746 = vunpack.c.l.b16 %v615
      %v747 = vunpack.c.l.b16 %v625
      %v748 = vunpack.c.l.b16 %v639
      %v749 = vunpack.c.l.b16 %v649
      %v750 = vunpack.c.l.b16 %v663
      %v751 = vunpack.c.l.b16 %v673
      %v752 = vunpack.c.l.b16 %v687
      %v753 = vunpack.c.l.b16 %v697
      %v754 = vunpack.c.l.b16 %v711
      %v755 = vunpack.c.l.b16 %v721
      %v756 = vpack.c.b16 %v725, %v724
      %v757 = vpack.c.b16 %v727, %v726
      %v758 = vpack.c.b16 %v729, %v728
      %v759 = vpack.c.b16 %v731, %v730
      %v760 = vpack.c.b16 %v733, %v732
      %v761 = vpack.c.b16 %v735, %v734
      %v762 = vpack.c.b16 %v737, %v736
      %v763 = vpack.c.b16 %v739, %v738
      %v764 = vpack.c.b16 %v741, %v740
      %v765 = vpack.c.b16 %v743, %v742
      %v766 = vpack.c.b16 %v745, %v744
      %v767 = vpack.c.b16 %v747, %v746
      %v768 = vpack.c.b16 %v749, %v748
      %v769 = vpack.c.b16 %v751, %v750
      %v770 = vpack.c.b16 %v753, %v752
      %v771 = vpack.c.b16 %v755, %v754
      %vm772 = vcmask 31744
      %v774 = vsel %vm772, %v756, 0
      %v777 = vsel %vm772, %v757, 0
      %v780 = vsel %vm772, %v758, 0
      %v783 = vsel %vm772, %v759, 0
      %v786 = vsel %vm772, %v760, 0
      %v789 = vsel %vm772, %v761, 0
      %v792 = vsel %vm772, %v762, 0
      %v795 = vsel %vm772, %v763, 0
      %v798 = vsel %vm772, %v764, 0
      %v801 = vsel %vm772, %v765, 0
      %v804 = vsel %vm772, %v766, 0
      %v807 = vsel %vm772, %v767, 0
      %v810 = vsel %vm772, %v768, 0
      %v813 = vsel %vm772, %v769, 0
      %v816 = vsel %vm772, %v770, 0
      %v819 = vsel %vm772, %v771, 0
      %vm821 = vcmask 1041408
      %v823 = vsel %vm821, %v723, 0
      %825 = vmatprep.subr.bf16.mxu0 0
      %826 = vmatpush1.bf16.msra.mxu0 %v823
      %827 = vmatprep.subr.bf16.mxu0 0
      %828 = vmatpush1.bf16.msra.mxu0 0
      %829 = vmatprep.subr.bf16.mxu0 0
      %830 = vmatpush1.bf16.msra.mxu0 0
      %831 = vmatprep.subr.bf16.mxu0 0
      %832 = vmatpush1.bf16.msra.mxu0 0
      %833 = vmatprep.subr.bf16.mxu0 0
      %834 = vmatpush1.bf16.msra.mxu0 0
      %835 = vmatprep.subr.bf16.mxu0 0
      %836 = vmatpush1.bf16.msra.mxu0 0
      %837 = vmatprep.subr.bf16.mxu0 0
      %838 = vmatpush1.bf16.msra.mxu0 0
      %839 = vmatprep.subr.bf16.mxu0 0
      %840 = vmatpush1.bf16.msra.mxu0 0
      %841 = vmatprep.subr.bf16.mxu0 0
      %842 = vmatpush1.bf16.msra.mxu0 0
      %843 = vmatprep.subr.bf16.mxu0 0
      %844 = vmatpush1.bf16.msra.mxu0 0
      %845 = vmatprep.subr.bf16.mxu0 0
      %846 = vmatpush1.bf16.msra.mxu0 0
      %847 = vmatprep.subr.bf16.mxu0 0
      %848 = vmatpush1.bf16.msra.mxu0 0
      %849 = vmatprep.subr.bf16.mxu0 0
      %850 = vmatpush1.bf16.msra.mxu0 0
      %851 = vmatprep.subr.bf16.mxu0 0
      %852 = vmatpush1.bf16.msra.mxu0 0
      %853 = vmatprep.subr.bf16.mxu0 0
      %854 = vmatpush1.bf16.msra.mxu0 0
      %855 = vmatprep.subr.bf16.mxu0 0
      %856 = vmatpush1.bf16.msra.mxu0 0
      %857 = vmatprep.mubr.bf16.mxu0 0
      %858 = vmatmul.mubr.bf16.gmra.mrb[0].mxu0 %v774
      %v859 = vpop.f32.mrb[0].mxu0
      %v860 = vadd.f32 0.0, %v859
      %v861 = vpop.f32.mrb[0].mxu0
      %v862 = vpop.f32.mrb[0].mxu0
      %v863 = vadd.f32 0.0, %v862
      %v864 = vpop.f32.mrb[0].mxu0
      %865 = vmatprep.mubr.bf16.mxu0 0
      %866 = vmatmul.mubr.bf16.gmra.mrb[0].mxu0 %v777
      %v867 = vpop.f32.mrb[0].mxu0
      %v868 = vadd.f32 0.0, %v867
      %v869 = vpop.f32.mrb[0].mxu0
      %v870 = vpop.f32.mrb[0].mxu0
      %v871 = vadd.f32 0.0, %v870
      %v872 = vpop.f32.mrb[0].mxu0
      %873 = vmatprep.mubr.bf16.mxu0 0
      %874 = vmatmul.mubr.bf16.gmra.mrb[0].mxu0 %v780
      %v875 = vpop.f32.mrb[0].mxu0
      %v876 = vadd.f32 0.0, %v875
      %v877 = vpop.f32.mrb[0].mxu0
      %v878 = vpop.f32.mrb[0].mxu0
      %v879 = vadd.f32 0.0, %v878
      %v880 = vpop.f32.mrb[0].mxu0
      %881 = vmatprep.mubr.bf16.mxu0 0
      %882 = vmatmul.mubr.bf16.gmra.mrb[0].mxu0 %v783
      %v883 = vpop.f32.mrb[0].mxu0
      %v884 = vadd.f32 0.0, %v883
      %v885 = vpop.f32.mrb[0].mxu0
      %v886 = vpop.f32.mrb[0].mxu0
      %v887 = vadd.f32 0.0, %v886
      %v888 = vpop.f32.mrb[0].mxu0
      %889 = vmatprep.mubr.bf16.mxu0 0
      %890 = vmatmul.mubr.bf16.gmra.mrb[0].mxu0 %v786
      %v891 = vpop.f32.mrb[0].mxu0
      %v892 = vadd.f32 0.0, %v891
      %v893 = vpop.f32.mrb[0].mxu0
      %v894 = vpop.f32.mrb[0].mxu0
      %v895 = vadd.f32 0.0, %v894
      %v896 = vpop.f32.mrb[0].mxu0
      %897 = vmatprep.mubr.bf16.mxu0 0
      %898 = vmatmul.mubr.bf16.gmra.mrb[0].mxu0 %v789
      %v899 = vpop.f32.mrb[0].mxu0
      %v900 = vadd.f32 0.0, %v899
      %v901 = vpop.f32.mrb[0].mxu0
      %v902 = vpop.f32.mrb[0].mxu0
      %v903 = vadd.f32 0.0, %v902
      %v904 = vpop.f32.mrb[0].mxu0
      %905 = vmatprep.mubr.bf16.mxu0 0
      %906 = vmatmul.mubr.bf16.gmra.mrb[0].mxu0 %v792
      %v907 = vpop.f32.mrb[0].mxu0
      %v908 = vadd.f32 0.0, %v907
      %v909 = vpop.f32.mrb[0].mxu0
      %v910 = vpop.f32.mrb[0].mxu0
      %v911 = vadd.f32 0.0, %v910
      %v912 = vpop.f32.mrb[0].mxu0
      %913 = vmatprep.mubr.bf16.mxu0 0
      %914 = vmatmul.mubr.bf16.gmra.mrb[0].mxu0 %v795
      %v915 = vpop.f32.mrb[0].mxu0
      %v916 = vadd.f32 0.0, %v915
      %v917 = vpop.f32.mrb[0].mxu0
      %v918 = vpop.f32.mrb[0].mxu0
      %v919 = vadd.f32 0.0, %v918
      %v920 = vpop.f32.mrb[0].mxu0
      %921 = vmatprep.mubr.bf16.mxu0 0
      %922 = vmatmul.mubr.bf16.gmra.mrb[0].mxu0 %v798
      %v923 = vpop.f32.mrb[0].mxu0
      %v924 = vadd.f32 0.0, %v923
      %v925 = vpop.f32.mrb[0].mxu0
      %v926 = vpop.f32.mrb[0].mxu0
      %v927 = vadd.f32 0.0, %v926
      %v928 = vpop.f32.mrb[0].mxu0
      %929 = vmatprep.mubr.bf16.mxu0 0
      %930 = vmatmul.mubr.bf16.gmra.mrb[0].mxu0 %v801
      %v931 = vpop.f32.mrb[0].mxu0
      %v932 = vadd.f32 0.0, %v931
      %v933 = vpop.f32.mrb[0].mxu0
      %v934 = vpop.f32.mrb[0].mxu0
      %v935 = vadd.f32 0.0, %v934
      %v936 = vpop.f32.mrb[0].mxu0
      %937 = vmatprep.mubr.bf16.mxu0 0
      %938 = vmatmul.mubr.bf16.gmra.mrb[0].mxu0 %v804
      %v939 = vpop.f32.mrb[0].mxu0
      %v940 = vadd.f32 0.0, %v939
      %v941 = vpop.f32.mrb[0].mxu0
      %v942 = vpop.f32.mrb[0].mxu0
      %v943 = vadd.f32 0.0, %v942
      %v944 = vpop.f32.mrb[0].mxu0
      %945 = vmatprep.mubr.bf16.mxu0 0
      %946 = vmatmul.mubr.bf16.gmra.mrb[0].mxu0 %v807
      %v947 = vpop.f32.mrb[0].mxu0
      %v948 = vadd.f32 0.0, %v947
      %v949 = vpop.f32.mrb[0].mxu0
      %v950 = vpop.f32.mrb[0].mxu0
      %v951 = vadd.f32 0.0, %v950
      %v952 = vpop.f32.mrb[0].mxu0
      %953 = vmatprep.mubr.bf16.mxu0 0
      %954 = vmatmul.mubr.bf16.gmra.mrb[0].mxu0 %v810
      %v955 = vpop.f32.mrb[0].mxu0
      %v956 = vadd.f32 0.0, %v955
      %v957 = vpop.f32.mrb[0].mxu0
      %v958 = vpop.f32.mrb[0].mxu0
      %v959 = vadd.f32 0.0, %v958
      %v960 = vpop.f32.mrb[0].mxu0
      %961 = vmatprep.mubr.bf16.mxu0 0
      %962 = vmatmul.mubr.bf16.gmra.mrb[0].mxu0 %v813
      %v963 = vpop.f32.mrb[0].mxu0
      %v964 = vadd.f32 0.0, %v963
      %v965 = vpop.f32.mrb[0].mxu0
      %v966 = vpop.f32.mrb[0].mxu0
      %v967 = vadd.f32 0.0, %v966
      %v968 = vpop.f32.mrb[0].mxu0
      %969 = vmatprep.mubr.bf16.mxu0 0
      %970 = vmatmul.mubr.bf16.gmra.mrb[0].mxu0 %v816
      %v971 = vpop.f32.mrb[0].mxu0
      %v972 = vadd.f32 0.0, %v971
      %v973 = vpop.f32.mrb[0].mxu0
      %v974 = vpop.f32.mrb[0].mxu0
      %v975 = vadd.f32 0.0, %v974
      %v976 = vpop.f32.mrb[0].mxu0
      %977 = vmatprep.mubr.bf16.mxu0 0
      %978 = vmatmul.mubr.bf16.gmra.mrb[0].mxu0 %v819
      %v979 = vpop.f32.mrb[0].mxu0
      %v980 = vadd.f32 0.0, %v979
      %v981 = vpop.f32.mrb[0].mxu0
      %v982 = vpop.f32.mrb[0].mxu0
      %v983 = vadd.f32 0.0, %v982
      %v984 = vpop.f32.mrb[0].mxu0
      %985 = vdwg.mxu0
      %v1018 = vunpack.c.l.b16 %v280
      %v1019 = vunpack.c.l.b16 %v281
      %v1020 = vunpack.c.l.b16 %v283
      %v1021 = vunpack.c.l.b16 %v284
      %v1022 = vunpack.c.l.b16 %v286
      %v1023 = vunpack.c.l.b16 %v287
      %v1024 = vunpack.c.l.b16 %v289
      %v1025 = vunpack.c.l.b16 %v290
      %v1026 = vunpack.c.l.b16 %v292
      %v1027 = vunpack.c.l.b16 %v293
      %v1028 = vunpack.c.l.b16 %v295
      %v1029 = vunpack.c.l.b16 %v296
      %v1030 = vunpack.c.l.b16 %v298
      %v1031 = vunpack.c.l.b16 %v299
      %v1032 = vunpack.c.l.b16 %v301
      %v1033 = vunpack.c.l.b16 %v302
      %v1034 = vunpack.c.l.b16 %v304
      %v1035 = vunpack.c.l.b16 %v305
      %v1036 = vunpack.c.l.b16 %v307
      %v1037 = vunpack.c.l.b16 %v308
      %v1038 = vunpack.c.l.b16 %v310
      %v1039 = vunpack.c.l.b16 %v311
      %v1040 = vunpack.c.l.b16 %v313
      %v1041 = vunpack.c.l.b16 %v314
      %v1042 = vunpack.c.l.b16 %v316
      %v1043 = vunpack.c.l.b16 %v317
      %v1044 = vunpack.c.l.b16 %v319
      %v1045 = vunpack.c.l.b16 %v320
      %v1046 = vunpack.c.l.b16 %v322
      %v1047 = vunpack.c.l.b16 %v323
      %v1048 = vunpack.c.l.b16 %v325
      %v1049 = vunpack.c.l.b16 %v326
      %v1050 = vpack.c.b16 %v1019, %v1018
      %v1051 = vpack.c.b16 %v1021, %v1020
      %v1052 = vpack.c.b16 %v1023, %v1022
      %v1053 = vpack.c.b16 %v1025, %v1024
      %v1054 = vpack.c.b16 %v1027, %v1026
      %v1055 = vpack.c.b16 %v1029, %v1028
      %v1056 = vpack.c.b16 %v1031, %v1030
      %v1057 = vpack.c.b16 %v1033, %v1032
      %v1058 = vpack.c.b16 %v1035, %v1034
      %v1059 = vpack.c.b16 %v1037, %v1036
      %v1060 = vpack.c.b16 %v1039, %v1038
      %v1061 = vpack.c.b16 %v1041, %v1040
      %v1062 = vpack.c.b16 %v1043, %v1042
      %v1063 = vpack.c.b16 %v1045, %v1044
      %v1064 = vpack.c.b16 %v1047, %v1046
      %v1065 = vpack.c.b16 %v1049, %v1048
      %v1067 = vsel %vm772, %v1050, 0
      %v1070 = vsel %vm772, %v1051, 0
      %v1073 = vsel %vm772, %v1052, 0
      %v1076 = vsel %vm772, %v1053, 0
      %v1079 = vsel %vm772, %v1054, 0
      %v1082 = vsel %vm772, %v1055, 0
      %v1085 = vsel %vm772, %v1056, 0
      %v1088 = vsel %vm772, %v1057, 0
      %v1091 = vsel %vm772, %v1058, 0
      %v1094 = vsel %vm772, %v1059, 0
      %v1097 = vsel %vm772, %v1060, 0
      %v1100 = vsel %vm772, %v1061, 0
      %v1103 = vsel %vm772, %v1062, 0
      %v1106 = vsel %vm772, %v1063, 0
      %v1109 = vsel %vm772, %v1064, 0
      %v1112 = vsel %vm772, %v1065, 0
      %v1115 = vsel %vm821, %v334, 0
      %1117 = vmatprep.subr.bf16.mxu0 0
      %1118 = vmatpush1.bf16.msra.mxu0 %v1115
      %1119 = vmatprep.subr.bf16.mxu0 0
      %1120 = vmatpush1.bf16.msra.mxu0 0
      %1121 = vmatprep.subr.bf16.mxu0 0
      %1122 = vmatpush1.bf16.msra.mxu0 0
      %1123 = vmatprep.subr.bf16.mxu0 0
      %1124 = vmatpush1.bf16.msra.mxu0 0
      %1125 = vmatprep.subr.bf16.mxu0 0
      %1126 = vmatpush1.bf16.msra.mxu0 0
      %1127 = vmatprep.subr.bf16.mxu0 0
      %1128 = vmatpush1.bf16.msra.mxu0 0
      %1129 = vmatprep.subr.bf16.mxu0 0
      %1130 = vmatpush1.bf16.msra.mxu0 0
      %1131 = vmatprep.subr.bf16.mxu0 0
      %1132 = vmatpush1.bf16.msra.mxu0 0
      %1133 = vmatprep.subr.bf16.mxu0 0
      %1134 = vmatpush1.bf16.msra.mxu0 0
      %1135 = vmatprep.subr.bf16.mxu0 0
      %1136 = vmatpush1.bf16.msra.mxu0 0
      %1137 = vmatprep.subr.bf16.mxu0 0
      %1138 = vmatpush1.bf16.msra.mxu0 0
      %1139 = vmatprep.subr.bf16.mxu0 0
      %1140 = vmatpush1.bf16.msra.mxu0 0
      %1141 = vmatprep.subr.bf16.mxu0 0
      %1142 = vmatpush1.bf16.msra.mxu0 0
      %1143 = vmatprep.subr.bf16.mxu0 0
      %1144 = vmatpush1.bf16.msra.mxu0 0
      %1145 = vmatprep.subr.bf16.mxu0 0
      %1146 = vmatpush1.bf16.msra.mxu0 0
      %1147 = vmatprep.subr.bf16.mxu0 0
      %1148 = vmatpush1.bf16.msra.mxu0 0
      %1149 = vmatprep.mubr.bf16.mxu0 0
      %1150 = vmatmul.mubr.bf16.gmra.mrb[0].mxu0 %v1067
      %v1151 = vpop.f32.mrb[0].mxu0
      %v1152 = vadd.f32 %v860, %v1151
      %v1153 = vpop.f32.mrb[0].mxu0
      %v1154 = vpop.f32.mrb[0].mxu0
      %v1155 = vadd.f32 %v863, %v1154
      %v1156 = vpop.f32.mrb[0].mxu0
      %1157 = vmatprep.mubr.bf16.mxu0 0
      %1158 = vmatmul.mubr.bf16.gmra.mrb[0].mxu0 %v1070
      %v1159 = vpop.f32.mrb[0].mxu0
      %v1160 = vadd.f32 %v868, %v1159
      %v1161 = vpop.f32.mrb[0].mxu0
      %v1162 = vpop.f32.mrb[0].mxu0
      %v1163 = vadd.f32 %v871, %v1162
      %v1164 = vpop.f32.mrb[0].mxu0
      %1165 = vmatprep.mubr.bf16.mxu0 0
      %1166 = vmatmul.mubr.bf16.gmra.mrb[0].mxu0 %v1073
      %v1167 = vpop.f32.mrb[0].mxu0
      %v1168 = vadd.f32 %v876, %v1167
      %v1169 = vpop.f32.mrb[0].mxu0
      %v1170 = vpop.f32.mrb[0].mxu0
      %v1171 = vadd.f32 %v879, %v1170
      %v1172 = vpop.f32.mrb[0].mxu0
      %1173 = vmatprep.mubr.bf16.mxu0 0
      %1174 = vmatmul.mubr.bf16.gmra.mrb[0].mxu0 %v1076
      %v1175 = vpop.f32.mrb[0].mxu0
      %v1176 = vadd.f32 %v884, %v1175
      %v1177 = vpop.f32.mrb[0].mxu0
      %v1178 = vpop.f32.mrb[0].mxu0
      %v1179 = vadd.f32 %v887, %v1178
      %v1180 = vpop.f32.mrb[0].mxu0
      %1181 = vmatprep.mubr.bf16.mxu0 0
      %1182 = vmatmul.mubr.bf16.gmra.mrb[0].mxu0 %v1079
      %v1183 = vpop.f32.mrb[0].mxu0
      %v1184 = vadd.f32 %v892, %v1183
      %v1185 = vpop.f32.mrb[0].mxu0
      %v1186 = vpop.f32.mrb[0].mxu0
      %v1187 = vadd.f32 %v895, %v1186
      %v1188 = vpop.f32.mrb[0].mxu0
      %1189 = vmatprep.mubr.bf16.mxu0 0
      %1190 = vmatmul.mubr.bf16.gmra.mrb[0].mxu0 %v1082
      %v1191 = vpop.f32.mrb[0].mxu0
      %v1192 = vadd.f32 %v900, %v1191
      %v1193 = vpop.f32.mrb[0].mxu0
      %v1194 = vpop.f32.mrb[0].mxu0
      %v1195 = vadd.f32 %v903, %v1194
      %v1196 = vpop.f32.mrb[0].mxu0
      %1197 = vmatprep.mubr.bf16.mxu0 0
      %1198 = vmatmul.mubr.bf16.gmra.mrb[0].mxu0 %v1085
      %v1199 = vpop.f32.mrb[0].mxu0
      %v1200 = vadd.f32 %v908, %v1199
      %v1201 = vpop.f32.mrb[0].mxu0
      %v1202 = vpop.f32.mrb[0].mxu0
      %v1203 = vadd.f32 %v911, %v1202
      %v1204 = vpop.f32.mrb[0].mxu0
      %1205 = vmatprep.mubr.bf16.mxu0 0
      %1206 = vmatmul.mubr.bf16.gmra.mrb[0].mxu0 %v1088
      %v1207 = vpop.f32.mrb[0].mxu0
      %v1208 = vadd.f32 %v916, %v1207
      %v1209 = vpop.f32.mrb[0].mxu0
      %v1210 = vpop.f32.mrb[0].mxu0
      %v1211 = vadd.f32 %v919, %v1210
      %v1212 = vpop.f32.mrb[0].mxu0
      %1213 = vmatprep.mubr.bf16.mxu0 0
      %1214 = vmatmul.mubr.bf16.gmra.mrb[0].mxu0 %v1091
      %v1215 = vpop.f32.mrb[0].mxu0
      %v1216 = vadd.f32 %v924, %v1215
      %v1217 = vpop.f32.mrb[0].mxu0
      %v1218 = vpop.f32.mrb[0].mxu0
      %v1219 = vadd.f32 %v927, %v1218
      %v1220 = vpop.f32.mrb[0].mxu0
      %1221 = vmatprep.mubr.bf16.mxu0 0
      %1222 = vmatmul.mubr.bf16.gmra.mrb[0].mxu0 %v1094
      %v1223 = vpop.f32.mrb[0].mxu0
      %v1224 = vadd.f32 %v932, %v1223
      %v1225 = vpop.f32.mrb[0].mxu0
      %v1226 = vpop.f32.mrb[0].mxu0
      %v1227 = vadd.f32 %v935, %v1226
      %v1228 = vpop.f32.mrb[0].mxu0
      %1229 = vmatprep.mubr.bf16.mxu0 0
      %1230 = vmatmul.mubr.bf16.gmra.mrb[0].mxu0 %v1097
      %v1231 = vpop.f32.mrb[0].mxu0
      %v1232 = vadd.f32 %v940, %v1231
      %v1233 = vpop.f32.mrb[0].mxu0
      %v1234 = vpop.f32.mrb[0].mxu0
      %v1235 = vadd.f32 %v943, %v1234
      %v1236 = vpop.f32.mrb[0].mxu0
      %1237 = vmatprep.mubr.bf16.mxu0 0
      %1238 = vmatmul.mubr.bf16.gmra.mrb[0].mxu0 %v1100
      %v1239 = vpop.f32.mrb[0].mxu0
      %v1240 = vadd.f32 %v948, %v1239
      %v1241 = vpop.f32.mrb[0].mxu0
      %v1242 = vpop.f32.mrb[0].mxu0
      %v1243 = vadd.f32 %v951, %v1242
      %v1244 = vpop.f32.mrb[0].mxu0
      %1245 = vmatprep.mubr.bf16.mxu0 0
      %1246 = vmatmul.mubr.bf16.gmra.mrb[0].mxu0 %v1103
      %v1247 = vpop.f32.mrb[0].mxu0
      %v1248 = vadd.f32 %v956, %v1247
      %v1249 = vpop.f32.mrb[0].mxu0
      %v1250 = vpop.f32.mrb[0].mxu0
      %v1251 = vadd.f32 %v959, %v1250
      %v1252 = vpop.f32.mrb[0].mxu0
      %1253 = vmatprep.mubr.bf16.mxu0 0
      %1254 = vmatmul.mubr.bf16.gmra.mrb[0].mxu0 %v1106
      %v1255 = vpop.f32.mrb[0].mxu0
      %v1256 = vadd.f32 %v964, %v1255
      %v1257 = vpop.f32.mrb[0].mxu0
      %v1258 = vpop.f32.mrb[0].mxu0
      %v1259 = vadd.f32 %v967, %v1258
      %v1260 = vpop.f32.mrb[0].mxu0
      %1261 = vmatprep.mubr.bf16.mxu0 0
      %1262 = vmatmul.mubr.bf16.gmra.mrb[0].mxu0 %v1109
      %v1263 = vpop.f32.mrb[0].mxu0
      %v1264 = vadd.f32 %v972, %v1263
      %v1265 = vpop.f32.mrb[0].mxu0
      %v1266 = vpop.f32.mrb[0].mxu0
      %v1267 = vadd.f32 %v975, %v1266
      %v1268 = vpop.f32.mrb[0].mxu0
      %1269 = vmatprep.mubr.bf16.mxu0 0
      %1270 = vmatmul.mubr.bf16.gmra.mrb[0].mxu0 %v1112
      %v1271 = vpop.f32.mrb[0].mxu0
      %v1272 = vadd.f32 %v980, %v1271
      %v1273 = vpop.f32.mrb[0].mxu0
      %v1274 = vpop.f32.mrb[0].mxu0
      %v1275 = vadd.f32 %v983, %v1274
      %v1276 = vpop.f32.mrb[0].mxu0
      %1277 = vdwg.mxu0
      %vm1294 = vcmask 1042432
      %vm1295 = vcmask 1046532
      %vm1296 = vmor %vm1294, %vm1295
      %v1297 = vrot.slane %v280, 5
      %v1298 = vrot.slane %v1297, 4
      %v1299 = vrot.slane %v281, 5
      %v1300 = vsel %vm1296, %v1298, %v1299
      %v1301 = vrot.slane %v1299, 4
      %v1302 = vrot.slane %v282, 5
      %v1303 = vsel %vm1296, %v1301, %v1302
      %v1304 = vrot.slane %v283, 5
      %v1305 = vrot.slane %v1304, 4
      %v1306 = vrot.slane %v284, 5
      %v1307 = vsel %vm1296, %v1305, %v1306
      %v1308 = vrot.slane %v1306, 4
      %v1309 = vrot.slane %v285, 5
      %v1310 = vsel %vm1296, %v1308, %v1309
      %v1311 = vrot.slane %v286, 5
      %v1312 = vrot.slane %v1311, 4
      %v1313 = vrot.slane %v287, 5
      %v1314 = vsel %vm1296, %v1312, %v1313
      %v1315 = vrot.slane %v1313, 4
      %v1316 = vrot.slane %v288, 5
      %v1317 = vsel %vm1296, %v1315, %v1316
      %v1318 = vrot.slane %v289, 5
      %v1319 = vrot.slane %v1318, 4
      %v1320 = vrot.slane %v290, 5
      %v1321 = vsel %vm1296, %v1319, %v1320
      %v1322 = vrot.slane %v1320, 4
      %v1323 = vrot.slane %v291, 5
      %v1324 = vsel %vm1296, %v1322, %v1323
      %v1325 = vrot.slane %v292, 5
      %v1326 = vrot.slane %v1325, 4
      %v1327 = vrot.slane %v293, 5
      %v1328 = vsel %vm1296, %v1326, %v1327
      %v1329 = vrot.slane %v1327, 4
      %v1330 = vrot.slane %v294, 5
      %v1331 = vsel %vm1296, %v1329, %v1330
      %v1332 = vrot.slane %v295, 5
      %v1333 = vrot.slane %v1332, 4
      %v1334 = vrot.slane %v296, 5
      %v1335 = vsel %vm1296, %v1333, %v1334
      %v1336 = vrot.slane %v1334, 4
      %v1337 = vrot.slane %v297, 5
      %v1338 = vsel %vm1296, %v1336, %v1337
      %v1339 = vrot.slane %v298, 5
      %v1340 = vrot.slane %v1339, 4
      %v1341 = vrot.slane %v299, 5
      %v1342 = vsel %vm1296, %v1340, %v1341
      %v1343 = vrot.slane %v1341, 4
      %v1344 = vrot.slane %v300, 5
      %v1345 = vsel %vm1296, %v1343, %v1344
      %v1346 = vrot.slane %v301, 5
      %v1347 = vrot.slane %v1346, 4
      %v1348 = vrot.slane %v302, 5
      %v1349 = vsel %vm1296, %v1347, %v1348
      %v1350 = vrot.slane %v1348, 4
      %v1351 = vrot.slane %v303, 5
      %v1352 = vsel %vm1296, %v1350, %v1351
      %v1353 = vrot.slane %v304, 5
      %v1354 = vrot.slane %v1353, 4
      %v1355 = vrot.slane %v305, 5
      %v1356 = vsel %vm1296, %v1354, %v1355
      %v1357 = vrot.slane %v1355, 4
      %v1358 = vrot.slane %v306, 5
      %v1359 = vsel %vm1296, %v1357, %v1358
      %v1360 = vrot.slane %v307, 5
      %v1361 = vrot.slane %v1360, 4
      %v1362 = vrot.slane %v308, 5
      %v1363 = vsel %vm1296, %v1361, %v1362
      %v1364 = vrot.slane %v1362, 4
      %v1365 = vrot.slane %v309, 5
      %v1366 = vsel %vm1296, %v1364, %v1365
      %v1367 = vrot.slane %v310, 5
      %v1368 = vrot.slane %v1367, 4
      %v1369 = vrot.slane %v311, 5
      %v1370 = vsel %vm1296, %v1368, %v1369
      %v1371 = vrot.slane %v1369, 4
      %v1372 = vrot.slane %v312, 5
      %v1373 = vsel %vm1296, %v1371, %v1372
      %v1374 = vrot.slane %v313, 5
      %v1375 = vrot.slane %v1374, 4
      %v1376 = vrot.slane %v314, 5
      %v1377 = vsel %vm1296, %v1375, %v1376
      %v1378 = vrot.slane %v1376, 4
      %v1379 = vrot.slane %v315, 5
      %v1380 = vsel %vm1296, %v1378, %v1379
      %v1381 = vrot.slane %v316, 5
      %v1382 = vrot.slane %v1381, 4
      %v1383 = vrot.slane %v317, 5
      %v1384 = vsel %vm1296, %v1382, %v1383
      %v1385 = vrot.slane %v1383, 4
      %v1386 = vrot.slane %v318, 5
      %v1387 = vsel %vm1296, %v1385, %v1386
      %v1388 = vrot.slane %v319, 5
      %v1389 = vrot.slane %v1388, 4
      %v1390 = vrot.slane %v320, 5
      %v1391 = vsel %vm1296, %v1389, %v1390
      %v1392 = vrot.slane %v1390, 4
      %v1393 = vrot.slane %v321, 5
      %v1394 = vsel %vm1296, %v1392, %v1393
      %v1395 = vrot.slane %v322, 5
      %v1396 = vrot.slane %v1395, 4
      %v1397 = vrot.slane %v323, 5
      %v1398 = vsel %vm1296, %v1396, %v1397
      %v1399 = vrot.slane %v1397, 4
      %v1400 = vrot.slane %v324, 5
      %v1401 = vsel %vm1296, %v1399, %v1400
      %v1402 = vrot.slane %v325, 5
      %v1403 = vrot.slane %v1402, 4
      %v1404 = vrot.slane %v326, 5
      %v1405 = vsel %vm1296, %v1403, %v1404
      %v1406 = vrot.slane %v1404, 4
      %v1407 = vrot.slane %v327, 5
      %v1408 = vsel %vm1296, %v1406, %v1407
      %s1409 = scalar_lea.vmem %s1, 4
      %v1410 = vld [vmem:[%s1409] sm:$0x3]
      %v1411 = vunpack.c.l.b16 %v1300
      %v1412 = vunpack.c.l.b16 %v1303
      %v1413 = vunpack.c.l.b16 %v1307
      %v1414 = vunpack.c.l.b16 %v1310
      %v1415 = vunpack.c.l.b16 %v1314
      %v1416 = vunpack.c.l.b16 %v1317
      %v1417 = vunpack.c.l.b16 %v1321
      %v1418 = vunpack.c.l.b16 %v1324
      %v1419 = vunpack.c.l.b16 %v1328
      %v1420 = vunpack.c.l.b16 %v1331
      %v1421 = vunpack.c.l.b16 %v1335
      %v1422 = vunpack.c.l.b16 %v1338
      %v1423 = vunpack.c.l.b16 %v1342
      %v1424 = vunpack.c.l.b16 %v1345
      %v1425 = vunpack.c.l.b16 %v1349
      %v1426 = vunpack.c.l.b16 %v1352
      %v1427 = vunpack.c.l.b16 %v1356
      %v1428 = vunpack.c.l.b16 %v1359
      %v1429 = vunpack.c.l.b16 %v1363
      %v1430 = vunpack.c.l.b16 %v1366
      %v1431 = vunpack.c.l.b16 %v1370
      %v1432 = vunpack.c.l.b16 %v1373
      %v1433 = vunpack.c.l.b16 %v1377
      %v1434 = vunpack.c.l.b16 %v1380
      %v1435 = vunpack.c.l.b16 %v1384
      %v1436 = vunpack.c.l.b16 %v1387
      %v1437 = vunpack.c.l.b16 %v1391
      %v1438 = vunpack.c.l.b16 %v1394
      %v1439 = vunpack.c.l.b16 %v1398
      %v1440 = vunpack.c.l.b16 %v1401
      %v1441 = vunpack.c.l.b16 %v1405
      %v1442 = vunpack.c.l.b16 %v1408
      %v1443 = vpack.c.b16 %v1412, %v1411
      %v1444 = vpack.c.b16 %v1414, %v1413
      %v1445 = vpack.c.b16 %v1416, %v1415
      %v1446 = vpack.c.b16 %v1418, %v1417
      %v1447 = vpack.c.b16 %v1420, %v1419
      %v1448 = vpack.c.b16 %v1422, %v1421
      %v1449 = vpack.c.b16 %v1424, %v1423
      %v1450 = vpack.c.b16 %v1426, %v1425
      %v1451 = vpack.c.b16 %v1428, %v1427
      %v1452 = vpack.c.b16 %v1430, %v1429
      %v1453 = vpack.c.b16 %v1432, %v1431
      %v1454 = vpack.c.b16 %v1434, %v1433
      %v1455 = vpack.c.b16 %v1436, %v1435
      %v1456 = vpack.c.b16 %v1438, %v1437
      %v1457 = vpack.c.b16 %v1440, %v1439
      %v1458 = vpack.c.b16 %v1442, %v1441
      %v1460 = vsel %vm772, %v1443, 0
      %v1463 = vsel %vm772, %v1444, 0
      %v1466 = vsel %vm772, %v1445, 0
      %v1469 = vsel %vm772, %v1446, 0
      %v1472 = vsel %vm772, %v1447, 0
      %v1475 = vsel %vm772, %v1448, 0
      %v1478 = vsel %vm772, %v1449, 0
      %v1481 = vsel %vm772, %v1450, 0
      %v1484 = vsel %vm772, %v1451, 0
      %v1487 = vsel %vm772, %v1452, 0
      %v1490 = vsel %vm772, %v1453, 0
      %v1493 = vsel %vm772, %v1454, 0
      %v1496 = vsel %vm772, %v1455, 0
      %v1499 = vsel %vm772, %v1456, 0
      %v1502 = vsel %vm772, %v1457, 0
      %v1505 = vsel %vm772, %v1458, 0
      %v1508 = vsel %vm821, %v1410, 0
      %1510 = vmatprep.subr.bf16.mxu0 0
      %1511 = vmatpush1.bf16.msra.mxu0 %v1508
      %1512 = vmatprep.subr.bf16.mxu0 0
      %1513 = vmatpush1.bf16.msra.mxu0 0
      %1514 = vmatprep.subr.bf16.mxu0 0
      %1515 = vmatpush1.bf16.msra.mxu0 0
      %1516 = vmatprep.subr.bf16.mxu0 0
      %1517 = vmatpush1.bf16.msra.mxu0 0
      %1518 = vmatprep.subr.bf16.mxu0 0
      %1519 = vmatpush1.bf16.msra.mxu0 0
      %1520 = vmatprep.subr.bf16.mxu0 0
      %1521 = vmatpush1.bf16.msra.mxu0 0
      %1522 = vmatprep.subr.bf16.mxu0 0
      %1523 = vmatpush1.bf16.msra.mxu0 0
      %1524 = vmatprep.subr.bf16.mxu0 0
      %1525 = vmatpush1.bf16.msra.mxu0 0
      %1526 = vmatprep.subr.bf16.mxu0 0
      %1527 = vmatpush1.bf16.msra.mxu0 0
      %1528 = vmatprep.subr.bf16.mxu0 0
      %1529 = vmatpush1.bf16.msra.mxu0 0
      %1530 = vmatprep.subr.bf16.mxu0 0
      %1531 = vmatpush1.bf16.msra.mxu0 0
      %1532 = vmatprep.subr.bf16.mxu0 0
      %1533 = vmatpush1.bf16.msra.mxu0 0
      %1534 = vmatprep.subr.bf16.mxu0 0
      %1535 = vmatpush1.bf16.msra.mxu0 0
      %1536 = vmatprep.subr.bf16.mxu0 0
      %1537 = vmatpush1.bf16.msra.mxu0 0
      %1538 = vmatprep.subr.bf16.mxu0 0
      %1539 = vmatpush1.bf16.msra.mxu0 0
      %1540 = vmatprep.subr.bf16.mxu0 0
      %1541 = vmatpush1.bf16.msra.mxu0 0
      %1542 = vmatprep.mubr.bf16.mxu0 0
      %1543 = vmatmul.mubr.bf16.gmra.mrb[0].mxu0 %v1460
      %v1544 = vpop.f32.mrb[0].mxu0
      %v1545 = vadd.f32 0.0, %v1544
      %v1546 = vpop.f32.mrb[0].mxu0
      %v1547 = vpop.f32.mrb[0].mxu0
      %v1548 = vadd.f32 0.0, %v1547
      %v1549 = vpop.f32.mrb[0].mxu0
      %1550 = vmatprep.mubr.bf16.mxu0 0
      %1551 = vmatmul.mubr.bf16.gmra.mrb[0].mxu0 %v1463
      %v1552 = vpop.f32.mrb[0].mxu0
      %v1553 = vadd.f32 0.0, %v1552
      %v1554 = vpop.f32.mrb[0].mxu0
      %v1555 = vpop.f32.mrb[0].mxu0
      %v1556 = vadd.f32 0.0, %v1555
      %v1557 = vpop.f32.mrb[0].mxu0
      %1558 = vmatprep.mubr.bf16.mxu0 0
      %1559 = vmatmul.mubr.bf16.gmra.mrb[0].mxu0 %v1466
      %v1560 = vpop.f32.mrb[0].mxu0
      %v1561 = vadd.f32 0.0, %v1560
      %v1562 = vpop.f32.mrb[0].mxu0
      %v1563 = vpop.f32.mrb[0].mxu0
      %v1564 = vadd.f32 0.0, %v1563
      %v1565 = vpop.f32.mrb[0].mxu0
      %1566 = vmatprep.mubr.bf16.mxu0 0
      %1567 = vmatmul.mubr.bf16.gmra.mrb[0].mxu0 %v1469
      %v1568 = vpop.f32.mrb[0].mxu0
      %v1569 = vadd.f32 0.0, %v1568
      %v1570 = vpop.f32.mrb[0].mxu0
      %v1571 = vpop.f32.mrb[0].mxu0
      %v1572 = vadd.f32 0.0, %v1571
      %v1573 = vpop.f32.mrb[0].mxu0
      %1574 = vmatprep.mubr.bf16.mxu0 0
      %1575 = vmatmul.mubr.bf16.gmra.mrb[0].mxu0 %v1472
      %v1576 = vpop.f32.mrb[0].mxu0
      %v1577 = vadd.f32 0.0, %v1576
      %v1578 = vpop.f32.mrb[0].mxu0
      %v1579 = vpop.f32.mrb[0].mxu0
      %v1580 = vadd.f32 0.0, %v1579
      %v1581 = vpop.f32.mrb[0].mxu0
      %1582 = vmatprep.mubr.bf16.mxu0 0
      %1583 = vmatmul.mubr.bf16.gmra.mrb[0].mxu0 %v1475
      %v1584 = vpop.f32.mrb[0].mxu0
      %v1585 = vadd.f32 0.0, %v1584
      %v1586 = vpop.f32.mrb[0].mxu0
      %v1587 = vpop.f32.mrb[0].mxu0
      %v1588 = vadd.f32 0.0, %v1587
      %v1589 = vpop.f32.mrb[0].mxu0
      %1590 = vmatprep.mubr.bf16.mxu0 0
      %1591 = vmatmul.mubr.bf16.gmra.mrb[0].mxu0 %v1478
      %v1592 = vpop.f32.mrb[0].mxu0
      %v1593 = vadd.f32 0.0, %v1592
      %v1594 = vpop.f32.mrb[0].mxu0
      %v1595 = vpop.f32.mrb[0].mxu0
      %v1596 = vadd.f32 0.0, %v1595
      %v1597 = vpop.f32.mrb[0].mxu0
      %1598 = vmatprep.mubr.bf16.mxu0 0
      %1599 = vmatmul.mubr.bf16.gmra.mrb[0].mxu0 %v1481
      %v1600 = vpop.f32.mrb[0].mxu0
      %v1601 = vadd.f32 0.0, %v1600
      %v1602 = vpop.f32.mrb[0].mxu0
      %v1603 = vpop.f32.mrb[0].mxu0
      %v1604 = vadd.f32 0.0, %v1603
      %v1605 = vpop.f32.mrb[0].mxu0
      %1606 = vmatprep.mubr.bf16.mxu0 0
      %1607 = vmatmul.mubr.bf16.gmra.mrb[0].mxu0 %v1484
      %v1608 = vpop.f32.mrb[0].mxu0
      %v1609 = vadd.f32 0.0, %v1608
      %v1610 = vpop.f32.mrb[0].mxu0
      %v1611 = vpop.f32.mrb[0].mxu0
      %v1612 = vadd.f32 0.0, %v1611
      %v1613 = vpop.f32.mrb[0].mxu0
      %1614 = vmatprep.mubr.bf16.mxu0 0
      %1615 = vmatmul.mubr.bf16.gmra.mrb[0].mxu0 %v1487
      %v1616 = vpop.f32.mrb[0].mxu0
      %v1617 = vadd.f32 0.0, %v1616
      %v1618 = vpop.f32.mrb[0].mxu0
      %v1619 = vpop.f32.mrb[0].mxu0
      %v1620 = vadd.f32 0.0, %v1619
      %v1621 = vpop.f32.mrb[0].mxu0
      %1622 = vmatprep.mubr.bf16.mxu0 0
      %1623 = vmatmul.mubr.bf16.gmra.mrb[0].mxu0 %v1490
      %v1624 = vpop.f32.mrb[0].mxu0
      %v1625 = vadd.f32 0.0, %v1624
      %v1626 = vpop.f32.mrb[0].mxu0
      %v1627 = vpop.f32.mrb[0].mxu0
      %v1628 = vadd.f32 0.0, %v1627
      %v1629 = vpop.f32.mrb[0].mxu0
      %1630 = vmatprep.mubr.bf16.mxu0 0
      %1631 = vmatmul.mubr.bf16.gmra.mrb[0].mxu0 %v1493
      %v1632 = vpop.f32.mrb[0].mxu0
      %v1633 = vadd.f32 0.0, %v1632
      %v1634 = vpop.f32.mrb[0].mxu0
      %v1635 = vpop.f32.mrb[0].mxu0
      %v1636 = vadd.f32 0.0, %v1635
      %v1637 = vpop.f32.mrb[0].mxu0
      %1638 = vmatprep.mubr.bf16.mxu0 0
      %1639 = vmatmul.mubr.bf16.gmra.mrb[0].mxu0 %v1496
      %v1640 = vpop.f32.mrb[0].mxu0
      %v1641 = vadd.f32 0.0, %v1640
      %v1642 = vpop.f32.mrb[0].mxu0
      %v1643 = vpop.f32.mrb[0].mxu0
      %v1644 = vadd.f32 0.0, %v1643
      %v1645 = vpop.f32.mrb[0].mxu0
      %1646 = vmatprep.mubr.bf16.mxu0 0
      %1647 = vmatmul.mubr.bf16.gmra.mrb[0].mxu0 %v1499
      %v1648 = vpop.f32.mrb[0].mxu0
      %v1649 = vadd.f32 0.0, %v1648
      %v1650 = vpop.f32.mrb[0].mxu0
      %v1651 = vpop.f32.mrb[0].mxu0
      %v1652 = vadd.f32 0.0, %v1651
      %v1653 = vpop.f32.mrb[0].mxu0
      %1654 = vmatprep.mubr.bf16.mxu0 0
      %1655 = vmatmul.mubr.bf16.gmra.mrb[0].mxu0 %v1502
      %v1656 = vpop.f32.mrb[0].mxu0
      %v1657 = vadd.f32 0.0, %v1656
      %v1658 = vpop.f32.mrb[0].mxu0
      %v1659 = vpop.f32.mrb[0].mxu0
      %v1660 = vadd.f32 0.0, %v1659
      %v1661 = vpop.f32.mrb[0].mxu0
      %1662 = vmatprep.mubr.bf16.mxu0 0
      %1663 = vmatmul.mubr.bf16.gmra.mrb[0].mxu0 %v1505
      %v1664 = vpop.f32.mrb[0].mxu0
      %v1665 = vadd.f32 0.0, %v1664
      %v1666 = vpop.f32.mrb[0].mxu0
      %v1667 = vpop.f32.mrb[0].mxu0
      %v1668 = vadd.f32 0.0, %v1667
      %v1669 = vpop.f32.mrb[0].mxu0
      %1670 = vdwg.mxu0
      %v1671 = vadd.f32 %v1152, %v1545
      %v1672 = vadd.f32 %v1155, %v1548
      %v1673 = vadd.f32 %v1160, %v1553
      %v1674 = vadd.f32 %v1163, %v1556
      %v1675 = vadd.f32 %v1168, %v1561
      %v1676 = vadd.f32 %v1171, %v1564
      %v1677 = vadd.f32 %v1176, %v1569
      %v1678 = vadd.f32 %v1179, %v1572
      %v1679 = vadd.f32 %v1184, %v1577
      %v1680 = vadd.f32 %v1187, %v1580
      %v1681 = vadd.f32 %v1192, %v1585
      %v1682 = vadd.f32 %v1195, %v1588
      %v1683 = vadd.f32 %v1200, %v1593
      %v1684 = vadd.f32 %v1203, %v1596
      %v1685 = vadd.f32 %v1208, %v1601
      %v1686 = vadd.f32 %v1211, %v1604
      %v1687 = vadd.f32 %v1216, %v1609
      %v1688 = vadd.f32 %v1219, %v1612
      %v1689 = vadd.f32 %v1224, %v1617
      %v1690 = vadd.f32 %v1227, %v1620
      %v1691 = vadd.f32 %v1232, %v1625
      %v1692 = vadd.f32 %v1235, %v1628
      %v1693 = vadd.f32 %v1240, %v1633
      %v1694 = vadd.f32 %v1243, %v1636
      %v1695 = vadd.f32 %v1248, %v1641
      %v1696 = vadd.f32 %v1251, %v1644
      %v1697 = vadd.f32 %v1256, %v1649
      %v1698 = vadd.f32 %v1259, %v1652
      %v1699 = vadd.f32 %v1264, %v1657
      %v1700 = vadd.f32 %v1267, %v1660
      %v1701 = vadd.f32 %v1272, %v1665
      %v1702 = vadd.f32 %v1275, %v1668
      %s1703 = scalar_lea.vmem %s1, 6
      %v1704 = vld [vmem:[%s1703] sm:$0x3]
      %v1707 = vunpack.c.l.b16 %v328
      %v1708 = vunpack.c.l.b16 %v329
      %v1709 = vpack.c.b16 %v1708, %v1707
      %v1711 = vsel %vm772, %v1709, 0
      %v1714 = vsel %vm821, %v1704, 0
      %1716 = vmatprep.subr.bf16.mxu0 0
      %1717 = vmatpush1.bf16.msra.mxu0 %v1714
      %1718 = vmatprep.subr.bf16.mxu0 0
      %1719 = vmatpush1.bf16.msra.mxu0 0
      %1720 = vmatprep.subr.bf16.mxu0 0
      %1721 = vmatpush1.bf16.msra.mxu0 0
      %1722 = vmatprep.subr.bf16.mxu0 0
      %1723 = vmatpush1.bf16.msra.mxu0 0
      %1724 = vmatprep.subr.bf16.mxu0 0
      %1725 = vmatpush1.bf16.msra.mxu0 0
      %1726 = vmatprep.subr.bf16.mxu0 0
      %1727 = vmatpush1.bf16.msra.mxu0 0
      %1728 = vmatprep.subr.bf16.mxu0 0
      %1729 = vmatpush1.bf16.msra.mxu0 0
      %1730 = vmatprep.subr.bf16.mxu0 0
      %1731 = vmatpush1.bf16.msra.mxu0 0
      %1732 = vmatprep.subr.bf16.mxu0 0
      %1733 = vmatpush1.bf16.msra.mxu0 0
      %1734 = vmatprep.subr.bf16.mxu0 0
      %1735 = vmatpush1.bf16.msra.mxu0 0
      %1736 = vmatprep.subr.bf16.mxu0 0
      %1737 = vmatpush1.bf16.msra.mxu0 0
      %1738 = vmatprep.subr.bf16.mxu0 0
      %1739 = vmatpush1.bf16.msra.mxu0 0
      %1740 = vmatprep.subr.bf16.mxu0 0
      %1741 = vmatpush1.bf16.msra.mxu0 0
      %1742 = vmatprep.subr.bf16.mxu0 0
      %1743 = vmatpush1.bf16.msra.mxu0 0
      %1744 = vmatprep.subr.bf16.mxu0 0
      %1745 = vmatpush1.bf16.msra.mxu0 0
      %1746 = vmatprep.subr.bf16.mxu0 0
      %1747 = vmatpush1.bf16.msra.mxu0 0
      %1748 = vmatprep.mubr.bf16.mxu0 0
      %1749 = vmatmul.mubr.bf16.gmra.mrb[0].mxu0 %v1070
      %v1750 = vpop.f32.mrb[0].mxu0
      %v1751 = vadd.f32 0.0, %v1750
      %v1752 = vpop.f32.mrb[0].mxu0
      %v1753 = vpop.f32.mrb[0].mxu0
      %v1754 = vadd.f32 0.0, %v1753
      %v1755 = vpop.f32.mrb[0].mxu0
      %1756 = vmatprep.mubr.bf16.mxu0 0
      %1757 = vmatmul.mubr.bf16.gmra.mrb[0].mxu0 %v1073
      %v1758 = vpop.f32.mrb[0].mxu0
      %v1759 = vadd.f32 0.0, %v1758
      %v1760 = vpop.f32.mrb[0].mxu0
      %v1761 = vpop.f32.mrb[0].mxu0
      %v1762 = vadd.f32 0.0, %v1761
      %v1763 = vpop.f32.mrb[0].mxu0
      %1764 = vmatprep.mubr.bf16.mxu0 0
      %1765 = vmatmul.mubr.bf16.gmra.mrb[0].mxu0 %v1076
      %v1766 = vpop.f32.mrb[0].mxu0
      %v1767 = vadd.f32 0.0, %v1766
      %v1768 = vpop.f32.mrb[0].mxu0
      %v1769 = vpop.f32.mrb[0].mxu0
      %v1770 = vadd.f32 0.0, %v1769
      %v1771 = vpop.f32.mrb[0].mxu0
      %1772 = vmatprep.mubr.bf16.mxu0 0
      %1773 = vmatmul.mubr.bf16.gmra.mrb[0].mxu0 %v1079
      %v1774 = vpop.f32.mrb[0].mxu0
      %v1775 = vadd.f32 0.0, %v1774
      %v1776 = vpop.f32.mrb[0].mxu0
      %v1777 = vpop.f32.mrb[0].mxu0
      %v1778 = vadd.f32 0.0, %v1777
      %v1779 = vpop.f32.mrb[0].mxu0
      %1780 = vmatprep.mubr.bf16.mxu0 0
      %1781 = vmatmul.mubr.bf16.gmra.mrb[0].mxu0 %v1082
      %v1782 = vpop.f32.mrb[0].mxu0
      %v1783 = vadd.f32 0.0, %v1782
      %v1784 = vpop.f32.mrb[0].mxu0
      %v1785 = vpop.f32.mrb[0].mxu0
      %v1786 = vadd.f32 0.0, %v1785
      %v1787 = vpop.f32.mrb[0].mxu0
      %1788 = vmatprep.mubr.bf16.mxu0 0
      %1789 = vmatmul.mubr.bf16.gmra.mrb[0].mxu0 %v1085
      %v1790 = vpop.f32.mrb[0].mxu0
      %v1791 = vadd.f32 0.0, %v1790
      %v1792 = vpop.f32.mrb[0].mxu0
      %v1793 = vpop.f32.mrb[0].mxu0
      %v1794 = vadd.f32 0.0, %v1793
      %v1795 = vpop.f32.mrb[0].mxu0
      %1796 = vmatprep.mubr.bf16.mxu0 0
      %1797 = vmatmul.mubr.bf16.gmra.mrb[0].mxu0 %v1088
      %v1798 = vpop.f32.mrb[0].mxu0
      %v1799 = vadd.f32 0.0, %v1798
      %v1800 = vpop.f32.mrb[0].mxu0
      %v1801 = vpop.f32.mrb[0].mxu0
      %v1802 = vadd.f32 0.0, %v1801
      %v1803 = vpop.f32.mrb[0].mxu0
      %1804 = vmatprep.mubr.bf16.mxu0 0
      %1805 = vmatmul.mubr.bf16.gmra.mrb[0].mxu0 %v1091
      %v1806 = vpop.f32.mrb[0].mxu0
      %v1807 = vadd.f32 0.0, %v1806
      %v1808 = vpop.f32.mrb[0].mxu0
      %v1809 = vpop.f32.mrb[0].mxu0
      %v1810 = vadd.f32 0.0, %v1809
      %v1811 = vpop.f32.mrb[0].mxu0
      %1812 = vmatprep.mubr.bf16.mxu0 0
      %1813 = vmatmul.mubr.bf16.gmra.mrb[0].mxu0 %v1094
      %v1814 = vpop.f32.mrb[0].mxu0
      %v1815 = vadd.f32 0.0, %v1814
      %v1816 = vpop.f32.mrb[0].mxu0
      %v1817 = vpop.f32.mrb[0].mxu0
      %v1818 = vadd.f32 0.0, %v1817
      %v1819 = vpop.f32.mrb[0].mxu0
      %1820 = vmatprep.mubr.bf16.mxu0 0
      %1821 = vmatmul.mubr.bf16.gmra.mrb[0].mxu0 %v1097
      %v1822 = vpop.f32.mrb[0].mxu0
      %v1823 = vadd.f32 0.0, %v1822
      %v1824 = vpop.f32.mrb[0].mxu0
      %v1825 = vpop.f32.mrb[0].mxu0
      %v1826 = vadd.f32 0.0, %v1825
      %v1827 = vpop.f32.mrb[0].mxu0
      %1828 = vmatprep.mubr.bf16.mxu0 0
      %1829 = vmatmul.mubr.bf16.gmra.mrb[0].mxu0 %v1100
      %v1830 = vpop.f32.mrb[0].mxu0
      %v1831 = vadd.f32 0.0, %v1830
      %v1832 = vpop.f32.mrb[0].mxu0
      %v1833 = vpop.f32.mrb[0].mxu0
      %v1834 = vadd.f32 0.0, %v1833
      %v1835 = vpop.f32.mrb[0].mxu0
      %1836 = vmatprep.mubr.bf16.mxu0 0
      %1837 = vmatmul.mubr.bf16.gmra.mrb[0].mxu0 %v1103
      %v1838 = vpop.f32.mrb[0].mxu0
      %v1839 = vadd.f32 0.0, %v1838
      %v1840 = vpop.f32.mrb[0].mxu0
      %v1841 = vpop.f32.mrb[0].mxu0
      %v1842 = vadd.f32 0.0, %v1841
      %v1843 = vpop.f32.mrb[0].mxu0
      %1844 = vmatprep.mubr.bf16.mxu0 0
      %1845 = vmatmul.mubr.bf16.gmra.mrb[0].mxu0 %v1106
      %v1846 = vpop.f32.mrb[0].mxu0
      %v1847 = vadd.f32 0.0, %v1846
      %v1848 = vpop.f32.mrb[0].mxu0
      %v1849 = vpop.f32.mrb[0].mxu0
      %v1850 = vadd.f32 0.0, %v1849
      %v1851 = vpop.f32.mrb[0].mxu0
      %1852 = vmatprep.mubr.bf16.mxu0 0
      %1853 = vmatmul.mubr.bf16.gmra.mrb[0].mxu0 %v1109
      %v1854 = vpop.f32.mrb[0].mxu0
      %v1855 = vadd.f32 0.0, %v1854
      %v1856 = vpop.f32.mrb[0].mxu0
      %v1857 = vpop.f32.mrb[0].mxu0
      %v1858 = vadd.f32 0.0, %v1857
      %v1859 = vpop.f32.mrb[0].mxu0
      %1860 = vmatprep.mubr.bf16.mxu0 0
      %1861 = vmatmul.mubr.bf16.gmra.mrb[0].mxu0 %v1112
      %v1862 = vpop.f32.mrb[0].mxu0
      %v1863 = vadd.f32 0.0, %v1862
      %v1864 = vpop.f32.mrb[0].mxu0
      %v1865 = vpop.f32.mrb[0].mxu0
      %v1866 = vadd.f32 0.0, %v1865
      %v1867 = vpop.f32.mrb[0].mxu0
      %1868 = vmatprep.mubr.bf16.mxu0 0
      %1869 = vmatmul.mubr.bf16.gmra.mrb[0].mxu0 %v1711
      %v1870 = vpop.f32.mrb[0].mxu0
      %v1871 = vadd.f32 0.0, %v1870
      %v1872 = vpop.f32.mrb[0].mxu0
      %v1873 = vpop.f32.mrb[0].mxu0
      %v1874 = vadd.f32 0.0, %v1873
      %v1875 = vpop.f32.mrb[0].mxu0
      %1876 = vdwg.mxu0
      %v1877 = vadd.f32 %v1671, %v1751
      %v1878 = vadd.f32 %v1672, %v1754
      %v1879 = vadd.f32 %v1673, %v1759
      %v1880 = vadd.f32 %v1674, %v1762
      %v1881 = vadd.f32 %v1675, %v1767
      %v1882 = vadd.f32 %v1676, %v1770
      %v1883 = vadd.f32 %v1677, %v1775
      %v1884 = vadd.f32 %v1678, %v1778
      %v1885 = vadd.f32 %v1679, %v1783
      %v1886 = vadd.f32 %v1680, %v1786
      %v1887 = vadd.f32 %v1681, %v1791
      %v1888 = vadd.f32 %v1682, %v1794
      %v1889 = vadd.f32 %v1683, %v1799
      %v1890 = vadd.f32 %v1684, %v1802
      %v1891 = vadd.f32 %v1685, %v1807
      %v1892 = vadd.f32 %v1686, %v1810
      %v1893 = vadd.f32 %v1687, %v1815
      %v1894 = vadd.f32 %v1688, %v1818
      %v1895 = vadd.f32 %v1689, %v1823
      %v1896 = vadd.f32 %v1690, %v1826
      %v1897 = vadd.f32 %v1691, %v1831
      %v1898 = vadd.f32 %v1692, %v1834
      %v1899 = vadd.f32 %v1693, %v1839
      %v1900 = vadd.f32 %v1694, %v1842
      %v1901 = vadd.f32 %v1695, %v1847
      %v1902 = vadd.f32 %v1696, %v1850
      %v1903 = vadd.f32 %v1697, %v1855
      %v1904 = vadd.f32 %v1698, %v1858
      %v1905 = vadd.f32 %v1699, %v1863
      %v1906 = vadd.f32 %v1700, %v1866
      %v1907 = vadd.f32 %v1701, %v1871
      %v1908 = vadd.f32 %v1702, %v1874
      %v1910 = vshrl.u32 %v328, 16
      %v1912 = vrot.slane %v1910, 4
      %v1913 = vshll.u32 %v328, 16
      %v1915 = vrot.slane %v1913, 5
      %v1916 = vor.u32 %v1912, %v1915
      %v1917 = vrot.slane %v1916, 4
      %v1919 = vshll.u32 %v329, 16
      %v1921 = vrot.slane %v1919, 5
      %v1922 = vsel %vm337, %v1917, %v1921
      %v1923 = vshrl.u32 %v329, 16
      %v1925 = vrot.slane %v1923, 4
      %v1926 = vor.u32 %v1925, %v1921
      %v1927 = vrot.slane %v1926, 4
      %v1929 = vshll.u32 %v330, 16
      %v1931 = vrot.slane %v1929, 5
      %v1932 = vsel %vm337, %v1927, %v1931
      %s1965 = scalar_lea.vmem %s1, 8
      %v1966 = vld [vmem:[%s1965] sm:$0x3]
      %v1967 = vunpack.c.l.b16 %v1922
      %v1968 = vunpack.c.l.b16 %v1932
      %v1969 = vpack.c.b16 %v1968, %v1967
      %v1971 = vsel %vm772, %v1969, 0
      %v1974 = vsel %vm821, %v1966, 0
      %1976 = vmatprep.subr.bf16.mxu0 0
      %1977 = vmatpush1.bf16.msra.mxu0 %v1974
      %1978 = vmatprep.subr.bf16.mxu0 0
      %1979 = vmatpush1.bf16.msra.mxu0 0
      %1980 = vmatprep.subr.bf16.mxu0 0
      %1981 = vmatpush1.bf16.msra.mxu0 0
      %1982 = vmatprep.subr.bf16.mxu0 0
      %1983 = vmatpush1.bf16.msra.mxu0 0
      %1984 = vmatprep.subr.bf16.mxu0 0
      %1985 = vmatpush1.bf16.msra.mxu0 0
      %1986 = vmatprep.subr.bf16.mxu0 0
      %1987 = vmatpush1.bf16.msra.mxu0 0
      %1988 = vmatprep.subr.bf16.mxu0 0
      %1989 = vmatpush1.bf16.msra.mxu0 0
      %1990 = vmatprep.subr.bf16.mxu0 0
      %1991 = vmatpush1.bf16.msra.mxu0 0
      %1992 = vmatprep.subr.bf16.mxu0 0
      %1993 = vmatpush1.bf16.msra.mxu0 0
      %1994 = vmatprep.subr.bf16.mxu0 0
      %1995 = vmatpush1.bf16.msra.mxu0 0
      %1996 = vmatprep.subr.bf16.mxu0 0
      %1997 = vmatpush1.bf16.msra.mxu0 0
      %1998 = vmatprep.subr.bf16.mxu0 0
      %1999 = vmatpush1.bf16.msra.mxu0 0
      %2000 = vmatprep.subr.bf16.mxu0 0
      %2001 = vmatpush1.bf16.msra.mxu0 0
      %2002 = vmatprep.subr.bf16.mxu0 0
      %2003 = vmatpush1.bf16.msra.mxu0 0
      %2004 = vmatprep.subr.bf16.mxu0 0
      %2005 = vmatpush1.bf16.msra.mxu0 0
      %2006 = vmatprep.subr.bf16.mxu0 0
      %2007 = vmatpush1.bf16.msra.mxu0 0
      %2008 = vmatprep.mubr.bf16.mxu0 0
      %2009 = vmatmul.mubr.bf16.gmra.mrb[0].mxu0 %v777
      %v2010 = vpop.f32.mrb[0].mxu0
      %v2011 = vadd.f32 0.0, %v2010
      %v2012 = vpop.f32.mrb[0].mxu0
      %v2013 = vpop.f32.mrb[0].mxu0
      %v2014 = vadd.f32 0.0, %v2013
      %v2015 = vpop.f32.mrb[0].mxu0
      %2016 = vmatprep.mubr.bf16.mxu0 0
      %2017 = vmatmul.mubr.bf16.gmra.mrb[0].mxu0 %v780
      %v2018 = vpop.f32.mrb[0].mxu0
      %v2019 = vadd.f32 0.0, %v2018
      %v2020 = vpop.f32.mrb[0].mxu0
      %v2021 = vpop.f32.mrb[0].mxu0
      %v2022 = vadd.f32 0.0, %v2021
      %v2023 = vpop.f32.mrb[0].mxu0
      %2024 = vmatprep.mubr.bf16.mxu0 0
      %2025 = vmatmul.mubr.bf16.gmra.mrb[0].mxu0 %v783
      %v2026 = vpop.f32.mrb[0].mxu0
      %v2027 = vadd.f32 0.0, %v2026
      %v2028 = vpop.f32.mrb[0].mxu0
      %v2029 = vpop.f32.mrb[0].mxu0
      %v2030 = vadd.f32 0.0, %v2029
      %v2031 = vpop.f32.mrb[0].mxu0
      %2032 = vmatprep.mubr.bf16.mxu0 0
      %2033 = vmatmul.mubr.bf16.gmra.mrb[0].mxu0 %v786
      %v2034 = vpop.f32.mrb[0].mxu0
      %v2035 = vadd.f32 0.0, %v2034
      %v2036 = vpop.f32.mrb[0].mxu0
      %v2037 = vpop.f32.mrb[0].mxu0
      %v2038 = vadd.f32 0.0, %v2037
      %v2039 = vpop.f32.mrb[0].mxu0
      %2040 = vmatprep.mubr.bf16.mxu0 0
      %2041 = vmatmul.mubr.bf16.gmra.mrb[0].mxu0 %v789
      %v2042 = vpop.f32.mrb[0].mxu0
      %v2043 = vadd.f32 0.0, %v2042
      %v2044 = vpop.f32.mrb[0].mxu0
      %v2045 = vpop.f32.mrb[0].mxu0
      %v2046 = vadd.f32 0.0, %v2045
      %v2047 = vpop.f32.mrb[0].mxu0
      %2048 = vmatprep.mubr.bf16.mxu0 0
      %2049 = vmatmul.mubr.bf16.gmra.mrb[0].mxu0 %v792
      %v2050 = vpop.f32.mrb[0].mxu0
      %v2051 = vadd.f32 0.0, %v2050
      %v2052 = vpop.f32.mrb[0].mxu0
      %v2053 = vpop.f32.mrb[0].mxu0
      %v2054 = vadd.f32 0.0, %v2053
      %v2055 = vpop.f32.mrb[0].mxu0
      %2056 = vmatprep.mubr.bf16.mxu0 0
      %2057 = vmatmul.mubr.bf16.gmra.mrb[0].mxu0 %v795
      %v2058 = vpop.f32.mrb[0].mxu0
      %v2059 = vadd.f32 0.0, %v2058
      %v2060 = vpop.f32.mrb[0].mxu0
      %v2061 = vpop.f32.mrb[0].mxu0
      %v2062 = vadd.f32 0.0, %v2061
      %v2063 = vpop.f32.mrb[0].mxu0
      %2064 = vmatprep.mubr.bf16.mxu0 0
      %2065 = vmatmul.mubr.bf16.gmra.mrb[0].mxu0 %v798
      %v2066 = vpop.f32.mrb[0].mxu0
      %v2067 = vadd.f32 0.0, %v2066
      %v2068 = vpop.f32.mrb[0].mxu0
      %v2069 = vpop.f32.mrb[0].mxu0
      %v2070 = vadd.f32 0.0, %v2069
      %v2071 = vpop.f32.mrb[0].mxu0
      %2072 = vmatprep.mubr.bf16.mxu0 0
      %2073 = vmatmul.mubr.bf16.gmra.mrb[0].mxu0 %v801
      %v2074 = vpop.f32.mrb[0].mxu0
      %v2075 = vadd.f32 0.0, %v2074
      %v2076 = vpop.f32.mrb[0].mxu0
      %v2077 = vpop.f32.mrb[0].mxu0
      %v2078 = vadd.f32 0.0, %v2077
      %v2079 = vpop.f32.mrb[0].mxu0
      %2080 = vmatprep.mubr.bf16.mxu0 0
      %2081 = vmatmul.mubr.bf16.gmra.mrb[0].mxu0 %v804
      %v2082 = vpop.f32.mrb[0].mxu0
      %v2083 = vadd.f32 0.0, %v2082
      %v2084 = vpop.f32.mrb[0].mxu0
      %v2085 = vpop.f32.mrb[0].mxu0
      %v2086 = vadd.f32 0.0, %v2085
      %v2087 = vpop.f32.mrb[0].mxu0
      %2088 = vmatprep.mubr.bf16.mxu0 0
      %2089 = vmatmul.mubr.bf16.gmra.mrb[0].mxu0 %v807
      %v2090 = vpop.f32.mrb[0].mxu0
      %v2091 = vadd.f32 0.0, %v2090
      %v2092 = vpop.f32.mrb[0].mxu0
      %v2093 = vpop.f32.mrb[0].mxu0
      %v2094 = vadd.f32 0.0, %v2093
      %v2095 = vpop.f32.mrb[0].mxu0
      %2096 = vmatprep.mubr.bf16.mxu0 0
      %2097 = vmatmul.mubr.bf16.gmra.mrb[0].mxu0 %v810
      %v2098 = vpop.f32.mrb[0].mxu0
      %v2099 = vadd.f32 0.0, %v2098
      %v2100 = vpop.f32.mrb[0].mxu0
      %v2101 = vpop.f32.mrb[0].mxu0
      %v2102 = vadd.f32 0.0, %v2101
      %v2103 = vpop.f32.mrb[0].mxu0
      %2104 = vmatprep.mubr.bf16.mxu0 0
      %2105 = vmatmul.mubr.bf16.gmra.mrb[0].mxu0 %v813
      %v2106 = vpop.f32.mrb[0].mxu0
      %v2107 = vadd.f32 0.0, %v2106
      %v2108 = vpop.f32.mrb[0].mxu0
      %v2109 = vpop.f32.mrb[0].mxu0
      %v2110 = vadd.f32 0.0, %v2109
      %v2111 = vpop.f32.mrb[0].mxu0
      %2112 = vmatprep.mubr.bf16.mxu0 0
      %2113 = vmatmul.mubr.bf16.gmra.mrb[0].mxu0 %v816
      %v2114 = vpop.f32.mrb[0].mxu0
      %v2115 = vadd.f32 0.0, %v2114
      %v2116 = vpop.f32.mrb[0].mxu0
      %v2117 = vpop.f32.mrb[0].mxu0
      %v2118 = vadd.f32 0.0, %v2117
      %v2119 = vpop.f32.mrb[0].mxu0
      %2120 = vmatprep.mubr.bf16.mxu0 0
      %2121 = vmatmul.mubr.bf16.gmra.mrb[0].mxu0 %v819
      %v2122 = vpop.f32.mrb[0].mxu0
      %v2123 = vadd.f32 0.0, %v2122
      %v2124 = vpop.f32.mrb[0].mxu0
      %v2125 = vpop.f32.mrb[0].mxu0
      %v2126 = vadd.f32 0.0, %v2125
      %v2127 = vpop.f32.mrb[0].mxu0
      %2128 = vmatprep.mubr.bf16.mxu0 0
      %2129 = vmatmul.mubr.bf16.gmra.mrb[0].mxu0 %v1971
      %v2130 = vpop.f32.mrb[0].mxu0
      %v2131 = vadd.f32 0.0, %v2130
      %v2132 = vpop.f32.mrb[0].mxu0
      %v2133 = vpop.f32.mrb[0].mxu0
      %v2134 = vadd.f32 0.0, %v2133
      %v2135 = vpop.f32.mrb[0].mxu0
      %2136 = vdwg.mxu0
      %v2137 = vadd.f32 %v1877, %v2011
      %v2138 = vadd.f32 %v1878, %v2014
      %v2139 = vadd.f32 %v1879, %v2019
      %v2140 = vadd.f32 %v1880, %v2022
      %v2141 = vadd.f32 %v1881, %v2027
      %v2142 = vadd.f32 %v1882, %v2030
      %v2143 = vadd.f32 %v1883, %v2035
      %v2144 = vadd.f32 %v1884, %v2038
      %v2145 = vadd.f32 %v1885, %v2043
      %v2146 = vadd.f32 %v1886, %v2046
      %v2147 = vadd.f32 %v1887, %v2051
      %v2148 = vadd.f32 %v1888, %v2054
      %v2149 = vadd.f32 %v1889, %v2059
      %v2150 = vadd.f32 %v1890, %v2062
      %v2151 = vadd.f32 %v1891, %v2067
      %v2152 = vadd.f32 %v1892, %v2070
      %v2153 = vadd.f32 %v1893, %v2075
      %v2154 = vadd.f32 %v1894, %v2078
      %v2155 = vadd.f32 %v1895, %v2083
      %v2156 = vadd.f32 %v1896, %v2086
      %v2157 = vadd.f32 %v1897, %v2091
      %v2158 = vadd.f32 %v1898, %v2094
      %v2159 = vadd.f32 %v1899, %v2099
      %v2160 = vadd.f32 %v1900, %v2102
      %v2161 = vadd.f32 %v1901, %v2107
      %v2162 = vadd.f32 %v1902, %v2110
      %v2163 = vadd.f32 %v1903, %v2115
      %v2164 = vadd.f32 %v1904, %v2118
      %v2165 = vadd.f32 %v1905, %v2123
      %v2166 = vadd.f32 %v1906, %v2126
      %v2167 = vadd.f32 %v1907, %v2131
      %v2168 = vadd.f32 %v1908, %v2134
      %v2170 = vrot.slane %v328, 5
      %v2171 = vrot.slane %v2170, 4
      %v2172 = vrot.slane %v329, 5
      %v2173 = vsel %vm1296, %v2171, %v2172
      %v2174 = vrot.slane %v2172, 4
      %v2175 = vrot.slane %v330, 5
      %v2176 = vsel %vm1296, %v2174, %v2175
      %s2177 = scalar_lea.vmem %s1, 10
      %v2178 = vld [vmem:[%s2177] sm:$0x3]
      %v2179 = vunpack.c.l.b16 %v2173
      %v2180 = vunpack.c.l.b16 %v2176
      %v2181 = vpack.c.b16 %v2180, %v2179
      %v2183 = vsel %vm772, %v2181, 0
      %v2186 = vsel %vm821, %v2178, 0
      %2188 = vmatprep.subr.bf16.mxu0 0
      %2189 = vmatpush1.bf16.msra.mxu0 %v2186
      %2190 = vmatprep.subr.bf16.mxu0 0
      %2191 = vmatpush1.bf16.msra.mxu0 0
      %2192 = vmatprep.subr.bf16.mxu0 0
      %2193 = vmatpush1.bf16.msra.mxu0 0
      %2194 = vmatprep.subr.bf16.mxu0 0
      %2195 = vmatpush1.bf16.msra.mxu0 0
      %2196 = vmatprep.subr.bf16.mxu0 0
      %2197 = vmatpush1.bf16.msra.mxu0 0
      %2198 = vmatprep.subr.bf16.mxu0 0
      %2199 = vmatpush1.bf16.msra.mxu0 0
      %2200 = vmatprep.subr.bf16.mxu0 0
      %2201 = vmatpush1.bf16.msra.mxu0 0
      %2202 = vmatprep.subr.bf16.mxu0 0
      %2203 = vmatpush1.bf16.msra.mxu0 0
      %2204 = vmatprep.subr.bf16.mxu0 0
      %2205 = vmatpush1.bf16.msra.mxu0 0
      %2206 = vmatprep.subr.bf16.mxu0 0
      %2207 = vmatpush1.bf16.msra.mxu0 0
      %2208 = vmatprep.subr.bf16.mxu0 0
      %2209 = vmatpush1.bf16.msra.mxu0 0
      %2210 = vmatprep.subr.bf16.mxu0 0
      %2211 = vmatpush1.bf16.msra.mxu0 0
      %2212 = vmatprep.subr.bf16.mxu0 0
      %2213 = vmatpush1.bf16.msra.mxu0 0
      %2214 = vmatprep.subr.bf16.mxu0 0
      %2215 = vmatpush1.bf16.msra.mxu0 0
      %2216 = vmatprep.subr.bf16.mxu0 0
      %2217 = vmatpush1.bf16.msra.mxu0 0
      %2218 = vmatprep.subr.bf16.mxu0 0
      %2219 = vmatpush1.bf16.msra.mxu0 0
      %2220 = vmatprep.mubr.bf16.mxu0 0
      %2221 = vmatmul.mubr.bf16.gmra.mrb[0].mxu0 %v1463
      %v2222 = vpop.f32.mrb[0].mxu0
      %v2223 = vadd.f32 0.0, %v2222
      %v2224 = vpop.f32.mrb[0].mxu0
      %v2225 = vpop.f32.mrb[0].mxu0
      %v2226 = vadd.f32 0.0, %v2225
      %v2227 = vpop.f32.mrb[0].mxu0
      %2228 = vmatprep.mubr.bf16.mxu0 0
      %2229 = vmatmul.mubr.bf16.gmra.mrb[0].mxu0 %v1466
      %v2230 = vpop.f32.mrb[0].mxu0
      %v2231 = vadd.f32 0.0, %v2230
      %v2232 = vpop.f32.mrb[0].mxu0
      %v2233 = vpop.f32.mrb[0].mxu0
      %v2234 = vadd.f32 0.0, %v2233
      %v2235 = vpop.f32.mrb[0].mxu0
      %2236 = vmatprep.mubr.bf16.mxu0 0
      %2237 = vmatmul.mubr.bf16.gmra.mrb[0].mxu0 %v1469
      %v2238 = vpop.f32.mrb[0].mxu0
      %v2239 = vadd.f32 0.0, %v2238
      %v2240 = vpop.f32.mrb[0].mxu0
      %v2241 = vpop.f32.mrb[0].mxu0
      %v2242 = vadd.f32 0.0, %v2241
      %v2243 = vpop.f32.mrb[0].mxu0
      %2244 = vmatprep.mubr.bf16.mxu0 0
      %2245 = vmatmul.mubr.bf16.gmra.mrb[0].mxu0 %v1472
      %v2246 = vpop.f32.mrb[0].mxu0
      %v2247 = vadd.f32 0.0, %v2246
      %v2248 = vpop.f32.mrb[0].mxu0
      %v2249 = vpop.f32.mrb[0].mxu0
      %v2250 = vadd.f32 0.0, %v2249
      %v2251 = vpop.f32.mrb[0].mxu0
      %2252 = vmatprep.mubr.bf16.mxu0 0
      %2253 = vmatmul.mubr.bf16.gmra.mrb[0].mxu0 %v1475
      %v2254 = vpop.f32.mrb[0].mxu0
      %v2255 = vadd.f32 0.0, %v2254
      %v2256 = vpop.f32.mrb[0].mxu0
      %v2257 = vpop.f32.mrb[0].mxu0
      %v2258 = vadd.f32 0.0, %v2257
      %v2259 = vpop.f32.mrb[0].mxu0
      %2260 = vmatprep.mubr.bf16.mxu0 0
      %2261 = vmatmul.mubr.bf16.gmra.mrb[0].mxu0 %v1478
      %v2262 = vpop.f32.mrb[0].mxu0
      %v2263 = vadd.f32 0.0, %v2262
      %v2264 = vpop.f32.mrb[0].mxu0
      %v2265 = vpop.f32.mrb[0].mxu0
      %v2266 = vadd.f32 0.0, %v2265
      %v2267 = vpop.f32.mrb[0].mxu0
      %2268 = vmatprep.mubr.bf16.mxu0 0
      %2269 = vmatmul.mubr.bf16.gmra.mrb[0].mxu0 %v1481
      %v2270 = vpop.f32.mrb[0].mxu0
      %v2271 = vadd.f32 0.0, %v2270
      %v2272 = vpop.f32.mrb[0].mxu0
      %v2273 = vpop.f32.mrb[0].mxu0
      %v2274 = vadd.f32 0.0, %v2273
      %v2275 = vpop.f32.mrb[0].mxu0
      %2276 = vmatprep.mubr.bf16.mxu0 0
      %2277 = vmatmul.mubr.bf16.gmra.mrb[0].mxu0 %v1484
      %v2278 = vpop.f32.mrb[0].mxu0
      %v2279 = vadd.f32 0.0, %v2278
      %v2280 = vpop.f32.mrb[0].mxu0
      %v2281 = vpop.f32.mrb[0].mxu0
      %v2282 = vadd.f32 0.0, %v2281
      %v2283 = vpop.f32.mrb[0].mxu0
      %2284 = vmatprep.mubr.bf16.mxu0 0
      %2285 = vmatmul.mubr.bf16.gmra.mrb[0].mxu0 %v1487
      %v2286 = vpop.f32.mrb[0].mxu0
      %v2287 = vadd.f32 0.0, %v2286
      %v2288 = vpop.f32.mrb[0].mxu0
      %v2289 = vpop.f32.mrb[0].mxu0
      %v2290 = vadd.f32 0.0, %v2289
      %v2291 = vpop.f32.mrb[0].mxu0
      %2292 = vmatprep.mubr.bf16.mxu0 0
      %2293 = vmatmul.mubr.bf16.gmra.mrb[0].mxu0 %v1490
      %v2294 = vpop.f32.mrb[0].mxu0
      %v2295 = vadd.f32 0.0, %v2294
      %v2296 = vpop.f32.mrb[0].mxu0
      %v2297 = vpop.f32.mrb[0].mxu0
      %v2298 = vadd.f32 0.0, %v2297
      %v2299 = vpop.f32.mrb[0].mxu0
      %2300 = vmatprep.mubr.bf16.mxu0 0
      %2301 = vmatmul.mubr.bf16.gmra.mrb[0].mxu0 %v1493
      %v2302 = vpop.f32.mrb[0].mxu0
      %v2303 = vadd.f32 0.0, %v2302
      %v2304 = vpop.f32.mrb[0].mxu0
      %v2305 = vpop.f32.mrb[0].mxu0
      %v2306 = vadd.f32 0.0, %v2305
      %v2307 = vpop.f32.mrb[0].mxu0
      %2308 = vmatprep.mubr.bf16.mxu0 0
      %2309 = vmatmul.mubr.bf16.gmra.mrb[0].mxu0 %v1496
      %v2310 = vpop.f32.mrb[0].mxu0
      %v2311 = vadd.f32 0.0, %v2310
      %v2312 = vpop.f32.mrb[0].mxu0
      %v2313 = vpop.f32.mrb[0].mxu0
      %v2314 = vadd.f32 0.0, %v2313
      %v2315 = vpop.f32.mrb[0].mxu0
      %2316 = vmatprep.mubr.bf16.mxu0 0
      %2317 = vmatmul.mubr.bf16.gmra.mrb[0].mxu0 %v1499
      %v2318 = vpop.f32.mrb[0].mxu0
      %v2319 = vadd.f32 0.0, %v2318
      %v2320 = vpop.f32.mrb[0].mxu0
      %v2321 = vpop.f32.mrb[0].mxu0
      %v2322 = vadd.f32 0.0, %v2321
      %v2323 = vpop.f32.mrb[0].mxu0
      %2324 = vmatprep.mubr.bf16.mxu0 0
      %2325 = vmatmul.mubr.bf16.gmra.mrb[0].mxu0 %v1502
      %v2326 = vpop.f32.mrb[0].mxu0
      %v2327 = vadd.f32 0.0, %v2326
      %v2328 = vpop.f32.mrb[0].mxu0
      %v2329 = vpop.f32.mrb[0].mxu0
      %v2330 = vadd.f32 0.0, %v2329
      %v2331 = vpop.f32.mrb[0].mxu0
      %2332 = vmatprep.mubr.bf16.mxu0 0
      %2333 = vmatmul.mubr.bf16.gmra.mrb[0].mxu0 %v1505
      %v2334 = vpop.f32.mrb[0].mxu0
      %v2335 = vadd.f32 0.0, %v2334
      %v2336 = vpop.f32.mrb[0].mxu0
      %v2337 = vpop.f32.mrb[0].mxu0
      %v2338 = vadd.f32 0.0, %v2337
      %v2339 = vpop.f32.mrb[0].mxu0
      %2340 = vmatprep.mubr.bf16.mxu0 0
      %2341 = vmatmul.mubr.bf16.gmra.mrb[0].mxu0 %v2183
      %v2342 = vpop.f32.mrb[0].mxu0
      %v2343 = vadd.f32 0.0, %v2342
      %v2344 = vpop.f32.mrb[0].mxu0
      %v2345 = vpop.f32.mrb[0].mxu0
      %v2346 = vadd.f32 0.0, %v2345
      %v2347 = vpop.f32.mrb[0].mxu0
      %2348 = vdwg.mxu0
      %v2349 = vadd.f32 %v2137, %v2223
      %v2350 = vadd.f32 %v2138, %v2226
      %v2351 = vadd.f32 %v2139, %v2231
      %v2352 = vadd.f32 %v2140, %v2234
      %v2353 = vadd.f32 %v2141, %v2239
      %v2354 = vadd.f32 %v2142, %v2242
      %v2355 = vadd.f32 %v2143, %v2247
      %v2356 = vadd.f32 %v2144, %v2250
      %v2357 = vadd.f32 %v2145, %v2255
      %v2358 = vadd.f32 %v2146, %v2258
      %v2359 = vadd.f32 %v2147, %v2263
      %v2360 = vadd.f32 %v2148, %v2266
      %v2361 = vadd.f32 %v2149, %v2271
      %v2362 = vadd.f32 %v2150, %v2274
      %v2363 = vadd.f32 %v2151, %v2279
      %v2364 = vadd.f32 %v2152, %v2282
      %v2365 = vadd.f32 %v2153, %v2287
      %v2366 = vadd.f32 %v2154, %v2290
      %v2367 = vadd.f32 %v2155, %v2295
      %v2368 = vadd.f32 %v2156, %v2298
      %v2369 = vadd.f32 %v2157, %v2303
      %v2370 = vadd.f32 %v2158, %v2306
      %v2371 = vadd.f32 %v2159, %v2311
      %v2372 = vadd.f32 %v2160, %v2314
      %v2373 = vadd.f32 %v2161, %v2319
      %v2374 = vadd.f32 %v2162, %v2322
      %v2375 = vadd.f32 %v2163, %v2327
      %v2376 = vadd.f32 %v2164, %v2330
      %v2377 = vadd.f32 %v2165, %v2335
      %v2378 = vadd.f32 %v2166, %v2338
      %v2379 = vadd.f32 %v2167, %v2343
      %v2380 = vadd.f32 %v2168, %v2346
      %s2381 = scalar_lea.vmem %s1, 12
      %v2382 = vld [vmem:[%s2381] sm:$0x3]
      %v2385 = vunpack.c.l.b16 %v331
      %v2386 = vunpack.c.l.b16 %v332
      %v2387 = vpack.c.b16 %v2386, %v2385
      %v2389 = vsel %vm772, %v2387, 0
      %v2392 = vsel %vm821, %v2382, 0
      %2394 = vmatprep.subr.bf16.mxu0 0
      %2395 = vmatpush1.bf16.msra.mxu0 %v2392
      %2396 = vmatprep.subr.bf16.mxu0 0
      %2397 = vmatpush1.bf16.msra.mxu0 0
      %2398 = vmatprep.subr.bf16.mxu0 0
      %2399 = vmatpush1.bf16.msra.mxu0 0
      %2400 = vmatprep.subr.bf16.mxu0 0
      %2401 = vmatpush1.bf16.msra.mxu0 0
      %2402 = vmatprep.subr.bf16.mxu0 0
      %2403 = vmatpush1.bf16.msra.mxu0 0
      %2404 = vmatprep.subr.bf16.mxu0 0
      %2405 = vmatpush1.bf16.msra.mxu0 0
      %2406 = vmatprep.subr.bf16.mxu0 0
      %2407 = vmatpush1.bf16.msra.mxu0 0
      %2408 = vmatprep.subr.bf16.mxu0 0
      %2409 = vmatpush1.bf16.msra.mxu0 0
      %2410 = vmatprep.subr.bf16.mxu0 0
      %2411 = vmatpush1.bf16.msra.mxu0 0
      %2412 = vmatprep.subr.bf16.mxu0 0
      %2413 = vmatpush1.bf16.msra.mxu0 0
      %2414 = vmatprep.subr.bf16.mxu0 0
      %2415 = vmatpush1.bf16.msra.mxu0 0
      %2416 = vmatprep.subr.bf16.mxu0 0
      %2417 = vmatpush1.bf16.msra.mxu0 0
      %2418 = vmatprep.subr.bf16.mxu0 0
      %2419 = vmatpush1.bf16.msra.mxu0 0
      %2420 = vmatprep.subr.bf16.mxu0 0
      %2421 = vmatpush1.bf16.msra.mxu0 0
      %2422 = vmatprep.subr.bf16.mxu0 0
      %2423 = vmatpush1.bf16.msra.mxu0 0
      %2424 = vmatprep.subr.bf16.mxu0 0
      %2425 = vmatpush1.bf16.msra.mxu0 0
      %2426 = vmatprep.mubr.bf16.mxu0 0
      %2427 = vmatmul.mubr.bf16.gmra.mrb[0].mxu0 %v1073
      %v2428 = vpop.f32.mrb[0].mxu0
      %v2429 = vadd.f32 0.0, %v2428
      %v2430 = vpop.f32.mrb[0].mxu0
      %v2431 = vpop.f32.mrb[0].mxu0
      %v2432 = vadd.f32 0.0, %v2431
      %v2433 = vpop.f32.mrb[0].mxu0
      %2434 = vmatprep.mubr.bf16.mxu0 0
      %2435 = vmatmul.mubr.bf16.gmra.mrb[0].mxu0 %v1076
      %v2436 = vpop.f32.mrb[0].mxu0
      %v2437 = vadd.f32 0.0, %v2436
      %v2438 = vpop.f32.mrb[0].mxu0
      %v2439 = vpop.f32.mrb[0].mxu0
      %v2440 = vadd.f32 0.0, %v2439
      %v2441 = vpop.f32.mrb[0].mxu0
      %2442 = vmatprep.mubr.bf16.mxu0 0
      %2443 = vmatmul.mubr.bf16.gmra.mrb[0].mxu0 %v1079
      %v2444 = vpop.f32.mrb[0].mxu0
      %v2445 = vadd.f32 0.0, %v2444
      %v2446 = vpop.f32.mrb[0].mxu0
      %v2447 = vpop.f32.mrb[0].mxu0
      %v2448 = vadd.f32 0.0, %v2447
      %v2449 = vpop.f32.mrb[0].mxu0
      %2450 = vmatprep.mubr.bf16.mxu0 0
      %2451 = vmatmul.mubr.bf16.gmra.mrb[0].mxu0 %v1082
      %v2452 = vpop.f32.mrb[0].mxu0
      %v2453 = vadd.f32 0.0, %v2452
      %v2454 = vpop.f32.mrb[0].mxu0
      %v2455 = vpop.f32.mrb[0].mxu0
      %v2456 = vadd.f32 0.0, %v2455
      %v2457 = vpop.f32.mrb[0].mxu0
      %2458 = vmatprep.mubr.bf16.mxu0 0
      %2459 = vmatmul.mubr.bf16.gmra.mrb[0].mxu0 %v1085
      %v2460 = vpop.f32.mrb[0].mxu0
      %v2461 = vadd.f32 0.0, %v2460
      %v2462 = vpop.f32.mrb[0].mxu0
      %v2463 = vpop.f32.mrb[0].mxu0
      %v2464 = vadd.f32 0.0, %v2463
      %v2465 = vpop.f32.mrb[0].mxu0
      %2466 = vmatprep.mubr.bf16.mxu0 0
      %2467 = vmatmul.mubr.bf16.gmra.mrb[0].mxu0 %v1088
      %v2468 = vpop.f32.mrb[0].mxu0
      %v2469 = vadd.f32 0.0, %v2468
      %v2470 = vpop.f32.mrb[0].mxu0
      %v2471 = vpop.f32.mrb[0].mxu0
      %v2472 = vadd.f32 0.0, %v2471
      %v2473 = vpop.f32.mrb[0].mxu0
      %2474 = vmatprep.mubr.bf16.mxu0 0
      %2475 = vmatmul.mubr.bf16.gmra.mrb[0].mxu0 %v1091
      %v2476 = vpop.f32.mrb[0].mxu0
      %v2477 = vadd.f32 0.0, %v2476
      %v2478 = vpop.f32.mrb[0].mxu0
      %v2479 = vpop.f32.mrb[0].mxu0
      %v2480 = vadd.f32 0.0, %v2479
      %v2481 = vpop.f32.mrb[0].mxu0
      %2482 = vmatprep.mubr.bf16.mxu0 0
      %2483 = vmatmul.mubr.bf16.gmra.mrb[0].mxu0 %v1094
      %v2484 = vpop.f32.mrb[0].mxu0
      %v2485 = vadd.f32 0.0, %v2484
      %v2486 = vpop.f32.mrb[0].mxu0
      %v2487 = vpop.f32.mrb[0].mxu0
      %v2488 = vadd.f32 0.0, %v2487
      %v2489 = vpop.f32.mrb[0].mxu0
      %2490 = vmatprep.mubr.bf16.mxu0 0
      %2491 = vmatmul.mubr.bf16.gmra.mrb[0].mxu0 %v1097
      %v2492 = vpop.f32.mrb[0].mxu0
      %v2493 = vadd.f32 0.0, %v2492
      %v2494 = vpop.f32.mrb[0].mxu0
      %v2495 = vpop.f32.mrb[0].mxu0
      %v2496 = vadd.f32 0.0, %v2495
      %v2497 = vpop.f32.mrb[0].mxu0
      %2498 = vmatprep.mubr.bf16.mxu0 0
      %2499 = vmatmul.mubr.bf16.gmra.mrb[0].mxu0 %v1100
      %v2500 = vpop.f32.mrb[0].mxu0
      %v2501 = vadd.f32 0.0, %v2500
      %v2502 = vpop.f32.mrb[0].mxu0
      %v2503 = vpop.f32.mrb[0].mxu0
      %v2504 = vadd.f32 0.0, %v2503
      %v2505 = vpop.f32.mrb[0].mxu0
      %2506 = vmatprep.mubr.bf16.mxu0 0
      %2507 = vmatmul.mubr.bf16.gmra.mrb[0].mxu0 %v1103
      %v2508 = vpop.f32.mrb[0].mxu0
      %v2509 = vadd.f32 0.0, %v2508
      %v2510 = vpop.f32.mrb[0].mxu0
      %v2511 = vpop.f32.mrb[0].mxu0
      %v2512 = vadd.f32 0.0, %v2511
      %v2513 = vpop.f32.mrb[0].mxu0
      %2514 = vmatprep.mubr.bf16.mxu0 0
      %2515 = vmatmul.mubr.bf16.gmra.mrb[0].mxu0 %v1106
      %v2516 = vpop.f32.mrb[0].mxu0
      %v2517 = vadd.f32 0.0, %v2516
      %v2518 = vpop.f32.mrb[0].mxu0
      %v2519 = vpop.f32.mrb[0].mxu0
      %v2520 = vadd.f32 0.0, %v2519
      %v2521 = vpop.f32.mrb[0].mxu0
      %2522 = vmatprep.mubr.bf16.mxu0 0
      %2523 = vmatmul.mubr.bf16.gmra.mrb[0].mxu0 %v1109
      %v2524 = vpop.f32.mrb[0].mxu0
      %v2525 = vadd.f32 0.0, %v2524
      %v2526 = vpop.f32.mrb[0].mxu0
      %v2527 = vpop.f32.mrb[0].mxu0
      %v2528 = vadd.f32 0.0, %v2527
      %v2529 = vpop.f32.mrb[0].mxu0
      %2530 = vmatprep.mubr.bf16.mxu0 0
      %2531 = vmatmul.mubr.bf16.gmra.mrb[0].mxu0 %v1112
      %v2532 = vpop.f32.mrb[0].mxu0
      %v2533 = vadd.f32 0.0, %v2532
      %v2534 = vpop.f32.mrb[0].mxu0
      %v2535 = vpop.f32.mrb[0].mxu0
      %v2536 = vadd.f32 0.0, %v2535
      %v2537 = vpop.f32.mrb[0].mxu0
      %2538 = vmatprep.mubr.bf16.mxu0 0
      %2539 = vmatmul.mubr.bf16.gmra.mrb[0].mxu0 %v1711
      %v2540 = vpop.f32.mrb[0].mxu0
      %v2541 = vadd.f32 0.0, %v2540
      %v2542 = vpop.f32.mrb[0].mxu0
      %v2543 = vpop.f32.mrb[0].mxu0
      %v2544 = vadd.f32 0.0, %v2543
      %v2545 = vpop.f32.mrb[0].mxu0
      %2546 = vmatprep.mubr.bf16.mxu0 0
      %2547 = vmatmul.mubr.bf16.gmra.mrb[0].mxu0 %v2389
      %v2548 = vpop.f32.mrb[0].mxu0
      %v2549 = vadd.f32 0.0, %v2548
      %v2550 = vpop.f32.mrb[0].mxu0
      %v2551 = vpop.f32.mrb[0].mxu0
      %v2552 = vadd.f32 0.0, %v2551
      %v2553 = vpop.f32.mrb[0].mxu0
      %2554 = vdwg.mxu0
      %v2555 = vadd.f32 %v2349, %v2429
      %v2556 = vadd.f32 %v2350, %v2432
      %v2557 = vadd.f32 %v2351, %v2437
      %v2558 = vadd.f32 %v2352, %v2440
      %v2559 = vadd.f32 %v2353, %v2445
      %v2560 = vadd.f32 %v2354, %v2448
      %v2561 = vadd.f32 %v2355, %v2453
      %v2562 = vadd.f32 %v2356, %v2456
      %v2563 = vadd.f32 %v2357, %v2461
      %v2564 = vadd.f32 %v2358, %v2464
      %v2565 = vadd.f32 %v2359, %v2469
      %v2566 = vadd.f32 %v2360, %v2472
      %v2567 = vadd.f32 %v2361, %v2477
      %v2568 = vadd.f32 %v2362, %v2480
      %v2569 = vadd.f32 %v2363, %v2485
      %v2570 = vadd.f32 %v2364, %v2488
      %v2571 = vadd.f32 %v2365, %v2493
      %v2572 = vadd.f32 %v2366, %v2496
      %v2573 = vadd.f32 %v2367, %v2501
      %v2574 = vadd.f32 %v2368, %v2504
      %v2575 = vadd.f32 %v2369, %v2509
      %v2576 = vadd.f32 %v2370, %v2512
      %v2577 = vadd.f32 %v2371, %v2517
      %v2578 = vadd.f32 %v2372, %v2520
      %v2579 = vadd.f32 %v2373, %v2525
      %v2580 = vadd.f32 %v2374, %v2528
      %v2581 = vadd.f32 %v2375, %v2533
      %v2582 = vadd.f32 %v2376, %v2536
      %v2583 = vadd.f32 %v2377, %v2541
      %v2584 = vadd.f32 %v2378, %v2544
      %v2585 = vadd.f32 %v2379, %v2549
      %v2586 = vadd.f32 %v2380, %v2552
      %v2588 = vshrl.u32 %v331, 16
      %v2590 = vrot.slane %v2588, 4
      %v2591 = vshll.u32 %v331, 16
      %v2593 = vrot.slane %v2591, 5
      %v2594 = vor.u32 %v2590, %v2593
      %v2595 = vrot.slane %v2594, 4
      %v2597 = vshll.u32 %v332, 16
      %v2599 = vrot.slane %v2597, 5
      %v2600 = vsel %vm337, %v2595, %v2599
      %v2601 = vshrl.u32 %v332, 16
      %v2603 = vrot.slane %v2601, 4
      %v2604 = vor.u32 %v2603, %v2599
      %v2605 = vrot.slane %v2604, 4
      %v2607 = vshll.u32 %v333, 16
      %v2609 = vrot.slane %v2607, 5
      %v2610 = vsel %vm337, %v2605, %v2609
      %s2611 = scalar_lea.vmem %s1, 14
      %v2612 = vld [vmem:[%s2611] sm:$0x3]
      %v2613 = vunpack.c.l.b16 %v2600
      %v2614 = vunpack.c.l.b16 %v2610
      %v2615 = vpack.c.b16 %v2614, %v2613
      %v2617 = vsel %vm772, %v2615, 0
      %v2620 = vsel %vm821, %v2612, 0
      %2622 = vmatprep.subr.bf16.mxu0 0
      %2623 = vmatpush1.bf16.msra.mxu0 %v2620
      %2624 = vmatprep.subr.bf16.mxu0 0
      %2625 = vmatpush1.bf16.msra.mxu0 0
      %2626 = vmatprep.subr.bf16.mxu0 0
      %2627 = vmatpush1.bf16.msra.mxu0 0
      %2628 = vmatprep.subr.bf16.mxu0 0
      %2629 = vmatpush1.bf16.msra.mxu0 0
      %2630 = vmatprep.subr.bf16.mxu0 0
      %2631 = vmatpush1.bf16.msra.mxu0 0
      %2632 = vmatprep.subr.bf16.mxu0 0
      %2633 = vmatpush1.bf16.msra.mxu0 0
      %2634 = vmatprep.subr.bf16.mxu0 0
      %2635 = vmatpush1.bf16.msra.mxu0 0
      %2636 = vmatprep.subr.bf16.mxu0 0
      %2637 = vmatpush1.bf16.msra.mxu0 0
      %2638 = vmatprep.subr.bf16.mxu0 0
      %2639 = vmatpush1.bf16.msra.mxu0 0
      %2640 = vmatprep.subr.bf16.mxu0 0
      %2641 = vmatpush1.bf16.msra.mxu0 0
      %2642 = vmatprep.subr.bf16.mxu0 0
      %2643 = vmatpush1.bf16.msra.mxu0 0
      %2644 = vmatprep.subr.bf16.mxu0 0
      %2645 = vmatpush1.bf16.msra.mxu0 0
      %2646 = vmatprep.subr.bf16.mxu0 0
      %2647 = vmatpush1.bf16.msra.mxu0 0
      %2648 = vmatprep.subr.bf16.mxu0 0
      %2649 = vmatpush1.bf16.msra.mxu0 0
      %2650 = vmatprep.subr.bf16.mxu0 0
      %2651 = vmatpush1.bf16.msra.mxu0 0
      %2652 = vmatprep.subr.bf16.mxu0 0
      %2653 = vmatpush1.bf16.msra.mxu0 0
      %2654 = vmatprep.mubr.bf16.mxu0 0
      %2655 = vmatmul.mubr.bf16.gmra.mrb[0].mxu0 %v780
      %v2656 = vpop.f32.mrb[0].mxu0
      %v2657 = vadd.f32 0.0, %v2656
      %v2658 = vpop.f32.mrb[0].mxu0
      %v2659 = vpop.f32.mrb[0].mxu0
      %v2660 = vadd.f32 0.0, %v2659
      %v2661 = vpop.f32.mrb[0].mxu0
      %2662 = vmatprep.mubr.bf16.mxu0 0
      %2663 = vmatmul.mubr.bf16.gmra.mrb[0].mxu0 %v783
      %v2664 = vpop.f32.mrb[0].mxu0
      %v2665 = vadd.f32 0.0, %v2664
      %v2666 = vpop.f32.mrb[0].mxu0
      %v2667 = vpop.f32.mrb[0].mxu0
      %v2668 = vadd.f32 0.0, %v2667
      %v2669 = vpop.f32.mrb[0].mxu0
      %2670 = vmatprep.mubr.bf16.mxu0 0
      %2671 = vmatmul.mubr.bf16.gmra.mrb[0].mxu0 %v786
      %v2672 = vpop.f32.mrb[0].mxu0
      %v2673 = vadd.f32 0.0, %v2672
      %v2674 = vpop.f32.mrb[0].mxu0
      %v2675 = vpop.f32.mrb[0].mxu0
      %v2676 = vadd.f32 0.0, %v2675
      %v2677 = vpop.f32.mrb[0].mxu0
      %2678 = vmatprep.mubr.bf16.mxu0 0
      %2679 = vmatmul.mubr.bf16.gmra.mrb[0].mxu0 %v789
      %v2680 = vpop.f32.mrb[0].mxu0
      %v2681 = vadd.f32 0.0, %v2680
      %v2682 = vpop.f32.mrb[0].mxu0
      %v2683 = vpop.f32.mrb[0].mxu0
      %v2684 = vadd.f32 0.0, %v2683
      %v2685 = vpop.f32.mrb[0].mxu0
      %2686 = vmatprep.mubr.bf16.mxu0 0
      %2687 = vmatmul.mubr.bf16.gmra.mrb[0].mxu0 %v792
      %v2688 = vpop.f32.mrb[0].mxu0
      %v2689 = vadd.f32 0.0, %v2688
      %v2690 = vpop.f32.mrb[0].mxu0
      %v2691 = vpop.f32.mrb[0].mxu0
      %v2692 = vadd.f32 0.0, %v2691
      %v2693 = vpop.f32.mrb[0].mxu0
      %2694 = vmatprep.mubr.bf16.mxu0 0
      %2695 = vmatmul.mubr.bf16.gmra.mrb[0].mxu0 %v795
      %v2696 = vpop.f32.mrb[0].mxu0
      %v2697 = vadd.f32 0.0, %v2696
      %v2698 = vpop.f32.mrb[0].mxu0
      %v2699 = vpop.f32.mrb[0].mxu0
      %v2700 = vadd.f32 0.0, %v2699
      %v2701 = vpop.f32.mrb[0].mxu0
      %2702 = vmatprep.mubr.bf16.mxu0 0
      %2703 = vmatmul.mubr.bf16.gmra.mrb[0].mxu0 %v798
      %v2704 = vpop.f32.mrb[0].mxu0
      %v2705 = vadd.f32 0.0, %v2704
      %v2706 = vpop.f32.mrb[0].mxu0
      %v2707 = vpop.f32.mrb[0].mxu0
      %v2708 = vadd.f32 0.0, %v2707
      %v2709 = vpop.f32.mrb[0].mxu0
      %2710 = vmatprep.mubr.bf16.mxu0 0
      %2711 = vmatmul.mubr.bf16.gmra.mrb[0].mxu0 %v801
      %v2712 = vpop.f32.mrb[0].mxu0
      %v2713 = vadd.f32 0.0, %v2712
      %v2714 = vpop.f32.mrb[0].mxu0
      %v2715 = vpop.f32.mrb[0].mxu0
      %v2716 = vadd.f32 0.0, %v2715
      %v2717 = vpop.f32.mrb[0].mxu0
      %2718 = vmatprep.mubr.bf16.mxu0 0
      %2719 = vmatmul.mubr.bf16.gmra.mrb[0].mxu0 %v804
      %v2720 = vpop.f32.mrb[0].mxu0
      %v2721 = vadd.f32 0.0, %v2720
      %v2722 = vpop.f32.mrb[0].mxu0
      %v2723 = vpop.f32.mrb[0].mxu0
      %v2724 = vadd.f32 0.0, %v2723
      %v2725 = vpop.f32.mrb[0].mxu0
      %2726 = vmatprep.mubr.bf16.mxu0 0
      %2727 = vmatmul.mubr.bf16.gmra.mrb[0].mxu0 %v807
      %v2728 = vpop.f32.mrb[0].mxu0
      %v2729 = vadd.f32 0.0, %v2728
      %v2730 = vpop.f32.mrb[0].mxu0
      %v2731 = vpop.f32.mrb[0].mxu0
      %v2732 = vadd.f32 0.0, %v2731
      %v2733 = vpop.f32.mrb[0].mxu0
      %2734 = vmatprep.mubr.bf16.mxu0 0
      %2735 = vmatmul.mubr.bf16.gmra.mrb[0].mxu0 %v810
      %v2736 = vpop.f32.mrb[0].mxu0
      %v2737 = vadd.f32 0.0, %v2736
      %v2738 = vpop.f32.mrb[0].mxu0
      %v2739 = vpop.f32.mrb[0].mxu0
      %v2740 = vadd.f32 0.0, %v2739
      %v2741 = vpop.f32.mrb[0].mxu0
      %2742 = vmatprep.mubr.bf16.mxu0 0
      %2743 = vmatmul.mubr.bf16.gmra.mrb[0].mxu0 %v813
      %v2744 = vpop.f32.mrb[0].mxu0
      %v2745 = vadd.f32 0.0, %v2744
      %v2746 = vpop.f32.mrb[0].mxu0
      %v2747 = vpop.f32.mrb[0].mxu0
      %v2748 = vadd.f32 0.0, %v2747
      %v2749 = vpop.f32.mrb[0].mxu0
      %2750 = vmatprep.mubr.bf16.mxu0 0
      %2751 = vmatmul.mubr.bf16.gmra.mrb[0].mxu0 %v816
      %v2752 = vpop.f32.mrb[0].mxu0
      %v2753 = vadd.f32 0.0, %v2752
      %v2754 = vpop.f32.mrb[0].mxu0
      %v2755 = vpop.f32.mrb[0].mxu0
      %v2756 = vadd.f32 0.0, %v2755
      %v2757 = vpop.f32.mrb[0].mxu0
      %2758 = vmatprep.mubr.bf16.mxu0 0
      %2759 = vmatmul.mubr.bf16.gmra.mrb[0].mxu0 %v819
      %v2760 = vpop.f32.mrb[0].mxu0
      %v2761 = vadd.f32 0.0, %v2760
      %v2762 = vpop.f32.mrb[0].mxu0
      %v2763 = vpop.f32.mrb[0].mxu0
      %v2764 = vadd.f32 0.0, %v2763
      %v2765 = vpop.f32.mrb[0].mxu0
      %2766 = vmatprep.mubr.bf16.mxu0 0
      %2767 = vmatmul.mubr.bf16.gmra.mrb[0].mxu0 %v1971
      %v2768 = vpop.f32.mrb[0].mxu0
      %v2769 = vadd.f32 0.0, %v2768
      %v2770 = vpop.f32.mrb[0].mxu0
      %v2771 = vpop.f32.mrb[0].mxu0
      %v2772 = vadd.f32 0.0, %v2771
      %v2773 = vpop.f32.mrb[0].mxu0
      %2774 = vmatprep.mubr.bf16.mxu0 0
      %2775 = vmatmul.mubr.bf16.gmra.mrb[0].mxu0 %v2617
      %v2776 = vpop.f32.mrb[0].mxu0
      %v2777 = vadd.f32 0.0, %v2776
      %v2778 = vpop.f32.mrb[0].mxu0
      %v2779 = vpop.f32.mrb[0].mxu0
      %v2780 = vadd.f32 0.0, %v2779
      %v2781 = vpop.f32.mrb[0].mxu0
      %2782 = vdwg.mxu0
      %v2783 = vadd.f32 %v2555, %v2657
      %v2784 = vadd.f32 %v2556, %v2660
      %v2785 = vadd.f32 %v2557, %v2665
      %v2786 = vadd.f32 %v2558, %v2668
      %v2787 = vadd.f32 %v2559, %v2673
      %v2788 = vadd.f32 %v2560, %v2676
      %v2789 = vadd.f32 %v2561, %v2681
      %v2790 = vadd.f32 %v2562, %v2684
      %v2791 = vadd.f32 %v2563, %v2689
      %v2792 = vadd.f32 %v2564, %v2692
      %v2793 = vadd.f32 %v2565, %v2697
      %v2794 = vadd.f32 %v2566, %v2700
      %v2795 = vadd.f32 %v2567, %v2705
      %v2796 = vadd.f32 %v2568, %v2708
      %v2797 = vadd.f32 %v2569, %v2713
      %v2798 = vadd.f32 %v2570, %v2716
      %v2799 = vadd.f32 %v2571, %v2721
      %v2800 = vadd.f32 %v2572, %v2724
      %v2801 = vadd.f32 %v2573, %v2729
      %v2802 = vadd.f32 %v2574, %v2732
      %v2803 = vadd.f32 %v2575, %v2737
      %v2804 = vadd.f32 %v2576, %v2740
      %v2805 = vadd.f32 %v2577, %v2745
      %v2806 = vadd.f32 %v2578, %v2748
      %v2807 = vadd.f32 %v2579, %v2753
      %v2808 = vadd.f32 %v2580, %v2756
      %v2809 = vadd.f32 %v2581, %v2761
      %v2810 = vadd.f32 %v2582, %v2764
      %v2811 = vadd.f32 %v2583, %v2769
      %v2812 = vadd.f32 %v2584, %v2772
      %v2813 = vadd.f32 %v2585, %v2777
      %v2814 = vadd.f32 %v2586, %v2780
      %v2816 = vrot.slane %v331, 5
      %v2817 = vrot.slane %v2816, 4
      %v2818 = vrot.slane %v332, 5
      %v2819 = vsel %vm1296, %v2817, %v2818
      %v2820 = vrot.slane %v2818, 4
      %v2821 = vrot.slane %v333, 5
      %v2822 = vsel %vm1296, %v2820, %v2821
      %s2823 = scalar_lea.vmem %s1, 16
      %v2824 = vld [vmem:[%s2823] sm:$0x3]
      %v2825 = vunpack.c.l.b16 %v2819
      %v2826 = vunpack.c.l.b16 %v2822
      %v2827 = vpack.c.b16 %v2826, %v2825
      %v2829 = vsel %vm772, %v2827, 0
      %v2832 = vsel %vm821, %v2824, 0
      %2834 = vmatprep.subr.bf16.mxu0 0
      %2835 = vmatpush1.bf16.msra.mxu0 %v2832
      %2836 = vmatprep.subr.bf16.mxu0 0
      %2837 = vmatpush1.bf16.msra.mxu0 0
      %2838 = vmatprep.subr.bf16.mxu0 0
      %2839 = vmatpush1.bf16.msra.mxu0 0
      %2840 = vmatprep.subr.bf16.mxu0 0
      %2841 = vmatpush1.bf16.msra.mxu0 0
      %2842 = vmatprep.subr.bf16.mxu0 0
      %2843 = vmatpush1.bf16.msra.mxu0 0
      %2844 = vmatprep.subr.bf16.mxu0 0
      %2845 = vmatpush1.bf16.msra.mxu0 0
      %2846 = vmatprep.subr.bf16.mxu0 0
      %2847 = vmatpush1.bf16.msra.mxu0 0
      %2848 = vmatprep.subr.bf16.mxu0 0
      %2849 = vmatpush1.bf16.msra.mxu0 0
      %2850 = vmatprep.subr.bf16.mxu0 0
      %2851 = vmatpush1.bf16.msra.mxu0 0
      %2852 = vmatprep.subr.bf16.mxu0 0
      %2853 = vmatpush1.bf16.msra.mxu0 0
      %2854 = vmatprep.subr.bf16.mxu0 0
      %2855 = vmatpush1.bf16.msra.mxu0 0
      %2856 = vmatprep.subr.bf16.mxu0 0
      %2857 = vmatpush1.bf16.msra.mxu0 0
      %2858 = vmatprep.subr.bf16.mxu0 0
      %2859 = vmatpush1.bf16.msra.mxu0 0
      %2860 = vmatprep.subr.bf16.mxu0 0
      %2861 = vmatpush1.bf16.msra.mxu0 0
      %2862 = vmatprep.subr.bf16.mxu0 0
      %2863 = vmatpush1.bf16.msra.mxu0 0
      %2864 = vmatprep.subr.bf16.mxu0 0
      %2865 = vmatpush1.bf16.msra.mxu0 0
      %2866 = vmatprep.mubr.bf16.mxu0 0
      %2867 = vmatmul.mubr.bf16.gmra.mrb[0].mxu0 %v1466
      %v2868 = vpop.f32.mrb[0].mxu0
      %v2869 = vadd.f32 0.0, %v2868
      %v2870 = vpop.f32.mrb[0].mxu0
      %v2871 = vpop.f32.mrb[0].mxu0
      %v2872 = vadd.f32 0.0, %v2871
      %v2873 = vpop.f32.mrb[0].mxu0
      %2874 = vmatprep.mubr.bf16.mxu0 0
      %2875 = vmatmul.mubr.bf16.gmra.mrb[0].mxu0 %v1469
      %v2876 = vpop.f32.mrb[0].mxu0
      %v2877 = vadd.f32 0.0, %v2876
      %v2878 = vpop.f32.mrb[0].mxu0
      %v2879 = vpop.f32.mrb[0].mxu0
      %v2880 = vadd.f32 0.0, %v2879
      %v2881 = vpop.f32.mrb[0].mxu0
      %2882 = vmatprep.mubr.bf16.mxu0 0
      %2883 = vmatmul.mubr.bf16.gmra.mrb[0].mxu0 %v1472
      %v2884 = vpop.f32.mrb[0].mxu0
      %v2885 = vadd.f32 0.0, %v2884
      %v2886 = vpop.f32.mrb[0].mxu0
      %v2887 = vpop.f32.mrb[0].mxu0
      %v2888 = vadd.f32 0.0, %v2887
      %v2889 = vpop.f32.mrb[0].mxu0
      %2890 = vmatprep.mubr.bf16.mxu0 0
      %2891 = vmatmul.mubr.bf16.gmra.mrb[0].mxu0 %v1475
      %v2892 = vpop.f32.mrb[0].mxu0
      %v2893 = vadd.f32 0.0, %v2892
      %v2894 = vpop.f32.mrb[0].mxu0
      %v2895 = vpop.f32.mrb[0].mxu0
      %v2896 = vadd.f32 0.0, %v2895
      %v2897 = vpop.f32.mrb[0].mxu0
      %2898 = vmatprep.mubr.bf16.mxu0 0
      %2899 = vmatmul.mubr.bf16.gmra.mrb[0].mxu0 %v1478
      %v2900 = vpop.f32.mrb[0].mxu0
      %v2901 = vadd.f32 0.0, %v2900
      %v2902 = vpop.f32.mrb[0].mxu0
      %v2903 = vpop.f32.mrb[0].mxu0
      %v2904 = vadd.f32 0.0, %v2903
      %v2905 = vpop.f32.mrb[0].mxu0
      %2906 = vmatprep.mubr.bf16.mxu0 0
      %2907 = vmatmul.mubr.bf16.gmra.mrb[0].mxu0 %v1481
      %v2908 = vpop.f32.mrb[0].mxu0
      %v2909 = vadd.f32 0.0, %v2908
      %v2910 = vpop.f32.mrb[0].mxu0
      %v2911 = vpop.f32.mrb[0].mxu0
      %v2912 = vadd.f32 0.0, %v2911
      %v2913 = vpop.f32.mrb[0].mxu0
      %2914 = vmatprep.mubr.bf16.mxu0 0
      %2915 = vmatmul.mubr.bf16.gmra.mrb[0].mxu0 %v1484
      %v2916 = vpop.f32.mrb[0].mxu0
      %v2917 = vadd.f32 0.0, %v2916
      %v2918 = vpop.f32.mrb[0].mxu0
      %v2919 = vpop.f32.mrb[0].mxu0
      %v2920 = vadd.f32 0.0, %v2919
      %v2921 = vpop.f32.mrb[0].mxu0
      %2922 = vmatprep.mubr.bf16.mxu0 0
      %2923 = vmatmul.mubr.bf16.gmra.mrb[0].mxu0 %v1487
      %v2924 = vpop.f32.mrb[0].mxu0
      %v2925 = vadd.f32 0.0, %v2924
      %v2926 = vpop.f32.mrb[0].mxu0
      %v2927 = vpop.f32.mrb[0].mxu0
      %v2928 = vadd.f32 0.0, %v2927
      %v2929 = vpop.f32.mrb[0].mxu0
      %2930 = vmatprep.mubr.bf16.mxu0 0
      %2931 = vmatmul.mubr.bf16.gmra.mrb[0].mxu0 %v1490
      %v2932 = vpop.f32.mrb[0].mxu0
      %v2933 = vadd.f32 0.0, %v2932
      %v2934 = vpop.f32.mrb[0].mxu0
      %v2935 = vpop.f32.mrb[0].mxu0
      %v2936 = vadd.f32 0.0, %v2935
      %v2937 = vpop.f32.mrb[0].mxu0
      %2938 = vmatprep.mubr.bf16.mxu0 0
      %2939 = vmatmul.mubr.bf16.gmra.mrb[0].mxu0 %v1493
      %v2940 = vpop.f32.mrb[0].mxu0
      %v2941 = vadd.f32 0.0, %v2940
      %v2942 = vpop.f32.mrb[0].mxu0
      %v2943 = vpop.f32.mrb[0].mxu0
      %v2944 = vadd.f32 0.0, %v2943
      %v2945 = vpop.f32.mrb[0].mxu0
      %2946 = vmatprep.mubr.bf16.mxu0 0
      %2947 = vmatmul.mubr.bf16.gmra.mrb[0].mxu0 %v1496
      %v2948 = vpop.f32.mrb[0].mxu0
      %v2949 = vadd.f32 0.0, %v2948
      %v2950 = vpop.f32.mrb[0].mxu0
      %v2951 = vpop.f32.mrb[0].mxu0
      %v2952 = vadd.f32 0.0, %v2951
      %v2953 = vpop.f32.mrb[0].mxu0
      %2954 = vmatprep.mubr.bf16.mxu0 0
      %2955 = vmatmul.mubr.bf16.gmra.mrb[0].mxu0 %v1499
      %v2956 = vpop.f32.mrb[0].mxu0
      %v2957 = vadd.f32 0.0, %v2956
      %v2958 = vpop.f32.mrb[0].mxu0
      %v2959 = vpop.f32.mrb[0].mxu0
      %v2960 = vadd.f32 0.0, %v2959
      %v2961 = vpop.f32.mrb[0].mxu0
      %2962 = vmatprep.mubr.bf16.mxu0 0
      %2963 = vmatmul.mubr.bf16.gmra.mrb[0].mxu0 %v1502
      %v2964 = vpop.f32.mrb[0].mxu0
      %v2965 = vadd.f32 0.0, %v2964
      %v2966 = vpop.f32.mrb[0].mxu0
      %v2967 = vpop.f32.mrb[0].mxu0
      %v2968 = vadd.f32 0.0, %v2967
      %v2969 = vpop.f32.mrb[0].mxu0
      %2970 = vmatprep.mubr.bf16.mxu0 0
      %2971 = vmatmul.mubr.bf16.gmra.mrb[0].mxu0 %v1505
      %v2972 = vpop.f32.mrb[0].mxu0
      %v2973 = vadd.f32 0.0, %v2972
      %v2974 = vpop.f32.mrb[0].mxu0
      %v2975 = vpop.f32.mrb[0].mxu0
      %v2976 = vadd.f32 0.0, %v2975
      %v2977 = vpop.f32.mrb[0].mxu0
      %2978 = vmatprep.mubr.bf16.mxu0 0
      %2979 = vmatmul.mubr.bf16.gmra.mrb[0].mxu0 %v2183
      %v2980 = vpop.f32.mrb[0].mxu0
      %v2981 = vadd.f32 0.0, %v2980
      %v2982 = vpop.f32.mrb[0].mxu0
      %v2983 = vpop.f32.mrb[0].mxu0
      %v2984 = vadd.f32 0.0, %v2983
      %v2985 = vpop.f32.mrb[0].mxu0
      %2986 = vmatprep.mubr.bf16.mxu0 0
      %2987 = vmatmul.mubr.bf16.gmra.mrb[0].mxu0 %v2829
      %v2988 = vpop.f32.mrb[0].mxu0
      %v2989 = vadd.f32 0.0, %v2988
      %v2990 = vpop.f32.mrb[0].mxu0
      %v2991 = vpop.f32.mrb[0].mxu0
      %v2992 = vadd.f32 0.0, %v2991
      %v2993 = vpop.f32.mrb[0].mxu0
      %2994 = vdwg.mxu0
      %v2995 = vadd.f32 %v2783, %v2869
      %v2996 = vadd.f32 %v2784, %v2872
      %v2997 = vadd.f32 %v2785, %v2877
      %v2998 = vadd.f32 %v2786, %v2880
      %v2999 = vadd.f32 %v2787, %v2885
      %v3000 = vadd.f32 %v2788, %v2888
      %v3001 = vadd.f32 %v2789, %v2893
      %v3002 = vadd.f32 %v2790, %v2896
      %v3003 = vadd.f32 %v2791, %v2901
      %v3004 = vadd.f32 %v2792, %v2904
      %v3005 = vadd.f32 %v2793, %v2909
      %v3006 = vadd.f32 %v2794, %v2912
      %v3007 = vadd.f32 %v2795, %v2917
      %v3008 = vadd.f32 %v2796, %v2920
      %v3009 = vadd.f32 %v2797, %v2925
      %v3010 = vadd.f32 %v2798, %v2928
      %v3011 = vadd.f32 %v2799, %v2933
      %v3012 = vadd.f32 %v2800, %v2936
      %v3013 = vadd.f32 %v2801, %v2941
      %v3014 = vadd.f32 %v2802, %v2944
      %v3015 = vadd.f32 %v2803, %v2949
      %v3016 = vadd.f32 %v2804, %v2952
      %v3017 = vadd.f32 %v2805, %v2957
      %v3018 = vadd.f32 %v2806, %v2960
      %v3019 = vadd.f32 %v2807, %v2965
      %v3020 = vadd.f32 %v2808, %v2968
      %v3021 = vadd.f32 %v2809, %v2973
      %v3022 = vadd.f32 %v2810, %v2976
      %v3023 = vadd.f32 %v2811, %v2981
      %v3024 = vadd.f32 %v2812, %v2984
      %v3025 = vadd.f32 %v2813, %v2989
      %v3026 = vadd.f32 %v2814, %v2992
      %v3027 = vld [vmem:[%s2] sm:$0x1]
      %v3029 = vlaneseq
      %v3030 = vshrl.u32 %v3029, 7
      %v3031 = vsub.s32 0, %v3030
      %v3032 = vrot.slane %v3027, %v3031
      %v3034 = vmul.f32 %v2995, %v3032
      %v3035 = vmul.f32 %v2996, %v3032
      %v3036 = vmul.f32 %v2997, %v3032
      %v3037 = vmul.f32 %v2998, %v3032
      %v3038 = vmul.f32 %v2999, %v3032
      %v3039 = vmul.f32 %v3000, %v3032
      %v3040 = vmul.f32 %v3001, %v3032
      %v3041 = vmul.f32 %v3002, %v3032
      %v3042 = vmul.f32 %v3003, %v3032
      %v3043 = vmul.f32 %v3004, %v3032
      %v3044 = vmul.f32 %v3005, %v3032
      %v3045 = vmul.f32 %v3006, %v3032
      %v3046 = vmul.f32 %v3007, %v3032
      %v3047 = vmul.f32 %v3008, %v3032
      %v3048 = vmul.f32 %v3009, %v3032
      %v3049 = vmul.f32 %v3010, %v3032
      %v3050 = vmul.f32 %v3011, %v3032
      %v3051 = vmul.f32 %v3012, %v3032
      %v3052 = vmul.f32 %v3013, %v3032
      %v3053 = vmul.f32 %v3014, %v3032
      %v3054 = vmul.f32 %v3015, %v3032
      %v3055 = vmul.f32 %v3016, %v3032
      %v3056 = vmul.f32 %v3017, %v3032
      %v3057 = vmul.f32 %v3018, %v3032
      %v3058 = vmul.f32 %v3019, %v3032
      %v3059 = vmul.f32 %v3020, %v3032
      %v3060 = vmul.f32 %v3021, %v3032
      %v3061 = vmul.f32 %v3022, %v3032
      %v3062 = vmul.f32 %v3023, %v3032
      %v3063 = vmul.f32 %v3024, %v3032
      %v3064 = vmul.f32 %v3025, %v3032
      %v3065 = vmul.f32 %v3026, %v3032
      %v3066 = vld [vmem:[%s3] sm:$0x1]
      %v3068 = vlaneseq
      %v3069 = vshrl.u32 %v3068, 7
      %v3070 = vsub.s32 0, %v3069
      %v3071 = vrot.slane %v3066, %v3070
      %v3073 = vadd.f32 %v3034, %v3071
      %v3074 = vadd.f32 %v3035, %v3071
      %v3075 = vadd.f32 %v3036, %v3071
      %v3076 = vadd.f32 %v3037, %v3071
      %v3077 = vadd.f32 %v3038, %v3071
      %v3078 = vadd.f32 %v3039, %v3071
      %v3079 = vadd.f32 %v3040, %v3071
      %v3080 = vadd.f32 %v3041, %v3071
      %v3081 = vadd.f32 %v3042, %v3071
      %v3082 = vadd.f32 %v3043, %v3071
      %v3083 = vadd.f32 %v3044, %v3071
      %v3084 = vadd.f32 %v3045, %v3071
      %v3085 = vadd.f32 %v3046, %v3071
      %v3086 = vadd.f32 %v3047, %v3071
      %v3087 = vadd.f32 %v3048, %v3071
      %v3088 = vadd.f32 %v3049, %v3071
      %v3089 = vadd.f32 %v3050, %v3071
      %v3090 = vadd.f32 %v3051, %v3071
      %v3091 = vadd.f32 %v3052, %v3071
      %v3092 = vadd.f32 %v3053, %v3071
      %v3093 = vadd.f32 %v3054, %v3071
      %v3094 = vadd.f32 %v3055, %v3071
      %v3095 = vadd.f32 %v3056, %v3071
      %v3096 = vadd.f32 %v3057, %v3071
      %v3097 = vadd.f32 %v3058, %v3071
      %v3098 = vadd.f32 %v3059, %v3071
      %v3099 = vadd.f32 %v3060, %v3071
      %v3100 = vadd.f32 %v3061, %v3071
      %v3101 = vadd.f32 %v3062, %v3071
      %v3102 = vadd.f32 %v3063, %v3071
      %v3103 = vadd.f32 %v3064, %v3071
      %v3104 = vadd.f32 %v3065, %v3071
      %v3105 = vmax.f32 %v3073, 0.0
      %v3106 = vmax.f32 %v3074, 0.0
      %v3107 = vmax.f32 %v3075, 0.0
      %v3108 = vmax.f32 %v3076, 0.0
      %v3109 = vmax.f32 %v3077, 0.0
      %v3110 = vmax.f32 %v3078, 0.0
      %v3111 = vmax.f32 %v3079, 0.0
      %v3112 = vmax.f32 %v3080, 0.0
      %v3113 = vmax.f32 %v3081, 0.0
      %v3114 = vmax.f32 %v3082, 0.0
      %v3115 = vmax.f32 %v3083, 0.0
      %v3116 = vmax.f32 %v3084, 0.0
      %v3117 = vmax.f32 %v3085, 0.0
      %v3118 = vmax.f32 %v3086, 0.0
      %v3119 = vmax.f32 %v3087, 0.0
      %v3120 = vmax.f32 %v3088, 0.0
      %v3121 = vmax.f32 %v3089, 0.0
      %v3122 = vmax.f32 %v3090, 0.0
      %v3123 = vmax.f32 %v3091, 0.0
      %v3124 = vmax.f32 %v3092, 0.0
      %v3125 = vmax.f32 %v3093, 0.0
      %v3126 = vmax.f32 %v3094, 0.0
      %v3127 = vmax.f32 %v3095, 0.0
      %v3128 = vmax.f32 %v3096, 0.0
      %v3129 = vmax.f32 %v3097, 0.0
      %v3130 = vmax.f32 %v3098, 0.0
      %v3131 = vmax.f32 %v3099, 0.0
      %v3132 = vmax.f32 %v3100, 0.0
      %v3133 = vmax.f32 %v3101, 0.0
      %v3134 = vmax.f32 %v3102, 0.0
      %v3135 = vmax.f32 %v3103, 0.0
      %v3136 = vmax.f32 %v3104, 0.0
      %v3137 = vmin.f32 %v3105, 6.0
      %v3138 = vmin.f32 %v3106, 6.0
      %v3139 = vmin.f32 %v3107, 6.0
      %v3140 = vmin.f32 %v3108, 6.0
      %v3141 = vmin.f32 %v3109, 6.0
      %v3142 = vmin.f32 %v3110, 6.0
      %v3143 = vmin.f32 %v3111, 6.0
      %v3144 = vmin.f32 %v3112, 6.0
      %v3145 = vmin.f32 %v3113, 6.0
      %v3146 = vmin.f32 %v3114, 6.0
      %v3147 = vmin.f32 %v3115, 6.0
      %v3148 = vmin.f32 %v3116, 6.0
      %v3149 = vmin.f32 %v3117, 6.0
      %v3150 = vmin.f32 %v3118, 6.0
      %v3151 = vmin.f32 %v3119, 6.0
      %v3152 = vmin.f32 %v3120, 6.0
      %v3153 = vmin.f32 %v3121, 6.0
      %v3154 = vmin.f32 %v3122, 6.0
      %v3155 = vmin.f32 %v3123, 6.0
      %v3156 = vmin.f32 %v3124, 6.0
      %v3157 = vmin.f32 %v3125, 6.0
      %v3158 = vmin.f32 %v3126, 6.0
      %v3159 = vmin.f32 %v3127, 6.0
      %v3160 = vmin.f32 %v3128, 6.0
      %v3161 = vmin.f32 %v3129, 6.0
      %v3162 = vmin.f32 %v3130, 6.0
      %v3163 = vmin.f32 %v3131, 6.0
      %v3164 = vmin.f32 %v3132, 6.0
      %v3165 = vmin.f32 %v3133, 6.0
      %v3166 = vmin.f32 %v3134, 6.0
      %v3167 = vmin.f32 %v3135, 6.0
      %v3168 = vmin.f32 %v3136, 6.0
      %v3169 = vld [vmem:[%s4] sm:$0xf]
      %v3170 = vunpack.c.l.bf16 %v3169
      %vm3171 = vcmask 64512
      %v3173 = vsel %vm3171, %v3137, 0
      %v3176 = vsel %vm3171, %v3138, 0
      %v3179 = vsel %vm3171, %v3139, 0
      %v3182 = vsel %vm3171, %v3140, 0
      %v3185 = vsel %vm3171, %v3141, 0
      %v3188 = vsel %vm3171, %v3142, 0
      %v3191 = vsel %vm3171, %v3143, 0
      %v3194 = vsel %vm3171, %v3144, 0
      %v3197 = vsel %vm3171, %v3145, 0
      %v3200 = vsel %vm3171, %v3146, 0
      %v3203 = vsel %vm3171, %v3147, 0
      %v3206 = vsel %vm3171, %v3148, 0
      %v3209 = vsel %vm3171, %v3149, 0
      %v3212 = vsel %vm3171, %v3150, 0
      %v3215 = vsel %vm3171, %v3151, 0
      %v3218 = vsel %vm3171, %v3152, 0
      %v3221 = vsel %vm3171, %v3153, 0
      %v3224 = vsel %vm3171, %v3154, 0
      %v3227 = vsel %vm3171, %v3155, 0
      %v3230 = vsel %vm3171, %v3156, 0
      %v3233 = vsel %vm3171, %v3157, 0
      %v3236 = vsel %vm3171, %v3158, 0
      %v3239 = vsel %vm3171, %v3159, 0
      %v3242 = vsel %vm3171, %v3160, 0
      %v3245 = vsel %vm3171, %v3161, 0
      %v3248 = vsel %vm3171, %v3162, 0
      %v3251 = vsel %vm3171, %v3163, 0
      %v3254 = vsel %vm3171, %v3164, 0
      %v3257 = vsel %vm3171, %v3165, 0
      %v3260 = vsel %vm3171, %v3166, 0
      %v3263 = vsel %vm3171, %v3167, 0
      %v3266 = vsel %vm3171, %v3168, 0
      %3268 = vmatprep.subr.mxu0 0.0
      %3269 = vmatpush1.msra.mxu0 %v3170
      %3270 = vmatprep.subr.mxu0 0.0
      %3271 = vmatpush1.msra.mxu0 0.0
      %3272 = vmatprep.subr.mxu0 0.0
      %3273 = vmatpush1.msra.mxu0 0.0
      %3274 = vmatprep.subr.mxu0 0.0
      %3275 = vmatpush1.msra.mxu0 0.0
      %3276 = vmatprep.subr.mxu0 0.0
      %3277 = vmatpush1.msra.mxu0 0.0
      %3278 = vmatprep.subr.mxu0 0.0
      %3279 = vmatpush1.msra.mxu0 0.0
      %3280 = vmatprep.subr.mxu0 0.0
      %3281 = vmatpush1.msra.mxu0 0.0
      %3282 = vmatprep.subr.mxu0 0.0
      %3283 = vmatpush1.msra.mxu0 0.0
      %3284 = vmatprep.subr.mxu0 0.0
      %3285 = vmatpush1.msra.mxu0 0.0
      %3286 = vmatprep.subr.mxu0 0.0
      %3287 = vmatpush1.msra.mxu0 0.0
      %3288 = vmatprep.subr.mxu0 0.0
      %3289 = vmatpush1.msra.mxu0 0.0
      %3290 = vmatprep.subr.mxu0 0.0
      %3291 = vmatpush1.msra.mxu0 0.0
      %3292 = vmatprep.subr.mxu0 0.0
      %3293 = vmatpush1.msra.mxu0 0.0
      %3294 = vmatprep.subr.mxu0 0.0
      %3295 = vmatpush1.msra.mxu0 0.0
      %3296 = vmatprep.subr.mxu0 0.0
      %3297 = vmatpush1.msra.mxu0 0.0
      %3298 = vmatprep.subr.mxu0 0.0
      %3299 = vmatpush1.msra.mxu0 0.0
      %3300 = vmatprep.subr.mxu0 0.0
      %3301 = vmatpush1.msra.mxu0 0.0
      %3302 = vmatprep.subr.mxu0 0.0
      %3303 = vmatpush1.msra.mxu0 0.0
      %3304 = vmatprep.subr.mxu0 0.0
      %3305 = vmatpush1.msra.mxu0 0.0
      %3306 = vmatprep.subr.mxu0 0.0
      %3307 = vmatpush1.msra.mxu0 0.0
      %3308 = vmatprep.subr.mxu0 0.0
      %3309 = vmatpush1.msra.mxu0 0.0
      %3310 = vmatprep.subr.mxu0 0.0
      %3311 = vmatpush1.msra.mxu0 0.0
      %3312 = vmatprep.subr.mxu0 0.0
      %3313 = vmatpush1.msra.mxu0 0.0
      %3314 = vmatprep.subr.mxu0 0.0
      %3315 = vmatpush1.msra.mxu0 0.0
      %3316 = vmatprep.subr.mxu0 0.0
      %3317 = vmatpush1.msra.mxu0 0.0
      %3318 = vmatprep.subr.mxu0 0.0
      %3319 = vmatpush1.msra.mxu0 0.0
      %3320 = vmatprep.subr.mxu0 0.0
      %3321 = vmatpush1.msra.mxu0 0.0
      %3322 = vmatprep.subr.mxu0 0.0
      %3323 = vmatpush1.msra.mxu0 0.0
      %3324 = vmatprep.subr.mxu0 0.0
      %3325 = vmatpush1.msra.mxu0 0.0
      %3326 = vmatprep.subr.mxu0 0.0
      %3327 = vmatpush1.msra.mxu0 0.0
      %3328 = vmatprep.subr.mxu0 0.0
      %3329 = vmatpush1.msra.mxu0 0.0
      %3330 = vmatprep.subr.mxu0 0.0
      %3331 = vmatpush1.msra.mxu0 0.0
      %3332 = vmatprep.mubr.f32.mxu0 0.0
      %3333 = vmatmul.mubr.f32.gmra.mrb[0].mxu0 %v3173
      %v3334 = vpop.f32.mrb[0].mxu0
      %v3335 = vadd.f32 0.0, %v3334
      %v3336 = vpop.f32.mrb[0].mxu0
      %3337 = vmatprep.mubr.f32.mxu0 0.0
      %3338 = vmatmul.mubr.f32.gmra.mrb[0].mxu0 %v3176
      %v3339 = vpop.f32.mrb[0].mxu0
      %v3340 = vadd.f32 0.0, %v3339
      %v3341 = vpop.f32.mrb[0].mxu0
      %3342 = vmatprep.mubr.f32.mxu0 0.0
      %3343 = vmatmul.mubr.f32.gmra.mrb[0].mxu0 %v3179
      %v3344 = vpop.f32.mrb[0].mxu0
      %v3345 = vadd.f32 0.0, %v3344
      %v3346 = vpop.f32.mrb[0].mxu0
      %3347 = vmatprep.mubr.f32.mxu0 0.0
      %3348 = vmatmul.mubr.f32.gmra.mrb[0].mxu0 %v3182
      %v3349 = vpop.f32.mrb[0].mxu0
      %v3350 = vadd.f32 0.0, %v3349
      %v3351 = vpop.f32.mrb[0].mxu0
      %3352 = vmatprep.mubr.f32.mxu0 0.0
      %3353 = vmatmul.mubr.f32.gmra.mrb[0].mxu0 %v3185
      %v3354 = vpop.f32.mrb[0].mxu0
      %v3355 = vadd.f32 0.0, %v3354
      %v3356 = vpop.f32.mrb[0].mxu0
      %3357 = vmatprep.mubr.f32.mxu0 0.0
      %3358 = vmatmul.mubr.f32.gmra.mrb[0].mxu0 %v3188
      %v3359 = vpop.f32.mrb[0].mxu0
      %v3360 = vadd.f32 0.0, %v3359
      %v3361 = vpop.f32.mrb[0].mxu0
      %3362 = vmatprep.mubr.f32.mxu0 0.0
      %3363 = vmatmul.mubr.f32.gmra.mrb[0].mxu0 %v3191
      %v3364 = vpop.f32.mrb[0].mxu0
      %v3365 = vadd.f32 0.0, %v3364
      %v3366 = vpop.f32.mrb[0].mxu0
      %3367 = vmatprep.mubr.f32.mxu0 0.0
      %3368 = vmatmul.mubr.f32.gmra.mrb[0].mxu0 %v3194
      %v3369 = vpop.f32.mrb[0].mxu0
      %v3370 = vadd.f32 0.0, %v3369
      %v3371 = vpop.f32.mrb[0].mxu0
      %3372 = vmatprep.mubr.f32.mxu0 0.0
      %3373 = vmatmul.mubr.f32.gmra.mrb[0].mxu0 %v3197
      %v3374 = vpop.f32.mrb[0].mxu0
      %v3375 = vadd.f32 0.0, %v3374
      %v3376 = vpop.f32.mrb[0].mxu0
      %3377 = vmatprep.mubr.f32.mxu0 0.0
      %3378 = vmatmul.mubr.f32.gmra.mrb[0].mxu0 %v3200
      %v3379 = vpop.f32.mrb[0].mxu0
      %v3380 = vadd.f32 0.0, %v3379
      %v3381 = vpop.f32.mrb[0].mxu0
      %3382 = vmatprep.mubr.f32.mxu0 0.0
      %3383 = vmatmul.mubr.f32.gmra.mrb[0].mxu0 %v3203
      %v3384 = vpop.f32.mrb[0].mxu0
      %v3385 = vadd.f32 0.0, %v3384
      %v3386 = vpop.f32.mrb[0].mxu0
      %3387 = vmatprep.mubr.f32.mxu0 0.0
      %3388 = vmatmul.mubr.f32.gmra.mrb[0].mxu0 %v3206
      %v3389 = vpop.f32.mrb[0].mxu0
      %v3390 = vadd.f32 0.0, %v3389
      %v3391 = vpop.f32.mrb[0].mxu0
      %3392 = vmatprep.mubr.f32.mxu0 0.0
      %3393 = vmatmul.mubr.f32.gmra.mrb[0].mxu0 %v3209
      %v3394 = vpop.f32.mrb[0].mxu0
      %v3395 = vadd.f32 0.0, %v3394
      %v3396 = vpop.f32.mrb[0].mxu0
      %3397 = vmatprep.mubr.f32.mxu0 0.0
      %3398 = vmatmul.mubr.f32.gmra.mrb[0].mxu0 %v3212
      %v3399 = vpop.f32.mrb[0].mxu0
      %v3400 = vadd.f32 0.0, %v3399
      %v3401 = vpop.f32.mrb[0].mxu0
      %3402 = vmatprep.mubr.f32.mxu0 0.0
      %3403 = vmatmul.mubr.f32.gmra.mrb[0].mxu0 %v3215
      %v3404 = vpop.f32.mrb[0].mxu0
      %v3405 = vadd.f32 0.0, %v3404
      %v3406 = vpop.f32.mrb[0].mxu0
      %3407 = vmatprep.mubr.f32.mxu0 0.0
      %3408 = vmatmul.mubr.f32.gmra.mrb[0].mxu0 %v3218
      %v3409 = vpop.f32.mrb[0].mxu0
      %v3410 = vadd.f32 0.0, %v3409
      %v3411 = vpop.f32.mrb[0].mxu0
      %3412 = vmatprep.mubr.f32.mxu0 0.0
      %3413 = vmatmul.mubr.f32.gmra.mrb[0].mxu0 %v3221
      %v3414 = vpop.f32.mrb[0].mxu0
      %v3415 = vadd.f32 0.0, %v3414
      %v3416 = vpop.f32.mrb[0].mxu0
      %3417 = vmatprep.mubr.f32.mxu0 0.0
      %3418 = vmatmul.mubr.f32.gmra.mrb[0].mxu0 %v3224
      %v3419 = vpop.f32.mrb[0].mxu0
      %v3420 = vadd.f32 0.0, %v3419
      %v3421 = vpop.f32.mrb[0].mxu0
      %3422 = vmatprep.mubr.f32.mxu0 0.0
      %3423 = vmatmul.mubr.f32.gmra.mrb[0].mxu0 %v3227
      %v3424 = vpop.f32.mrb[0].mxu0
      %v3425 = vadd.f32 0.0, %v3424
      %v3426 = vpop.f32.mrb[0].mxu0
      %3427 = vmatprep.mubr.f32.mxu0 0.0
      %3428 = vmatmul.mubr.f32.gmra.mrb[0].mxu0 %v3230
      %v3429 = vpop.f32.mrb[0].mxu0
      %v3430 = vadd.f32 0.0, %v3429
      %v3431 = vpop.f32.mrb[0].mxu0
      %3432 = vmatprep.mubr.f32.mxu0 0.0
      %3433 = vmatmul.mubr.f32.gmra.mrb[0].mxu0 %v3233
      %v3434 = vpop.f32.mrb[0].mxu0
      %v3435 = vadd.f32 0.0, %v3434
      %v3436 = vpop.f32.mrb[0].mxu0
      %3437 = vmatprep.mubr.f32.mxu0 0.0
      %3438 = vmatmul.mubr.f32.gmra.mrb[0].mxu0 %v3236
      %v3439 = vpop.f32.mrb[0].mxu0
      %v3440 = vadd.f32 0.0, %v3439
      %v3441 = vpop.f32.mrb[0].mxu0
      %3442 = vmatprep.mubr.f32.mxu0 0.0
      %3443 = vmatmul.mubr.f32.gmra.mrb[0].mxu0 %v3239
      %v3444 = vpop.f32.mrb[0].mxu0
      %v3445 = vadd.f32 0.0, %v3444
      %v3446 = vpop.f32.mrb[0].mxu0
      %3447 = vmatprep.mubr.f32.mxu0 0.0
      %3448 = vmatmul.mubr.f32.gmra.mrb[0].mxu0 %v3242
      %v3449 = vpop.f32.mrb[0].mxu0
      %v3450 = vadd.f32 0.0, %v3449
      %v3451 = vpop.f32.mrb[0].mxu0
      %3452 = vmatprep.mubr.f32.mxu0 0.0
      %3453 = vmatmul.mubr.f32.gmra.mrb[0].mxu0 %v3245
      %v3454 = vpop.f32.mrb[0].mxu0
      %v3455 = vadd.f32 0.0, %v3454
      %v3456 = vpop.f32.mrb[0].mxu0
      %3457 = vmatprep.mubr.f32.mxu0 0.0
      %3458 = vmatmul.mubr.f32.gmra.mrb[0].mxu0 %v3248
      %v3459 = vpop.f32.mrb[0].mxu0
      %v3460 = vadd.f32 0.0, %v3459
      %v3461 = vpop.f32.mrb[0].mxu0
      %3462 = vmatprep.mubr.f32.mxu0 0.0
      %3463 = vmatmul.mubr.f32.gmra.mrb[0].mxu0 %v3251
      %v3464 = vpop.f32.mrb[0].mxu0
      %v3465 = vadd.f32 0.0, %v3464
      %v3466 = vpop.f32.mrb[0].mxu0
      %3467 = vmatprep.mubr.f32.mxu0 0.0
      %3468 = vmatmul.mubr.f32.gmra.mrb[0].mxu0 %v3254
      %v3469 = vpop.f32.mrb[0].mxu0
      %v3470 = vadd.f32 0.0, %v3469
      %v3471 = vpop.f32.mrb[0].mxu0
      %3472 = vmatprep.mubr.f32.mxu0 0.0
      %3473 = vmatmul.mubr.f32.gmra.mrb[0].mxu0 %v3257
      %v3474 = vpop.f32.mrb[0].mxu0
      %v3475 = vadd.f32 0.0, %v3474
      %v3476 = vpop.f32.mrb[0].mxu0
      %3477 = vmatprep.mubr.f32.mxu0 0.0
      %3478 = vmatmul.mubr.f32.gmra.mrb[0].mxu0 %v3260
      %v3479 = vpop.f32.mrb[0].mxu0
      %v3480 = vadd.f32 0.0, %v3479
      %v3481 = vpop.f32.mrb[0].mxu0
      %3482 = vmatprep.mubr.f32.mxu0 0.0
      %3483 = vmatmul.mubr.f32.gmra.mrb[0].mxu0 %v3263
      %v3484 = vpop.f32.mrb[0].mxu0
      %v3485 = vadd.f32 0.0, %v3484
      %v3486 = vpop.f32.mrb[0].mxu0
      %3487 = vmatprep.mubr.f32.mxu0 0.0
      %3488 = vmatmul.mubr.f32.gmra.mrb[0].mxu0 %v3266
      %v3489 = vpop.f32.mrb[0].mxu0
      %v3490 = vadd.f32 0.0, %v3489
      %v3491 = vpop.f32.mrb[0].mxu0
      %3492 = vdwg.mxu0
      %v3493 = vld [vmem:[%s5] sm:$0x1]
      %v3495 = vlaneseq
      %v3496 = vshrl.u32 %v3495, 7
      %v3497 = vsub.s32 0, %v3496
      %v3498 = vrot.slane %v3493, %v3497
      %v3500 = vmul.f32 %v3335, %v3498
      %v3501 = vmul.f32 %v3340, %v3498
      %v3502 = vmul.f32 %v3345, %v3498
      %v3503 = vmul.f32 %v3350, %v3498
      %v3504 = vmul.f32 %v3355, %v3498
      %v3505 = vmul.f32 %v3360, %v3498
      %v3506 = vmul.f32 %v3365, %v3498
      %v3507 = vmul.f32 %v3370, %v3498
      %v3508 = vmul.f32 %v3375, %v3498
      %v3509 = vmul.f32 %v3380, %v3498
      %v3510 = vmul.f32 %v3385, %v3498
      %v3511 = vmul.f32 %v3390, %v3498
      %v3512 = vmul.f32 %v3395, %v3498
      %v3513 = vmul.f32 %v3400, %v3498
      %v3514 = vmul.f32 %v3405, %v3498
      %v3515 = vmul.f32 %v3410, %v3498
      %v3516 = vmul.f32 %v3415, %v3498
      %v3517 = vmul.f32 %v3420, %v3498
      %v3518 = vmul.f32 %v3425, %v3498
      %v3519 = vmul.f32 %v3430, %v3498
      %v3520 = vmul.f32 %v3435, %v3498
      %v3521 = vmul.f32 %v3440, %v3498
      %v3522 = vmul.f32 %v3445, %v3498
      %v3523 = vmul.f32 %v3450, %v3498
      %v3524 = vmul.f32 %v3455, %v3498
      %v3525 = vmul.f32 %v3460, %v3498
      %v3526 = vmul.f32 %v3465, %v3498
      %v3527 = vmul.f32 %v3470, %v3498
      %v3528 = vmul.f32 %v3475, %v3498
      %v3529 = vmul.f32 %v3480, %v3498
      %v3530 = vmul.f32 %v3485, %v3498
      %v3531 = vmul.f32 %v3490, %v3498
      %v3532 = vld [vmem:[%s6] sm:$0x1]
      %v3534 = vlaneseq
      %v3535 = vshrl.u32 %v3534, 7
      %v3536 = vsub.s32 0, %v3535
      %v3537 = vrot.slane %v3532, %v3536
      %v3539 = vadd.f32 %v3500, %v3537
      %v3540 = vadd.f32 %v3501, %v3537
      %v3541 = vadd.f32 %v3502, %v3537
      %v3542 = vadd.f32 %v3503, %v3537
      %v3543 = vadd.f32 %v3504, %v3537
      %v3544 = vadd.f32 %v3505, %v3537
      %v3545 = vadd.f32 %v3506, %v3537
      %v3546 = vadd.f32 %v3507, %v3537
      %v3547 = vadd.f32 %v3508, %v3537
      %v3548 = vadd.f32 %v3509, %v3537
      %v3549 = vadd.f32 %v3510, %v3537
      %v3550 = vadd.f32 %v3511, %v3537
      %v3551 = vadd.f32 %v3512, %v3537
      %v3552 = vadd.f32 %v3513, %v3537
      %v3553 = vadd.f32 %v3514, %v3537
      %v3554 = vadd.f32 %v3515, %v3537
      %v3555 = vadd.f32 %v3516, %v3537
      %v3556 = vadd.f32 %v3517, %v3537
      %v3557 = vadd.f32 %v3518, %v3537
      %v3558 = vadd.f32 %v3519, %v3537
      %v3559 = vadd.f32 %v3520, %v3537
      %v3560 = vadd.f32 %v3521, %v3537
      %v3561 = vadd.f32 %v3522, %v3537
      %v3562 = vadd.f32 %v3523, %v3537
      %v3563 = vadd.f32 %v3524, %v3537
      %v3564 = vadd.f32 %v3525, %v3537
      %v3565 = vadd.f32 %v3526, %v3537
      %v3566 = vadd.f32 %v3527, %v3537
      %v3567 = vadd.f32 %v3528, %v3537
      %v3568 = vadd.f32 %v3529, %v3537
      %v3569 = vadd.f32 %v3530, %v3537
      %v3570 = vadd.f32 %v3531, %v3537
      %v3571 = vunpack.c.l.bf16 %v375
      %v3572 = vunpack.c.l.bf16 %v385
      %v3573 = vunpack.c.l.bf16 %v399
      %v3574 = vunpack.c.l.bf16 %v409
      %v3575 = vunpack.c.l.bf16 %v423
      %v3576 = vunpack.c.l.bf16 %v433
      %v3577 = vunpack.c.l.bf16 %v447
      %v3578 = vunpack.c.l.bf16 %v457
      %v3579 = vunpack.c.l.bf16 %v471
      %v3580 = vunpack.c.l.bf16 %v481
      %v3581 = vunpack.c.l.bf16 %v495
      %v3582 = vunpack.c.l.bf16 %v505
      %v3583 = vunpack.c.l.bf16 %v519
      %v3584 = vunpack.c.l.bf16 %v529
      %v3585 = vunpack.c.l.bf16 %v543
      %v3586 = vunpack.c.l.bf16 %v553
      %v3587 = vunpack.c.l.bf16 %v567
      %v3588 = vunpack.c.l.bf16 %v577
      %v3589 = vunpack.c.l.bf16 %v591
      %v3590 = vunpack.c.l.bf16 %v601
      %v3591 = vunpack.c.l.bf16 %v615
      %v3592 = vunpack.c.l.bf16 %v625
      %v3593 = vunpack.c.l.bf16 %v639
      %v3594 = vunpack.c.l.bf16 %v649
      %v3595 = vunpack.c.l.bf16 %v663
      %v3596 = vunpack.c.l.bf16 %v673
      %v3597 = vunpack.c.l.bf16 %v687
      %v3598 = vunpack.c.l.bf16 %v697
      %v3599 = vunpack.c.l.bf16 %v711
      %v3600 = vunpack.c.l.bf16 %v721
      %v3601 = vunpack.c.l.bf16 %v1922
      %v3602 = vunpack.c.l.bf16 %v1932
      %v3603 = vadd.f32 %v3539, %v3571
      %v3604 = vadd.f32 %v3540, %v3572
      %v3605 = vadd.f32 %v3541, %v3573
      %v3606 = vadd.f32 %v3542, %v3574
      %v3607 = vadd.f32 %v3543, %v3575
      %v3608 = vadd.f32 %v3544, %v3576
      %v3609 = vadd.f32 %v3545, %v3577
      %v3610 = vadd.f32 %v3546, %v3578
      %v3611 = vadd.f32 %v3547, %v3579
      %v3612 = vadd.f32 %v3548, %v3580
      %v3613 = vadd.f32 %v3549, %v3581
      %v3614 = vadd.f32 %v3550, %v3582
      %v3615 = vadd.f32 %v3551, %v3583
      %v3616 = vadd.f32 %v3552, %v3584
      %v3617 = vadd.f32 %v3553, %v3585
      %v3618 = vadd.f32 %v3554, %v3586
      %v3619 = vadd.f32 %v3555, %v3587
      %v3620 = vadd.f32 %v3556, %v3588
      %v3621 = vadd.f32 %v3557, %v3589
      %v3622 = vadd.f32 %v3558, %v3590
      %v3623 = vadd.f32 %v3559, %v3591
      %v3624 = vadd.f32 %v3560, %v3592
      %v3625 = vadd.f32 %v3561, %v3593
      %v3626 = vadd.f32 %v3562, %v3594
      %v3627 = vadd.f32 %v3563, %v3595
      %v3628 = vadd.f32 %v3564, %v3596
      %v3629 = vadd.f32 %v3565, %v3597
      %v3630 = vadd.f32 %v3566, %v3598
      %v3631 = vadd.f32 %v3567, %v3599
      %v3632 = vadd.f32 %v3568, %v3600
      %v3633 = vadd.f32 %v3569, %v3601
      %v3634 = vadd.f32 %v3570, %v3602
      %3635 = vst.msk [vmem:[%s278] sm:$0xff] %vm772, %v3603
      %3636 = vst.msk [vmem:[%s278 + $0x8] sm:$0xff] %vm772, %v3604
      %3637 = vst.msk [vmem:[%s278 + $0x10] sm:$0xff] %vm772, %v3605
      %3638 = vst.msk [vmem:[%s278 + $0x18] sm:$0xff] %vm772, %v3606
      %3639 = vst.msk [vmem:[%s278 + $0x20] sm:$0xff] %vm772, %v3607
      %3640 = vst.msk [vmem:[%s278 + $0x28] sm:$0xff] %vm772, %v3608
      %3641 = vst.msk [vmem:[%s278 + $0x30] sm:$0xff] %vm772, %v3609
      %3642 = vst.msk [vmem:[%s278 + $0x38] sm:$0xff] %vm772, %v3610
      %3643 = vst.msk [vmem:[%s278 + $0x40] sm:$0xff] %vm772, %v3611
      %3644 = vst.msk [vmem:[%s278 + $0x48] sm:$0xff] %vm772, %v3612
      %3645 = vst.msk [vmem:[%s278 + $0x50] sm:$0xff] %vm772, %v3613
      %3646 = vst.msk [vmem:[%s278 + $0x58] sm:$0xff] %vm772, %v3614
      %3647 = vst.msk [vmem:[%s278 + $0x60] sm:$0xff] %vm772, %v3615
      %3648 = vst.msk [vmem:[%s278 + $0x68] sm:$0xff] %vm772, %v3616
      %3649 = vst.msk [vmem:[%s278 + $0x70] sm:$0xff] %vm772, %v3617
      %3650 = vst.msk [vmem:[%s278 + $0x78] sm:$0xff] %vm772, %v3618
      %3651 = vst.msk [vmem:[%s278 + $0x80] sm:$0xff] %vm772, %v3619
      %3652 = vst.msk [vmem:[%s278 + $0x88] sm:$0xff] %vm772, %v3620
      %3653 = vst.msk [vmem:[%s278 + $0x90] sm:$0xff] %vm772, %v3621
      %3654 = vst.msk [vmem:[%s278 + $0x98] sm:$0xff] %vm772, %v3622
      %3655 = vst.msk [vmem:[%s278 + $0xa0] sm:$0xff] %vm772, %v3623
      %3656 = vst.msk [vmem:[%s278 + $0xa8] sm:$0xff] %vm772, %v3624
      %3657 = vst.msk [vmem:[%s278 + $0xb0] sm:$0xff] %vm772, %v3625
      %3658 = vst.msk [vmem:[%s278 + $0xb8] sm:$0xff] %vm772, %v3626
      %3659 = vst.msk [vmem:[%s278 + $0xc0] sm:$0xff] %vm772, %v3627
      %3660 = vst.msk [vmem:[%s278 + $0xc8] sm:$0xff] %vm772, %v3628
      %3661 = vst.msk [vmem:[%s278 + $0xd0] sm:$0xff] %vm772, %v3629
      %3662 = vst.msk [vmem:[%s278 + $0xd8] sm:$0xff] %vm772, %v3630
      %3663 = vst.msk [vmem:[%s278 + $0xe0] sm:$0xff] %vm772, %v3631
      %3664 = vst.msk [vmem:[%s278 + $0xe8] sm:$0xff] %vm772, %v3632
      %3665 = vst.msk [vmem:[%s278 + $0xf0] sm:$0xff] %vm772, %v3633
      %3666 = vst.msk [vmem:[%s278 + $0xf8] sm:$0xff] %vm772, %v3634
      %p3667 = scmp.lt.s32.totalorder %s18, 1
      %s3668 = scalar_select %p3667, %s18, 1
      %s3669 = smul.addr %s3668, 32
      %s3670 = smul.addr %s3669, 8
      %s3671 = scalar_lea.vmem %s7, %s3670
      // Predicated region
      $region49: #{tpu_custom_call.1} parent=47 // pred_check
        %p3672 = pneg %p188
      $region50: #{tpu_custom_call.1} parent=47 // pred_check_branch
        %3674 = sbr.rel (%p3672) target = $region52
      $region51: #{tpu_custom_call.1} parent=47 // pred_region
        _
      $region52: #{tpu_custom_call.1} parent=47 // pred_fallthru
        _
    $region48: #{tpu_custom_call.1} parent=5 // pred_fallthru
      _
    %p3675 = scmp.le.s32.totalorder 2, %s13
    // Predicated region
    $region53: #{tpu_custom_call.1} parent=5 // pred_check
      %p3676 = pneg %p3675
    $region54: #{tpu_custom_call.1} parent=5 // pred_check_branch
      %3678 = sbr.rel (%p3676) target = $region56
    $region55: #{tpu_custom_call.1} parent=5 // pred_region
      %s3679 = ssub.s32 %s13, 2
      // Predicated region
      $region57: #{tpu_custom_call.1} parent=55 // pred_check
        %p3680 = pneg %p194
      $region58: #{tpu_custom_call.1} parent=55 // pred_check_branch
        %3682 = sbr.rel (%p3680) target = $region60
      $region59: #{tpu_custom_call.1} parent=55 // pred_region
        %p3683 = scmp.lt.s32.totalorder %s19, 1
        %s3684 = scalar_select %p3683, %s19, 1
        %s3685 = smul.addr %s3684, 32
        %s3686 = smul.addr %s3685, 8
        %s3687 = scalar_lea.vmem %s7, %s3686
      $region60: #{tpu_custom_call.1} parent=55 // pred_fallthru
        _
    $region56: #{tpu_custom_call.1} parent=5 // pred_fallthru
      _
  $region6: #{tpu_custom_call.1} parent=0 // loop_footer
    %s17 = sadd.s32 1, %s13
  $region7: #{tpu_custom_call.1} parent=0 // loop_footer_branch
    %12 = sbr.rel target = $region3
  $region8: #{tpu_custom_call.1} parent=0 // loop_exit
    _

</llo_original>
